<compile_context>
chip_gen: v5e
topology: v5e:2x2
jax: 0.10.0
libtpu: 0.0.40
codegen_flags: <defaults>
</compile_context>

<pallas_src>
import functools

import numpy as np
import jax
import jax.numpy as jnp
from jax import lax
from jax.experimental import pallas as pl
from jax.experimental.pallas import tpu as pltpu


# ---------------------------------------------------------------------------
# 0/1 selector matrices (encode kernel offset / stride / padding / scatter)
# ---------------------------------------------------------------------------
def _conv_selectors(H, W, k, stride, padding):
    """Forward conv / maxpool:  input ih = oh*stride - padding + ki."""
    OH = (H + 2 * padding - k) // stride + 1
    OW = (W + 2 * padding - k) // stride + 1
    R = np.zeros((k, OH, H), np.float32)
    Q = np.zeros((k, W, OW), np.float32)
    for ki in range(k):
        for oh in range(OH):
            ih = oh * stride - padding + ki
            if 0 <= ih < H:
                R[ki, oh, ih] = 1.0
    for kj in range(k):
        for ow in range(OW):
            iw = ow * stride - padding + kj
            if 0 <= iw < W:
                Q[kj, iw, ow] = 1.0
    return R, Q, OH, OW


def _convT_selectors(H, W, k, stride, padding):
    """ConvTranspose (PyTorch semantics):  output oh = ih*stride - padding + ki."""
    OH = (H - 1) * stride - 2 * padding + k
    OW = (W - 1) * stride - 2 * padding + k
    R = np.zeros((k, OH, H), np.float32)
    Q = np.zeros((k, W, OW), np.float32)
    for ki in range(k):
        for ih in range(H):
            oh = ih * stride - padding + ki
            if 0 <= oh < OH:
                R[ki, oh, ih] = 1.0
    for kj in range(k):
        for iw in range(W):
            ow = iw * stride - padding + kj
            if 0 <= ow < OW:
                Q[kj, iw, ow] = 1.0
    return R, Q, OH, OW


# (name, type, Cin, Cout, k, stride, padding, activation)
_LAYERS = (
    ("ec1",   "conv",  1, 16, 3, 3, 1, "softplus"),
    ("pool1", "pool", 16, 16, 2, 2, 0, None),
    ("ec2",   "conv", 16,  8, 3, 2, 1, "softplus"),
    ("pool2", "pool",  8,  8, 2, 1, 0, None),
    ("dt1",   "convT", 8, 16, 3, 2, 0, "softplus"),
    ("dt2",   "convT", 16, 8, 5, 3, 1, "softplus"),
    ("dt3",   "convT", 8,  1, 2, 2, 1, "tanh"),
)


@functools.lru_cache(maxsize=None)
def _make_plan(nb):
    """Static (weight independent) per-layer selector data for batch-block nb."""
    H = W = 28
    plan = []
    for name, typ, cin, cout, k, s, p, act in _LAYERS:
        if typ == "convT":
            R, Q, OH, OW = _convT_selectors(H, W, k, s, p)
        else:
            R, Q, OH, OW = _conv_selectors(H, W, k, s, p)
        # Left matrices: (k, nb*OH, nb*H), block diagonal over the batch block.
        L = np.stack([np.kron(np.eye(nb, dtype=np.float32), R[ki]) for ki in range(k)])
        entry = dict(name=name, typ=typ, k=k, act=act, cin=cin, cout=cout,
                     Q=Q, L=L, OH=OH, OW=OW)
        if typ == "pool":
            # Channel-preserving right matrices: (k, W*C, OW*C).
            entry["Rp"] = np.stack(
                [np.kron(Q[kj], np.eye(cin, dtype=np.float32)) for kj in range(k)])
        plan.append(entry)
        H, W = OH, OW
    return plan, (H, W)


def _layer_operands(plan, params):
    """Flat list of kernel operands (weight-dependent parts built with jnp)."""
    ops, meta = [], []
    for e in plan:
        typ, k = e["typ"], e["k"]
        L = jnp.asarray(e["L"])
        if typ == "pool":
            ops += [L, jnp.asarray(e["Rp"])]
            meta.append((typ, k, None))
        else:
            w = params[e["name"] + "_w"]
            b = params[e["name"] + "_b"]
            Q = e["Q"]
            mats = []
            for ki in range(k):
                for kj in range(k):
                    wm = w[:, :, ki, kj]
                    if typ == "conv":           # (Cout, Cin) -> (Cin, Cout)
                        wm = wm.T
                    # kron: rows (iw, ci), cols (ow, co) -> fuses column shift
                    # with the channel mixing into one lane-dense matmul operand.
                    mats.append(jnp.kron(jnp.asarray(Q[kj]), wm))
            r_stack = jnp.stack(mats)                        # (k*k, W*Cin, OW*Cout)
            b_row = jnp.tile(b, e["OW"]).reshape(1, e["OW"] * e["cout"])
            ops += [L, r_stack, b_row]
            meta.append((typ, k, e["act"]))
    return ops, tuple(meta)


# ---------------------------------------------------------------------------
# Fully fused forward-pass kernel (all layers, all activations, in VMEM)
# ---------------------------------------------------------------------------
def _build_kernel(meta):
    def kernel(*refs):
        a0_ref, o_ref = refs[0], refs[-1]
        a = a0_ref[...]
        idx = 1
        for typ, k, act in meta:
            if typ == "pool":
                l_ref, r_ref = refs[idx], refs[idx + 1]
                idx += 2
                out = None
                for ki in range(k):
                    la = jnp.dot(l_ref[ki], a, preferred_element_type=jnp.float32)
                    for kj in range(k):
                        t = jnp.dot(la, r_ref[kj], preferred_element_type=jnp.float32)
                        out = t if out is None else jnp.maximum(out, t)
                a = out
            else:
                l_ref, r_ref, b_ref = refs[idx], refs[idx + 1], refs[idx + 2]
                idx += 3
                acc = None
                for ki in range(k):
                    la = jnp.dot(l_ref[ki], a, preferred_element_type=jnp.float32)
                    for kj in range(k):
                        t = jnp.dot(la, r_ref[ki * k + kj],
                                    preferred_element_type=jnp.float32)
                        acc = t if acc is None else acc + t
                y = acc + b_ref[...]                       # (1, OW*Cout) broadcast
                if act == "softplus":
                    # PyTorch Softplus(beta=1, threshold=20).
                    y = jnp.where(y > 20.0, y,
                                  jnp.log(1.0 + jnp.exp(jnp.minimum(y, 20.0))))
                else:  # tanh
                    y = jnp.tanh(y)
                a = y
        o_ref[...] = a
    return kernel


def _pick_batch_block(n):
    if n <= 8:
        return n
    for nb in (8, 4, 2):            # even nb keeps nb*28 a multiple of 8
        if n % nb == 0:
            return nb
    return n                        # odd large batch: single block


def conv_ae_mnist_forward(params, x):
    N, C, H, W = x.shape
    assert (C, H, W) == (1, 28, 28), x.shape
    nb = _pick_batch_block(N)
    plan, _ = _make_plan(nb)
    ops, meta = _layer_operands(plan, params)

    # Activation layout: rows = (n, ih), cols = (iw, ci).
    a0 = x.transpose(0, 2, 3, 1).reshape(N * 28, 28)

    in_specs = [pl.BlockSpec((nb * 28, 28), lambda i: (i, 0))]
    for a in ops:
        in_specs.append(pl.BlockSpec(a.shape, lambda i, _nd=a.ndim: (0,) * _nd))

    out2d = pl.pallas_call(
        _build_kernel(meta),
        out_shape=jax.ShapeDtypeStruct((N * 28, 28), jnp.float32),
        grid=(N // nb,),
        in_specs=in_specs,
        out_specs=pl.BlockSpec((nb * 28, 28), lambda i: (i, 0)),
        compiler_params=pltpu.CompilerParams(
            dimension_semantics=("parallel",)),
    )(a0, *ops)

    return out2d.reshape(N, 28, 28, 1).transpose(0, 3, 1, 2)


# ---------------------------------------------------------------------------
# Parameters + pure-JAX reference (for a correctness cross-check)
# ---------------------------------------------------------------------------
def init_params(key):
    def u(k, shape, fan_in):
        bound = 1.0 / (fan_in ** 0.5)
        return jax.random.uniform(k, shape, jnp.float32, -bound, bound)

    ks = jax.random.split(key, 10)
    return {
        "ec1_w": u(ks[0], (16, 1, 3, 3), 1 * 9),
        "ec1_b": u(ks[1], (16,), 1 * 9),
        "ec2_w": u(ks[2], (8, 16, 3, 3), 16 * 9),
        "ec2_b": u(ks[3], (8,), 16 * 9),
        "dt1_w": u(ks[4], (8, 16, 3, 3), 8 * 9),
        "dt1_b": u(ks[5], (16,), 8 * 9),
        "dt2_w": u(ks[6], (16, 8, 5, 5), 16 * 25),
        "dt2_b": u(ks[7], (8,), 16 * 25),
        "dt3_w": u(ks[8], (8, 1, 2, 2), 8 * 4),
        "dt3_b": u(ks[9], (1,), 8 * 4),
    }


def _softplus_ref(y):
    return jnp.where(y > 20.0, y, jnp.log1p(jnp.exp(jnp.minimum(y, 20.0))))


def _reference_forward(params, x):
    dn = ("NCHW", "OIHW", "NCHW")

    def conv(x, w, b, s, p):
        y = lax.conv_general_dilated(x, w, (s, s), [(p, p), (p, p)],
                                     dimension_numbers=dn)
        return y + b.reshape(1, -1, 1, 1)

    def convT(x, w, b, s, p):
        k = w.shape[-1]
        weq = jnp.flip(w, (2, 3)).transpose(1, 0, 2, 3)
        y = lax.conv_general_dilated(x, weq, (1, 1), [(k - 1 - p, k - 1 - p)] * 2,
                                     lhs_dilation=(s, s), dimension_numbers=dn)
        return y + b.reshape(1, -1, 1, 1)

    def maxpool(x, k, s):
        return lax.reduce_window(x, -jnp.inf, lax.max,
                                 (1, 1, k, k), (1, 1, s, s), "VALID")

    x = _softplus_ref(conv(x, params["ec1_w"], params["ec1_b"], 3, 1))
    x = maxpool(x, 2, 2)
    x = _softplus_ref(conv(x, params["ec2_w"], params["ec2_b"], 2, 1))
    x = maxpool(x, 2, 1)
    x = _softplus_ref(convT(x, params["dt1_w"], params["dt1_b"], 2, 0))
    x = _softplus_ref(convT(x, params["dt2_w"], params["dt2_b"], 3, 1))
    x = jnp.tanh(convT(x, params["dt3_w"], params["dt3_b"], 2, 1))
    return x


if __name__ == "__main__":
    key = jax.random.PRNGKey(0)
    pkey, xkey = jax.random.split(key)
    params = init_params(pkey)
    x = jax.random.normal(xkey, (2, 1, 28, 28), jnp.float32)

    fwd = jax.jit(conv_ae_mnist_forward)
    y = fwd(params, x)
    jax.block_until_ready(y)
    assert y.shape == (2, 1, 28, 28), y.shape
    assert y.dtype == jnp.float32

    # Cross-check the fused Pallas kernel against a pure-JAX reference.
    y_ref = jax.jit(_reference_forward)(params, x)
    np.testing.assert_allclose(np.asarray(y), np.asarray(y_ref), rtol=0.0, atol=3e-2)

    print("KERNEL_OK")
</pallas_src>

<mosaic_0001>
module attributes {stable_mosaic.version = 11 : i64} {
  func.func @kernel(%arg0: i32, %arg1: memref<56x28xf32, #tpu.memory_space<vmem>>, %arg2: memref<3x20x56xf32, #tpu.memory_space<vmem>>, %arg3: memref<9x28x160xf32, #tpu.memory_space<vmem>>, %arg4: memref<1x160xf32, #tpu.memory_space<vmem>>, %arg5: memref<2x10x20xf32, #tpu.memory_space<vmem>>, %arg6: memref<2x160x80xf32, #tpu.memory_space<vmem>>, %arg7: memref<3x6x10xf32, #tpu.memory_space<vmem>>, %arg8: memref<9x80x24xf32, #tpu.memory_space<vmem>>, %arg9: memref<1x24xf32, #tpu.memory_space<vmem>>, %arg10: memref<2x4x6xf32, #tpu.memory_space<vmem>>, %arg11: memref<2x24x16xf32, #tpu.memory_space<vmem>>, %arg12: memref<3x10x4xf32, #tpu.memory_space<vmem>>, %arg13: memref<9x16x80xf32, #tpu.memory_space<vmem>>, %arg14: memref<1x80xf32, #tpu.memory_space<vmem>>, %arg15: memref<5x30x10xf32, #tpu.memory_space<vmem>>, %arg16: memref<25x80x120xf32, #tpu.memory_space<vmem>>, %arg17: memref<1x120xf32, #tpu.memory_space<vmem>>, %arg18: memref<2x56x30xf32, #tpu.memory_space<vmem>>, %arg19: memref<4x120x28xf32, #tpu.memory_space<vmem>>, %arg20: memref<1x28xf32, #tpu.memory_space<vmem>>, %arg21: memref<56x28xf32, #tpu.memory_space<vmem>>) attributes {dimension_semantics = [#tpu.dimension_semantics<parallel>], iteration_bounds = array<i64: 1>, scalar_prefetch = 0 : i64, scratch_operands = 0 : i64, tpu.core_type = #tpu.core_type<tc>, window_params = [{transform_indices = @transform_0, window_bounds = array<i64: 56, 28>}, {pipeline_mode = #tpu.pipeline_mode<synchronous>, transform_indices = @transform_1, window_bounds = array<i64: 3, 20, 56>}, {pipeline_mode = #tpu.pipeline_mode<synchronous>, transform_indices = @transform_2, window_bounds = array<i64: 9, 28, 160>}, {pipeline_mode = #tpu.pipeline_mode<synchronous>, transform_indices = @transform_3, window_bounds = array<i64: 1, 160>}, {pipeline_mode = #tpu.pipeline_mode<synchronous>, transform_indices = @transform_4, window_bounds = array<i64: 2, 10, 20>}, {pipeline_mode = #tpu.pipeline_mode<synchronous>, transform_indices = @transform_5, window_bounds = array<i64: 2, 160, 80>}, {pipeline_mode = #tpu.pipeline_mode<synchronous>, transform_indices = @transform_6, window_bounds = array<i64: 3, 6, 10>}, {pipeline_mode = #tpu.pipeline_mode<synchronous>, transform_indices = @transform_7, window_bounds = array<i64: 9, 80, 24>}, {pipeline_mode = #tpu.pipeline_mode<synchronous>, transform_indices = @transform_8, window_bounds = array<i64: 1, 24>}, {pipeline_mode = #tpu.pipeline_mode<synchronous>, transform_indices = @transform_9, window_bounds = array<i64: 2, 4, 6>}, {pipeline_mode = #tpu.pipeline_mode<synchronous>, transform_indices = @transform_10, window_bounds = array<i64: 2, 24, 16>}, {pipeline_mode = #tpu.pipeline_mode<synchronous>, transform_indices = @transform_11, window_bounds = array<i64: 3, 10, 4>}, {pipeline_mode = #tpu.pipeline_mode<synchronous>, transform_indices = @transform_12, window_bounds = array<i64: 9, 16, 80>}, {pipeline_mode = #tpu.pipeline_mode<synchronous>, transform_indices = @transform_13, window_bounds = array<i64: 1, 80>}, {pipeline_mode = #tpu.pipeline_mode<synchronous>, transform_indices = @transform_14, window_bounds = array<i64: 5, 30, 10>}, {pipeline_mode = #tpu.pipeline_mode<synchronous>, transform_indices = @transform_15, window_bounds = array<i64: 25, 80, 120>}, {pipeline_mode = #tpu.pipeline_mode<synchronous>, transform_indices = @transform_16, window_bounds = array<i64: 1, 120>}, {pipeline_mode = #tpu.pipeline_mode<synchronous>, transform_indices = @transform_17, window_bounds = array<i64: 2, 56, 30>}, {pipeline_mode = #tpu.pipeline_mode<synchronous>, transform_indices = @transform_18, window_bounds = array<i64: 4, 120, 28>}, {pipeline_mode = #tpu.pipeline_mode<synchronous>, transform_indices = @transform_19, window_bounds = array<i64: 1, 28>}, {transform_indices = @transform_20, window_bounds = array<i64: 56, 28>}]} {
    %c0 = arith.constant 0 : index
    %c0_0 = arith.constant 0 : index
    %0 = vector.load %arg1[%c0, %c0_0] : memref<56x28xf32, #tpu.memory_space<vmem>>, vector<56x28xf32>
    %c0_1 = arith.constant 0 : index
    %c0_2 = arith.constant 0 : index
    %c0_3 = arith.constant 0 : index
    %1 = vector.load %arg2[%c0_1, %c0_2, %c0_3] : memref<3x20x56xf32, #tpu.memory_space<vmem>>, vector<1x20x56xf32>
    %2 = vector.shape_cast %1 : vector<1x20x56xf32> to vector<20x56xf32>
    %cst = arith.constant dense<0.000000e+00> : vector<20x28xf32>
    %3 = tpu.matmul %2, %0, %cst {dimension_numbers = #tpu.dot_dimension_numbers<[1], [0], [0], [1], [0, 0, 1, 1], [], []>} : vector<20x56xf32>, vector<56x28xf32>, vector<20x28xf32> -> vector<20x28xf32>
    %c0_4 = arith.constant 0 : index
    %c0_5 = arith.constant 0 : index
    %c0_6 = arith.constant 0 : index
    %4 = vector.load %arg3[%c0_4, %c0_5, %c0_6] : memref<9x28x160xf32, #tpu.memory_space<vmem>>, vector<1x28x160xf32>
    %5 = vector.shape_cast %4 : vector<1x28x160xf32> to vector<28x160xf32>
    %cst_7 = arith.constant dense<0.000000e+00> : vector<20x160xf32>
    %6 = tpu.matmul %3, %5, %cst_7 {dimension_numbers = #tpu.dot_dimension_numbers<[1], [0], [0], [1], [0, 0, 1, 1], [], []>} : vector<20x28xf32>, vector<28x160xf32>, vector<20x160xf32> -> vector<20x160xf32>
    %c1 = arith.constant 1 : index
    %c0_8 = arith.constant 0 : index
    %c0_9 = arith.constant 0 : index
    %7 = vector.load %arg3[%c1, %c0_8, %c0_9] : memref<9x28x160xf32, #tpu.memory_space<vmem>>, vector<1x28x160xf32>
    %8 = vector.shape_cast %7 : vector<1x28x160xf32> to vector<28x160xf32>
    %cst_10 = arith.constant dense<0.000000e+00> : vector<20x160xf32>
    %9 = tpu.matmul %3, %8, %cst_10 {dimension_numbers = #tpu.dot_dimension_numbers<[1], [0], [0], [1], [0, 0, 1, 1], [], []>} : vector<20x28xf32>, vector<28x160xf32>, vector<20x160xf32> -> vector<20x160xf32>
    %10 = arith.addf %6, %9 : vector<20x160xf32>
    %c2 = arith.constant 2 : index
    %c0_11 = arith.constant 0 : index
    %c0_12 = arith.constant 0 : index
    %11 = vector.load %arg3[%c2, %c0_11, %c0_12] : memref<9x28x160xf32, #tpu.memory_space<vmem>>, vector<1x28x160xf32>
    %12 = vector.shape_cast %11 : vector<1x28x160xf32> to vector<28x160xf32>
    %cst_13 = arith.constant dense<0.000000e+00> : vector<20x160xf32>
    %13 = tpu.matmul %3, %12, %cst_13 {dimension_numbers = #tpu.dot_dimension_numbers<[1], [0], [0], [1], [0, 0, 1, 1], [], []>} : vector<20x28xf32>, vector<28x160xf32>, vector<20x160xf32> -> vector<20x160xf32>
    %14 = arith.addf %10, %13 : vector<20x160xf32>
    %c1_14 = arith.constant 1 : index
    %c0_15 = arith.constant 0 : index
    %c0_16 = arith.constant 0 : index
    %15 = vector.load %arg2[%c1_14, %c0_15, %c0_16] : memref<3x20x56xf32, #tpu.memory_space<vmem>>, vector<1x20x56xf32>
    %16 = vector.shape_cast %15 : vector<1x20x56xf32> to vector<20x56xf32>
    %cst_17 = arith.constant dense<0.000000e+00> : vector<20x28xf32>
    %17 = tpu.matmul %16, %0, %cst_17 {dimension_numbers = #tpu.dot_dimension_numbers<[1], [0], [0], [1], [0, 0, 1, 1], [], []>} : vector<20x56xf32>, vector<56x28xf32>, vector<20x28xf32> -> vector<20x28xf32>
    %c3 = arith.constant 3 : index
    %c0_18 = arith.constant 0 : index
    %c0_19 = arith.constant 0 : index
    %18 = vector.load %arg3[%c3, %c0_18, %c0_19] : memref<9x28x160xf32, #tpu.memory_space<vmem>>, vector<1x28x160xf32>
    %19 = vector.shape_cast %18 : vector<1x28x160xf32> to vector<28x160xf32>
    %cst_20 = arith.constant dense<0.000000e+00> : vector<20x160xf32>
    %20 = tpu.matmul %17, %19, %cst_20 {dimension_numbers = #tpu.dot_dimension_numbers<[1], [0], [0], [1], [0, 0, 1, 1], [], []>} : vector<20x28xf32>, vector<28x160xf32>, vector<20x160xf32> -> vector<20x160xf32>
    %21 = arith.addf %14, %20 : vector<20x160xf32>
    %c4 = arith.constant 4 : index
    %c0_21 = arith.constant 0 : index
    %c0_22 = arith.constant 0 : index
    %22 = vector.load %arg3[%c4, %c0_21, %c0_22] : memref<9x28x160xf32, #tpu.memory_space<vmem>>, vector<1x28x160xf32>
    %23 = vector.shape_cast %22 : vector<1x28x160xf32> to vector<28x160xf32>
    %cst_23 = arith.constant dense<0.000000e+00> : vector<20x160xf32>
    %24 = tpu.matmul %17, %23, %cst_23 {dimension_numbers = #tpu.dot_dimension_numbers<[1], [0], [0], [1], [0, 0, 1, 1], [], []>} : vector<20x28xf32>, vector<28x160xf32>, vector<20x160xf32> -> vector<20x160xf32>
    %25 = arith.addf %21, %24 : vector<20x160xf32>
    %c5 = arith.constant 5 : index
    %c0_24 = arith.constant 0 : index
    %c0_25 = arith.constant 0 : index
    %26 = vector.load %arg3[%c5, %c0_24, %c0_25] : memref<9x28x160xf32, #tpu.memory_space<vmem>>, vector<1x28x160xf32>
    %27 = vector.shape_cast %26 : vector<1x28x160xf32> to vector<28x160xf32>
    %cst_26 = arith.constant dense<0.000000e+00> : vector<20x160xf32>
    %28 = tpu.matmul %17, %27, %cst_26 {dimension_numbers = #tpu.dot_dimension_numbers<[1], [0], [0], [1], [0, 0, 1, 1], [], []>} : vector<20x28xf32>, vector<28x160xf32>, vector<20x160xf32> -> vector<20x160xf32>
    %29 = arith.addf %25, %28 : vector<20x160xf32>
    %c2_27 = arith.constant 2 : index
    %c0_28 = arith.constant 0 : index
    %c0_29 = arith.constant 0 : index
    %30 = vector.load %arg2[%c2_27, %c0_28, %c0_29] : memref<3x20x56xf32, #tpu.memory_space<vmem>>, vector<1x20x56xf32>
    %31 = vector.shape_cast %30 : vector<1x20x56xf32> to vector<20x56xf32>
    %cst_30 = arith.constant dense<0.000000e+00> : vector<20x28xf32>
    %32 = tpu.matmul %31, %0, %cst_30 {dimension_numbers = #tpu.dot_dimension_numbers<[1], [0], [0], [1], [0, 0, 1, 1], [], []>} : vector<20x56xf32>, vector<56x28xf32>, vector<20x28xf32> -> vector<20x28xf32>
    %c6 = arith.constant 6 : index
    %c0_31 = arith.constant 0 : index
    %c0_32 = arith.constant 0 : index
    %33 = vector.load %arg3[%c6, %c0_31, %c0_32] : memref<9x28x160xf32, #tpu.memory_space<vmem>>, vector<1x28x160xf32>
    %34 = vector.shape_cast %33 : vector<1x28x160xf32> to vector<28x160xf32>
    %cst_33 = arith.constant dense<0.000000e+00> : vector<20x160xf32>
    %35 = tpu.matmul %32, %34, %cst_33 {dimension_numbers = #tpu.dot_dimension_numbers<[1], [0], [0], [1], [0, 0, 1, 1], [], []>} : vector<20x28xf32>, vector<28x160xf32>, vector<20x160xf32> -> vector<20x160xf32>
    %36 = arith.addf %29, %35 : vector<20x160xf32>
    %c7 = arith.constant 7 : index
    %c0_34 = arith.constant 0 : index
    %c0_35 = arith.constant 0 : index
    %37 = vector.load %arg3[%c7, %c0_34, %c0_35] : memref<9x28x160xf32, #tpu.memory_space<vmem>>, vector<1x28x160xf32>
    %38 = vector.shape_cast %37 : vector<1x28x160xf32> to vector<28x160xf32>
    %cst_36 = arith.constant dense<0.000000e+00> : vector<20x160xf32>
    %39 = tpu.matmul %32, %38, %cst_36 {dimension_numbers = #tpu.dot_dimension_numbers<[1], [0], [0], [1], [0, 0, 1, 1], [], []>} : vector<20x28xf32>, vector<28x160xf32>, vector<20x160xf32> -> vector<20x160xf32>
    %40 = arith.addf %36, %39 : vector<20x160xf32>
    %c8 = arith.constant 8 : index
    %c0_37 = arith.constant 0 : index
    %c0_38 = arith.constant 0 : index
    %41 = vector.load %arg3[%c8, %c0_37, %c0_38] : memref<9x28x160xf32, #tpu.memory_space<vmem>>, vector<1x28x160xf32>
    %42 = vector.shape_cast %41 : vector<1x28x160xf32> to vector<28x160xf32>
    %cst_39 = arith.constant dense<0.000000e+00> : vector<20x160xf32>
    %43 = tpu.matmul %32, %42, %cst_39 {dimension_numbers = #tpu.dot_dimension_numbers<[1], [0], [0], [1], [0, 0, 1, 1], [], []>} : vector<20x28xf32>, vector<28x160xf32>, vector<20x160xf32> -> vector<20x160xf32>
    %44 = arith.addf %40, %43 : vector<20x160xf32>
    %c0_40 = arith.constant 0 : index
    %c0_41 = arith.constant 0 : index
    %45 = vector.load %arg4[%c0_40, %c0_41] : memref<1x160xf32, #tpu.memory_space<vmem>>, vector<1x160xf32>
    %46 = vector.broadcast %45 : vector<1x160xf32> to vector<20x160xf32>
    %47 = arith.addf %44, %46 : vector<20x160xf32>
    %cst_42 = arith.constant 2.000000e+01 : f32
    %48 = vector.broadcast %cst_42 : f32 to vector<20x160xf32>
    %49 = arith.cmpf ogt, %47, %48 : vector<20x160xf32>
    %cst_43 = arith.constant 2.000000e+01 : f32
    %50 = vector.broadcast %cst_43 : f32 to vector<20x160xf32>
    %51 = arith.minimumf %47, %50 : vector<20x160xf32>
    %52 = math.exp %51 : vector<20x160xf32>
    %cst_44 = arith.constant 1.000000e+00 : f32
    %53 = vector.broadcast %cst_44 : f32 to vector<20x160xf32>
    %54 = arith.addf %53, %52 : vector<20x160xf32>
    %55 = math.log %54 : vector<20x160xf32>
    %56 = arith.select %49, %47, %55 : vector<20x160xi1>, vector<20x160xf32>
    %c0_45 = arith.constant 0 : index
    %c0_46 = arith.constant 0 : index
    %c0_47 = arith.constant 0 : index
    %57 = vector.load %arg5[%c0_45, %c0_46, %c0_47] : memref<2x10x20xf32, #tpu.memory_space<vmem>>, vector<1x10x20xf32>
    %58 = vector.shape_cast %57 : vector<1x10x20xf32> to vector<10x20xf32>
    %cst_48 = arith.constant dense<0.000000e+00> : vector<10x160xf32>
    %59 = tpu.matmul %58, %56, %cst_48 {dimension_numbers = #tpu.dot_dimension_numbers<[1], [0], [0], [1], [0, 0, 1, 1], [], []>} : vector<10x20xf32>, vector<20x160xf32>, vector<10x160xf32> -> vector<10x160xf32>
    %c0_49 = arith.constant 0 : index
    %c0_50 = arith.constant 0 : index
    %c0_51 = arith.constant 0 : index
    %60 = vector.load %arg6[%c0_49, %c0_50, %c0_51] : memref<2x160x80xf32, #tpu.memory_space<vmem>>, vector<1x160x80xf32>
    %61 = vector.shape_cast %60 : vector<1x160x80xf32> to vector<160x80xf32>
    %cst_52 = arith.constant dense<0.000000e+00> : vector<10x80xf32>
    %62 = tpu.matmul %59, %61, %cst_52 {dimension_numbers = #tpu.dot_dimension_numbers<[1], [0], [0], [1], [0, 0, 1, 1], [], []>} : vector<10x160xf32>, vector<160x80xf32>, vector<10x80xf32> -> vector<10x80xf32>
    %c1_53 = arith.constant 1 : index
    %c0_54 = arith.constant 0 : index
    %c0_55 = arith.constant 0 : index
    %63 = vector.load %arg6[%c1_53, %c0_54, %c0_55] : memref<2x160x80xf32, #tpu.memory_space<vmem>>, vector<1x160x80xf32>
    %64 = vector.shape_cast %63 : vector<1x160x80xf32> to vector<160x80xf32>
    %cst_56 = arith.constant dense<0.000000e+00> : vector<10x80xf32>
    %65 = tpu.matmul %59, %64, %cst_56 {dimension_numbers = #tpu.dot_dimension_numbers<[1], [0], [0], [1], [0, 0, 1, 1], [], []>} : vector<10x160xf32>, vector<160x80xf32>, vector<10x80xf32> -> vector<10x80xf32>
    %66 = arith.maximumf %62, %65 : vector<10x80xf32>
    %c1_57 = arith.constant 1 : index
    %c0_58 = arith.constant 0 : index
    %c0_59 = arith.constant 0 : index
    %67 = vector.load %arg5[%c1_57, %c0_58, %c0_59] : memref<2x10x20xf32, #tpu.memory_space<vmem>>, vector<1x10x20xf32>
    %68 = vector.shape_cast %67 : vector<1x10x20xf32> to vector<10x20xf32>
    %cst_60 = arith.constant dense<0.000000e+00> : vector<10x160xf32>
    %69 = tpu.matmul %68, %56, %cst_60 {dimension_numbers = #tpu.dot_dimension_numbers<[1], [0], [0], [1], [0, 0, 1, 1], [], []>} : vector<10x20xf32>, vector<20x160xf32>, vector<10x160xf32> -> vector<10x160xf32>
    %c0_61 = arith.constant 0 : index
    %c0_62 = arith.constant 0 : index
    %c0_63 = arith.constant 0 : index
    %70 = vector.load %arg6[%c0_61, %c0_62, %c0_63] : memref<2x160x80xf32, #tpu.memory_space<vmem>>, vector<1x160x80xf32>
    %71 = vector.shape_cast %70 : vector<1x160x80xf32> to vector<160x80xf32>
    %cst_64 = arith.constant dense<0.000000e+00> : vector<10x80xf32>
    %72 = tpu.matmul %69, %71, %cst_64 {dimension_numbers = #tpu.dot_dimension_numbers<[1], [0], [0], [1], [0, 0, 1, 1], [], []>} : vector<10x160xf32>, vector<160x80xf32>, vector<10x80xf32> -> vector<10x80xf32>
    %73 = arith.maximumf %66, %72 : vector<10x80xf32>
    %c1_65 = arith.constant 1 : index
    %c0_66 = arith.constant 0 : index
    %c0_67 = arith.constant 0 : index
    %74 = vector.load %arg6[%c1_65, %c0_66, %c0_67] : memref<2x160x80xf32, #tpu.memory_space<vmem>>, vector<1x160x80xf32>
    %75 = vector.shape_cast %74 : vector<1x160x80xf32> to vector<160x80xf32>
    %cst_68 = arith.constant dense<0.000000e+00> : vector<10x80xf32>
    %76 = tpu.matmul %69, %75, %cst_68 {dimension_numbers = #tpu.dot_dimension_numbers<[1], [0], [0], [1], [0, 0, 1, 1], [], []>} : vector<10x160xf32>, vector<160x80xf32>, vector<10x80xf32> -> vector<10x80xf32>
    %77 = arith.maximumf %73, %76 : vector<10x80xf32>
    %c0_69 = arith.constant 0 : index
    %c0_70 = arith.constant 0 : index
    %c0_71 = arith.constant 0 : index
    %78 = vector.load %arg7[%c0_69, %c0_70, %c0_71] : memref<3x6x10xf32, #tpu.memory_space<vmem>>, vector<1x6x10xf32>
    %79 = vector.shape_cast %78 : vector<1x6x10xf32> to vector<6x10xf32>
    %cst_72 = arith.constant dense<0.000000e+00> : vector<6x80xf32>
    %80 = tpu.matmul %79, %77, %cst_72 {dimension_numbers = #tpu.dot_dimension_numbers<[1], [0], [0], [1], [0, 0, 1, 1], [], []>} : vector<6x10xf32>, vector<10x80xf32>, vector<6x80xf32> -> vector<6x80xf32>
    %c0_73 = arith.constant 0 : index
    %c0_74 = arith.constant 0 : index
    %c0_75 = arith.constant 0 : index
    %81 = vector.load %arg8[%c0_73, %c0_74, %c0_75] : memref<9x80x24xf32, #tpu.memory_space<vmem>>, vector<1x80x24xf32>
    %82 = vector.shape_cast %81 : vector<1x80x24xf32> to vector<80x24xf32>
    %cst_76 = arith.constant dense<0.000000e+00> : vector<6x24xf32>
    %83 = tpu.matmul %80, %82, %cst_76 {dimension_numbers = #tpu.dot_dimension_numbers<[1], [0], [0], [1], [0, 0, 1, 1], [], []>} : vector<6x80xf32>, vector<80x24xf32>, vector<6x24xf32> -> vector<6x24xf32>
    %c1_77 = arith.constant 1 : index
    %c0_78 = arith.constant 0 : index
    %c0_79 = arith.constant 0 : index
    %84 = vector.load %arg8[%c1_77, %c0_78, %c0_79] : memref<9x80x24xf32, #tpu.memory_space<vmem>>, vector<1x80x24xf32>
    %85 = vector.shape_cast %84 : vector<1x80x24xf32> to vector<80x24xf32>
    %cst_80 = arith.constant dense<0.000000e+00> : vector<6x24xf32>
    %86 = tpu.matmul %80, %85, %cst_80 {dimension_numbers = #tpu.dot_dimension_numbers<[1], [0], [0], [1], [0, 0, 1, 1], [], []>} : vector<6x80xf32>, vector<80x24xf32>, vector<6x24xf32> -> vector<6x24xf32>
    %87 = arith.addf %83, %86 : vector<6x24xf32>
    %c2_81 = arith.constant 2 : index
    %c0_82 = arith.constant 0 : index
    %c0_83 = arith.constant 0 : index
    %88 = vector.load %arg8[%c2_81, %c0_82, %c0_83] : memref<9x80x24xf32, #tpu.memory_space<vmem>>, vector<1x80x24xf32>
    %89 = vector.shape_cast %88 : vector<1x80x24xf32> to vector<80x24xf32>
    %cst_84 = arith.constant dense<0.000000e+00> : vector<6x24xf32>
    %90 = tpu.matmul %80, %89, %cst_84 {dimension_numbers = #tpu.dot_dimension_numbers<[1], [0], [0], [1], [0, 0, 1, 1], [], []>} : vector<6x80xf32>, vector<80x24xf32>, vector<6x24xf32> -> vector<6x24xf32>
    %91 = arith.addf %87, %90 : vector<6x24xf32>
    %c1_85 = arith.constant 1 : index
    %c0_86 = arith.constant 0 : index
    %c0_87 = arith.constant 0 : index
    %92 = vector.load %arg7[%c1_85, %c0_86, %c0_87] : memref<3x6x10xf32, #tpu.memory_space<vmem>>, vector<1x6x10xf32>
    %93 = vector.shape_cast %92 : vector<1x6x10xf32> to vector<6x10xf32>
    %cst_88 = arith.constant dense<0.000000e+00> : vector<6x80xf32>
    %94 = tpu.matmul %93, %77, %cst_88 {dimension_numbers = #tpu.dot_dimension_numbers<[1], [0], [0], [1], [0, 0, 1, 1], [], []>} : vector<6x10xf32>, vector<10x80xf32>, vector<6x80xf32> -> vector<6x80xf32>
    %c3_89 = arith.constant 3 : index
    %c0_90 = arith.constant 0 : index
    %c0_91 = arith.constant 0 : index
    %95 = vector.load %arg8[%c3_89, %c0_90, %c0_91] : memref<9x80x24xf32, #tpu.memory_space<vmem>>, vector<1x80x24xf32>
    %96 = vector.shape_cast %95 : vector<1x80x24xf32> to vector<80x24xf32>
    %cst_92 = arith.constant dense<0.000000e+00> : vector<6x24xf32>
    %97 = tpu.matmul %94, %96, %cst_92 {dimension_numbers = #tpu.dot_dimension_numbers<[1], [0], [0], [1], [0, 0, 1, 1], [], []>} : vector<6x80xf32>, vector<80x24xf32>, vector<6x24xf32> -> vector<6x24xf32>
    %98 = arith.addf %91, %97 : vector<6x24xf32>
    %c4_93 = arith.constant 4 : index
    %c0_94 = arith.constant 0 : index
    %c0_95 = arith.constant 0 : index
    %99 = vector.load %arg8[%c4_93, %c0_94, %c0_95] : memref<9x80x24xf32, #tpu.memory_space<vmem>>, vector<1x80x24xf32>
    %100 = vector.shape_cast %99 : vector<1x80x24xf32> to vector<80x24xf32>
    %cst_96 = arith.constant dense<0.000000e+00> : vector<6x24xf32>
    %101 = tpu.matmul %94, %100, %cst_96 {dimension_numbers = #tpu.dot_dimension_numbers<[1], [0], [0], [1], [0, 0, 1, 1], [], []>} : vector<6x80xf32>, vector<80x24xf32>, vector<6x24xf32> -> vector<6x24xf32>
    %102 = arith.addf %98, %101 : vector<6x24xf32>
    %c5_97 = arith.constant 5 : index
    %c0_98 = arith.constant 0 : index
    %c0_99 = arith.constant 0 : index
    %103 = vector.load %arg8[%c5_97, %c0_98, %c0_99] : memref<9x80x24xf32, #tpu.memory_space<vmem>>, vector<1x80x24xf32>
    %104 = vector.shape_cast %103 : vector<1x80x24xf32> to vector<80x24xf32>
    %cst_100 = arith.constant dense<0.000000e+00> : vector<6x24xf32>
    %105 = tpu.matmul %94, %104, %cst_100 {dimension_numbers = #tpu.dot_dimension_numbers<[1], [0], [0], [1], [0, 0, 1, 1], [], []>} : vector<6x80xf32>, vector<80x24xf32>, vector<6x24xf32> -> vector<6x24xf32>
    %106 = arith.addf %102, %105 : vector<6x24xf32>
    %c2_101 = arith.constant 2 : index
    %c0_102 = arith.constant 0 : index
    %c0_103 = arith.constant 0 : index
    %107 = vector.load %arg7[%c2_101, %c0_102, %c0_103] : memref<3x6x10xf32, #tpu.memory_space<vmem>>, vector<1x6x10xf32>
    %108 = vector.shape_cast %107 : vector<1x6x10xf32> to vector<6x10xf32>
    %cst_104 = arith.constant dense<0.000000e+00> : vector<6x80xf32>
    %109 = tpu.matmul %108, %77, %cst_104 {dimension_numbers = #tpu.dot_dimension_numbers<[1], [0], [0], [1], [0, 0, 1, 1], [], []>} : vector<6x10xf32>, vector<10x80xf32>, vector<6x80xf32> -> vector<6x80xf32>
    %c6_105 = arith.constant 6 : index
    %c0_106 = arith.constant 0 : index
    %c0_107 = arith.constant 0 : index
    %110 = vector.load %arg8[%c6_105, %c0_106, %c0_107] : memref<9x80x24xf32, #tpu.memory_space<vmem>>, vector<1x80x24xf32>
    %111 = vector.shape_cast %110 : vector<1x80x24xf32> to vector<80x24xf32>
    %cst_108 = arith.constant dense<0.000000e+00> : vector<6x24xf32>
    %112 = tpu.matmul %109, %111, %cst_108 {dimension_numbers = #tpu.dot_dimension_numbers<[1], [0], [0], [1], [0, 0, 1, 1], [], []>} : vector<6x80xf32>, vector<80x24xf32>, vector<6x24xf32> -> vector<6x24xf32>
    %113 = arith.addf %106, %112 : vector<6x24xf32>
    %c7_109 = arith.constant 7 : index
    %c0_110 = arith.constant 0 : index
    %c0_111 = arith.constant 0 : index
    %114 = vector.load %arg8[%c7_109, %c0_110, %c0_111] : memref<9x80x24xf32, #tpu.memory_space<vmem>>, vector<1x80x24xf32>
    %115 = vector.shape_cast %114 : vector<1x80x24xf32> to vector<80x24xf32>
    %cst_112 = arith.constant dense<0.000000e+00> : vector<6x24xf32>
    %116 = tpu.matmul %109, %115, %cst_112 {dimension_numbers = #tpu.dot_dimension_numbers<[1], [0], [0], [1], [0, 0, 1, 1], [], []>} : vector<6x80xf32>, vector<80x24xf32>, vector<6x24xf32> -> vector<6x24xf32>
    %117 = arith.addf %113, %116 : vector<6x24xf32>
    %c8_113 = arith.constant 8 : index
    %c0_114 = arith.constant 0 : index
    %c0_115 = arith.constant 0 : index
    %118 = vector.load %arg8[%c8_113, %c0_114, %c0_115] : memref<9x80x24xf32, #tpu.memory_space<vmem>>, vector<1x80x24xf32>
    %119 = vector.shape_cast %118 : vector<1x80x24xf32> to vector<80x24xf32>
    %cst_116 = arith.constant dense<0.000000e+00> : vector<6x24xf32>
    %120 = tpu.matmul %109, %119, %cst_116 {dimension_numbers = #tpu.dot_dimension_numbers<[1], [0], [0], [1], [0, 0, 1, 1], [], []>} : vector<6x80xf32>, vector<80x24xf32>, vector<6x24xf32> -> vector<6x24xf32>
    %121 = arith.addf %117, %120 : vector<6x24xf32>
    %c0_117 = arith.constant 0 : index
    %c0_118 = arith.constant 0 : index
    %122 = vector.load %arg9[%c0_117, %c0_118] : memref<1x24xf32, #tpu.memory_space<vmem>>, vector<1x24xf32>
    %123 = vector.broadcast %122 : vector<1x24xf32> to vector<6x24xf32>
    %124 = arith.addf %121, %123 : vector<6x24xf32>
    %cst_119 = arith.constant 2.000000e+01 : f32
    %125 = vector.broadcast %cst_119 : f32 to vector<6x24xf32>
    %126 = arith.cmpf ogt, %124, %125 : vector<6x24xf32>
    %cst_120 = arith.constant 2.000000e+01 : f32
    %127 = vector.broadcast %cst_120 : f32 to vector<6x24xf32>
    %128 = arith.minimumf %124, %127 : vector<6x24xf32>
    %129 = math.exp %128 : vector<6x24xf32>
    %cst_121 = arith.constant 1.000000e+00 : f32
    %130 = vector.broadcast %cst_121 : f32 to vector<6x24xf32>
    %131 = arith.addf %130, %129 : vector<6x24xf32>
    %132 = math.log %131 : vector<6x24xf32>
    %133 = arith.select %126, %124, %132 : vector<6x24xi1>, vector<6x24xf32>
    %c0_122 = arith.constant 0 : index
    %c0_123 = arith.constant 0 : index
    %c0_124 = arith.constant 0 : index
    %134 = vector.load %arg10[%c0_122, %c0_123, %c0_124] : memref<2x4x6xf32, #tpu.memory_space<vmem>>, vector<1x4x6xf32>
    %135 = vector.shape_cast %134 : vector<1x4x6xf32> to vector<4x6xf32>
    %cst_125 = arith.constant dense<0.000000e+00> : vector<4x24xf32>
    %136 = tpu.matmul %135, %133, %cst_125 {dimension_numbers = #tpu.dot_dimension_numbers<[1], [0], [0], [1], [0, 0, 1, 1], [], []>} : vector<4x6xf32>, vector<6x24xf32>, vector<4x24xf32> -> vector<4x24xf32>
    %c0_126 = arith.constant 0 : index
    %c0_127 = arith.constant 0 : index
    %c0_128 = arith.constant 0 : index
    %137 = vector.load %arg11[%c0_126, %c0_127, %c0_128] : memref<2x24x16xf32, #tpu.memory_space<vmem>>, vector<1x24x16xf32>
    %138 = vector.shape_cast %137 : vector<1x24x16xf32> to vector<24x16xf32>
    %cst_129 = arith.constant dense<0.000000e+00> : vector<4x16xf32>
    %139 = tpu.matmul %136, %138, %cst_129 {dimension_numbers = #tpu.dot_dimension_numbers<[1], [0], [0], [1], [0, 0, 1, 1], [], []>} : vector<4x24xf32>, vector<24x16xf32>, vector<4x16xf32> -> vector<4x16xf32>
    %c1_130 = arith.constant 1 : index
    %c0_131 = arith.constant 0 : index
    %c0_132 = arith.constant 0 : index
    %140 = vector.load %arg11[%c1_130, %c0_131, %c0_132] : memref<2x24x16xf32, #tpu.memory_space<vmem>>, vector<1x24x16xf32>
    %141 = vector.shape_cast %140 : vector<1x24x16xf32> to vector<24x16xf32>
    %cst_133 = arith.constant dense<0.000000e+00> : vector<4x16xf32>
    %142 = tpu.matmul %136, %141, %cst_133 {dimension_numbers = #tpu.dot_dimension_numbers<[1], [0], [0], [1], [0, 0, 1, 1], [], []>} : vector<4x24xf32>, vector<24x16xf32>, vector<4x16xf32> -> vector<4x16xf32>
    %143 = arith.maximumf %139, %142 : vector<4x16xf32>
    %c1_134 = arith.constant 1 : index
    %c0_135 = arith.constant 0 : index
    %c0_136 = arith.constant 0 : index
    %144 = vector.load %arg10[%c1_134, %c0_135, %c0_136] : memref<2x4x6xf32, #tpu.memory_space<vmem>>, vector<1x4x6xf32>
    %145 = vector.shape_cast %144 : vector<1x4x6xf32> to vector<4x6xf32>
    %cst_137 = arith.constant dense<0.000000e+00> : vector<4x24xf32>
    %146 = tpu.matmul %145, %133, %cst_137 {dimension_numbers = #tpu.dot_dimension_numbers<[1], [0], [0], [1], [0, 0, 1, 1], [], []>} : vector<4x6xf32>, vector<6x24xf32>, vector<4x24xf32> -> vector<4x24xf32>
    %c0_138 = arith.constant 0 : index
    %c0_139 = arith.constant 0 : index
    %c0_140 = arith.constant 0 : index
    %147 = vector.load %arg11[%c0_138, %c0_139, %c0_140] : memref<2x24x16xf32, #tpu.memory_space<vmem>>, vector<1x24x16xf32>
    %148 = vector.shape_cast %147 : vector<1x24x16xf32> to vector<24x16xf32>
    %cst_141 = arith.constant dense<0.000000e+00> : vector<4x16xf32>
    %149 = tpu.matmul %146, %148, %cst_141 {dimension_numbers = #tpu.dot_dimension_numbers<[1], [0], [0], [1], [0, 0, 1, 1], [], []>} : vector<4x24xf32>, vector<24x16xf32>, vector<4x16xf32> -> vector<4x16xf32>
    %150 = arith.maximumf %143, %149 : vector<4x16xf32>
    %c1_142 = arith.constant 1 : index
    %c0_143 = arith.constant 0 : index
    %c0_144 = arith.constant 0 : index
    %151 = vector.load %arg11[%c1_142, %c0_143, %c0_144] : memref<2x24x16xf32, #tpu.memory_space<vmem>>, vector<1x24x16xf32>
    %152 = vector.shape_cast %151 : vector<1x24x16xf32> to vector<24x16xf32>
    %cst_145 = arith.constant dense<0.000000e+00> : vector<4x16xf32>
    %153 = tpu.matmul %146, %152, %cst_145 {dimension_numbers = #tpu.dot_dimension_numbers<[1], [0], [0], [1], [0, 0, 1, 1], [], []>} : vector<4x24xf32>, vector<24x16xf32>, vector<4x16xf32> -> vector<4x16xf32>
    %154 = arith.maximumf %150, %153 : vector<4x16xf32>
    %c0_146 = arith.constant 0 : index
    %c0_147 = arith.constant 0 : index
    %c0_148 = arith.constant 0 : index
    %155 = vector.load %arg12[%c0_146, %c0_147, %c0_148] : memref<3x10x4xf32, #tpu.memory_space<vmem>>, vector<1x10x4xf32>
    %156 = vector.shape_cast %155 : vector<1x10x4xf32> to vector<10x4xf32>
    %cst_149 = arith.constant dense<0.000000e+00> : vector<10x16xf32>
    %157 = tpu.matmul %156, %154, %cst_149 {dimension_numbers = #tpu.dot_dimension_numbers<[1], [0], [0], [1], [0, 0, 1, 1], [], []>} : vector<10x4xf32>, vector<4x16xf32>, vector<10x16xf32> -> vector<10x16xf32>
    %c0_150 = arith.constant 0 : index
    %c0_151 = arith.constant 0 : index
    %c0_152 = arith.constant 0 : index
    %158 = vector.load %arg13[%c0_150, %c0_151, %c0_152] : memref<9x16x80xf32, #tpu.memory_space<vmem>>, vector<1x16x80xf32>
    %159 = vector.shape_cast %158 : vector<1x16x80xf32> to vector<16x80xf32>
    %cst_153 = arith.constant dense<0.000000e+00> : vector<10x80xf32>
    %160 = tpu.matmul %157, %159, %cst_153 {dimension_numbers = #tpu.dot_dimension_numbers<[1], [0], [0], [1], [0, 0, 1, 1], [], []>} : vector<10x16xf32>, vector<16x80xf32>, vector<10x80xf32> -> vector<10x80xf32>
    %c1_154 = arith.constant 1 : index
    %c0_155 = arith.constant 0 : index
    %c0_156 = arith.constant 0 : index
    %161 = vector.load %arg13[%c1_154, %c0_155, %c0_156] : memref<9x16x80xf32, #tpu.memory_space<vmem>>, vector<1x16x80xf32>
    %162 = vector.shape_cast %161 : vector<1x16x80xf32> to vector<16x80xf32>
    %cst_157 = arith.constant dense<0.000000e+00> : vector<10x80xf32>
    %163 = tpu.matmul %157, %162, %cst_157 {dimension_numbers = #tpu.dot_dimension_numbers<[1], [0], [0], [1], [0, 0, 1, 1], [], []>} : vector<10x16xf32>, vector<16x80xf32>, vector<10x80xf32> -> vector<10x80xf32>
    %164 = arith.addf %160, %163 : vector<10x80xf32>
    %c2_158 = arith.constant 2 : index
    %c0_159 = arith.constant 0 : index
    %c0_160 = arith.constant 0 : index
    %165 = vector.load %arg13[%c2_158, %c0_159, %c0_160] : memref<9x16x80xf32, #tpu.memory_space<vmem>>, vector<1x16x80xf32>
    %166 = vector.shape_cast %165 : vector<1x16x80xf32> to vector<16x80xf32>
    %cst_161 = arith.constant dense<0.000000e+00> : vector<10x80xf32>
    %167 = tpu.matmul %157, %166, %cst_161 {dimension_numbers = #tpu.dot_dimension_numbers<[1], [0], [0], [1], [0, 0, 1, 1], [], []>} : vector<10x16xf32>, vector<16x80xf32>, vector<10x80xf32> -> vector<10x80xf32>
    %168 = arith.addf %164, %167 : vector<10x80xf32>
    %c1_162 = arith.constant 1 : index
    %c0_163 = arith.constant 0 : index
    %c0_164 = arith.constant 0 : index
    %169 = vector.load %arg12[%c1_162, %c0_163, %c0_164] : memref<3x10x4xf32, #tpu.memory_space<vmem>>, vector<1x10x4xf32>
    %170 = vector.shape_cast %169 : vector<1x10x4xf32> to vector<10x4xf32>
    %cst_165 = arith.constant dense<0.000000e+00> : vector<10x16xf32>
    %171 = tpu.matmul %170, %154, %cst_165 {dimension_numbers = #tpu.dot_dimension_numbers<[1], [0], [0], [1], [0, 0, 1, 1], [], []>} : vector<10x4xf32>, vector<4x16xf32>, vector<10x16xf32> -> vector<10x16xf32>
    %c3_166 = arith.constant 3 : index
    %c0_167 = arith.constant 0 : index
    %c0_168 = arith.constant 0 : index
    %172 = vector.load %arg13[%c3_166, %c0_167, %c0_168] : memref<9x16x80xf32, #tpu.memory_space<vmem>>, vector<1x16x80xf32>
    %173 = vector.shape_cast %172 : vector<1x16x80xf32> to vector<16x80xf32>
    %cst_169 = arith.constant dense<0.000000e+00> : vector<10x80xf32>
    %174 = tpu.matmul %171, %173, %cst_169 {dimension_numbers = #tpu.dot_dimension_numbers<[1], [0], [0], [1], [0, 0, 1, 1], [], []>} : vector<10x16xf32>, vector<16x80xf32>, vector<10x80xf32> -> vector<10x80xf32>
    %175 = arith.addf %168, %174 : vector<10x80xf32>
    %c4_170 = arith.constant 4 : index
    %c0_171 = arith.constant 0 : index
    %c0_172 = arith.constant 0 : index
    %176 = vector.load %arg13[%c4_170, %c0_171, %c0_172] : memref<9x16x80xf32, #tpu.memory_space<vmem>>, vector<1x16x80xf32>
    %177 = vector.shape_cast %176 : vector<1x16x80xf32> to vector<16x80xf32>
    %cst_173 = arith.constant dense<0.000000e+00> : vector<10x80xf32>
    %178 = tpu.matmul %171, %177, %cst_173 {dimension_numbers = #tpu.dot_dimension_numbers<[1], [0], [0], [1], [0, 0, 1, 1], [], []>} : vector<10x16xf32>, vector<16x80xf32>, vector<10x80xf32> -> vector<10x80xf32>
    %179 = arith.addf %175, %178 : vector<10x80xf32>
    %c5_174 = arith.constant 5 : index
    %c0_175 = arith.constant 0 : index
    %c0_176 = arith.constant 0 : index
    %180 = vector.load %arg13[%c5_174, %c0_175, %c0_176] : memref<9x16x80xf32, #tpu.memory_space<vmem>>, vector<1x16x80xf32>
    %181 = vector.shape_cast %180 : vector<1x16x80xf32> to vector<16x80xf32>
    %cst_177 = arith.constant dense<0.000000e+00> : vector<10x80xf32>
    %182 = tpu.matmul %171, %181, %cst_177 {dimension_numbers = #tpu.dot_dimension_numbers<[1], [0], [0], [1], [0, 0, 1, 1], [], []>} : vector<10x16xf32>, vector<16x80xf32>, vector<10x80xf32> -> vector<10x80xf32>
    %183 = arith.addf %179, %182 : vector<10x80xf32>
    %c2_178 = arith.constant 2 : index
    %c0_179 = arith.constant 0 : index
    %c0_180 = arith.constant 0 : index
    %184 = vector.load %arg12[%c2_178, %c0_179, %c0_180] : memref<3x10x4xf32, #tpu.memory_space<vmem>>, vector<1x10x4xf32>
    %185 = vector.shape_cast %184 : vector<1x10x4xf32> to vector<10x4xf32>
    %cst_181 = arith.constant dense<0.000000e+00> : vector<10x16xf32>
    %186 = tpu.matmul %185, %154, %cst_181 {dimension_numbers = #tpu.dot_dimension_numbers<[1], [0], [0], [1], [0, 0, 1, 1], [], []>} : vector<10x4xf32>, vector<4x16xf32>, vector<10x16xf32> -> vector<10x16xf32>
    %c6_182 = arith.constant 6 : index
    %c0_183 = arith.constant 0 : index
    %c0_184 = arith.constant 0 : index
    %187 = vector.load %arg13[%c6_182, %c0_183, %c0_184] : memref<9x16x80xf32, #tpu.memory_space<vmem>>, vector<1x16x80xf32>
    %188 = vector.shape_cast %187 : vector<1x16x80xf32> to vector<16x80xf32>
    %cst_185 = arith.constant dense<0.000000e+00> : vector<10x80xf32>
    %189 = tpu.matmul %186, %188, %cst_185 {dimension_numbers = #tpu.dot_dimension_numbers<[1], [0], [0], [1], [0, 0, 1, 1], [], []>} : vector<10x16xf32>, vector<16x80xf32>, vector<10x80xf32> -> vector<10x80xf32>
    %190 = arith.addf %183, %189 : vector<10x80xf32>
    %c7_186 = arith.constant 7 : index
    %c0_187 = arith.constant 0 : index
    %c0_188 = arith.constant 0 : index
    %191 = vector.load %arg13[%c7_186, %c0_187, %c0_188] : memref<9x16x80xf32, #tpu.memory_space<vmem>>, vector<1x16x80xf32>
    %192 = vector.shape_cast %191 : vector<1x16x80xf32> to vector<16x80xf32>
    %cst_189 = arith.constant dense<0.000000e+00> : vector<10x80xf32>
    %193 = tpu.matmul %186, %192, %cst_189 {dimension_numbers = #tpu.dot_dimension_numbers<[1], [0], [0], [1], [0, 0, 1, 1], [], []>} : vector<10x16xf32>, vector<16x80xf32>, vector<10x80xf32> -> vector<10x80xf32>
    %194 = arith.addf %190, %193 : vector<10x80xf32>
    %c8_190 = arith.constant 8 : index
    %c0_191 = arith.constant 0 : index
    %c0_192 = arith.constant 0 : index
    %195 = vector.load %arg13[%c8_190, %c0_191, %c0_192] : memref<9x16x80xf32, #tpu.memory_space<vmem>>, vector<1x16x80xf32>
    %196 = vector.shape_cast %195 : vector<1x16x80xf32> to vector<16x80xf32>
    %cst_193 = arith.constant dense<0.000000e+00> : vector<10x80xf32>
    %197 = tpu.matmul %186, %196, %cst_193 {dimension_numbers = #tpu.dot_dimension_numbers<[1], [0], [0], [1], [0, 0, 1, 1], [], []>} : vector<10x16xf32>, vector<16x80xf32>, vector<10x80xf32> -> vector<10x80xf32>
    %198 = arith.addf %194, %197 : vector<10x80xf32>
    %c0_194 = arith.constant 0 : index
    %c0_195 = arith.constant 0 : index
    %199 = vector.load %arg14[%c0_194, %c0_195] : memref<1x80xf32, #tpu.memory_space<vmem>>, vector<1x80xf32>
    %200 = vector.broadcast %199 : vector<1x80xf32> to vector<10x80xf32>
    %201 = arith.addf %198, %200 : vector<10x80xf32>
    %cst_196 = arith.constant 2.000000e+01 : f32
    %202 = vector.broadcast %cst_196 : f32 to vector<10x80xf32>
    %203 = arith.cmpf ogt, %201, %202 : vector<10x80xf32>
    %cst_197 = arith.constant 2.000000e+01 : f32
    %204 = vector.broadcast %cst_197 : f32 to vector<10x80xf32>
    %205 = arith.minimumf %201, %204 : vector<10x80xf32>
    %206 = math.exp %205 : vector<10x80xf32>
    %cst_198 = arith.constant 1.000000e+00 : f32
    %207 = vector.broadcast %cst_198 : f32 to vector<10x80xf32>
    %208 = arith.addf %207, %206 : vector<10x80xf32>
    %209 = math.log %208 : vector<10x80xf32>
    %210 = arith.select %203, %201, %209 : vector<10x80xi1>, vector<10x80xf32>
    %c0_199 = arith.constant 0 : index
    %c0_200 = arith.constant 0 : index
    %c0_201 = arith.constant 0 : index
    %211 = vector.load %arg15[%c0_199, %c0_200, %c0_201] : memref<5x30x10xf32, #tpu.memory_space<vmem>>, vector<1x30x10xf32>
    %212 = vector.shape_cast %211 : vector<1x30x10xf32> to vector<30x10xf32>
    %cst_202 = arith.constant dense<0.000000e+00> : vector<30x80xf32>
    %213 = tpu.matmul %212, %210, %cst_202 {dimension_numbers = #tpu.dot_dimension_numbers<[1], [0], [0], [1], [0, 0, 1, 1], [], []>} : vector<30x10xf32>, vector<10x80xf32>, vector<30x80xf32> -> vector<30x80xf32>
    %c0_203 = arith.constant 0 : index
    %c0_204 = arith.constant 0 : index
    %c0_205 = arith.constant 0 : index
    %214 = vector.load %arg16[%c0_203, %c0_204, %c0_205] : memref<25x80x120xf32, #tpu.memory_space<vmem>>, vector<1x80x120xf32>
    %215 = vector.shape_cast %214 : vector<1x80x120xf32> to vector<80x120xf32>
    %cst_206 = arith.constant dense<0.000000e+00> : vector<30x120xf32>
    %216 = tpu.matmul %213, %215, %cst_206 {dimension_numbers = #tpu.dot_dimension_numbers<[1], [0], [0], [1], [0, 0, 1, 1], [], []>} : vector<30x80xf32>, vector<80x120xf32>, vector<30x120xf32> -> vector<30x120xf32>
    %c1_207 = arith.constant 1 : index
    %c0_208 = arith.constant 0 : index
    %c0_209 = arith.constant 0 : index
    %217 = vector.load %arg16[%c1_207, %c0_208, %c0_209] : memref<25x80x120xf32, #tpu.memory_space<vmem>>, vector<1x80x120xf32>
    %218 = vector.shape_cast %217 : vector<1x80x120xf32> to vector<80x120xf32>
    %cst_210 = arith.constant dense<0.000000e+00> : vector<30x120xf32>
    %219 = tpu.matmul %213, %218, %cst_210 {dimension_numbers = #tpu.dot_dimension_numbers<[1], [0], [0], [1], [0, 0, 1, 1], [], []>} : vector<30x80xf32>, vector<80x120xf32>, vector<30x120xf32> -> vector<30x120xf32>
    %220 = arith.addf %216, %219 : vector<30x120xf32>
    %c2_211 = arith.constant 2 : index
    %c0_212 = arith.constant 0 : index
    %c0_213 = arith.constant 0 : index
    %221 = vector.load %arg16[%c2_211, %c0_212, %c0_213] : memref<25x80x120xf32, #tpu.memory_space<vmem>>, vector<1x80x120xf32>
    %222 = vector.shape_cast %221 : vector<1x80x120xf32> to vector<80x120xf32>
    %cst_214 = arith.constant dense<0.000000e+00> : vector<30x120xf32>
    %223 = tpu.matmul %213, %222, %cst_214 {dimension_numbers = #tpu.dot_dimension_numbers<[1], [0], [0], [1], [0, 0, 1, 1], [], []>} : vector<30x80xf32>, vector<80x120xf32>, vector<30x120xf32> -> vector<30x120xf32>
    %224 = arith.addf %220, %223 : vector<30x120xf32>
    %c3_215 = arith.constant 3 : index
    %c0_216 = arith.constant 0 : index
    %c0_217 = arith.constant 0 : index
    %225 = vector.load %arg16[%c3_215, %c0_216, %c0_217] : memref<25x80x120xf32, #tpu.memory_space<vmem>>, vector<1x80x120xf32>
    %226 = vector.shape_cast %225 : vector<1x80x120xf32> to vector<80x120xf32>
    %cst_218 = arith.constant dense<0.000000e+00> : vector<30x120xf32>
    %227 = tpu.matmul %213, %226, %cst_218 {dimension_numbers = #tpu.dot_dimension_numbers<[1], [0], [0], [1], [0, 0, 1, 1], [], []>} : vector<30x80xf32>, vector<80x120xf32>, vector<30x120xf32> -> vector<30x120xf32>
    %228 = arith.addf %224, %227 : vector<30x120xf32>
    %c4_219 = arith.constant 4 : index
    %c0_220 = arith.constant 0 : index
    %c0_221 = arith.constant 0 : index
    %229 = vector.load %arg16[%c4_219, %c0_220, %c0_221] : memref<25x80x120xf32, #tpu.memory_space<vmem>>, vector<1x80x120xf32>
    %230 = vector.shape_cast %229 : vector<1x80x120xf32> to vector<80x120xf32>
    %cst_222 = arith.constant dense<0.000000e+00> : vector<30x120xf32>
    %231 = tpu.matmul %213, %230, %cst_222 {dimension_numbers = #tpu.dot_dimension_numbers<[1], [0], [0], [1], [0, 0, 1, 1], [], []>} : vector<30x80xf32>, vector<80x120xf32>, vector<30x120xf32> -> vector<30x120xf32>
    %232 = arith.addf %228, %231 : vector<30x120xf32>
    %c1_223 = arith.constant 1 : index
    %c0_224 = arith.constant 0 : index
    %c0_225 = arith.constant 0 : index
    %233 = vector.load %arg15[%c1_223, %c0_224, %c0_225] : memref<5x30x10xf32, #tpu.memory_space<vmem>>, vector<1x30x10xf32>
    %234 = vector.shape_cast %233 : vector<1x30x10xf32> to vector<30x10xf32>
    %cst_226 = arith.constant dense<0.000000e+00> : vector<30x80xf32>
    %235 = tpu.matmul %234, %210, %cst_226 {dimension_numbers = #tpu.dot_dimension_numbers<[1], [0], [0], [1], [0, 0, 1, 1], [], []>} : vector<30x10xf32>, vector<10x80xf32>, vector<30x80xf32> -> vector<30x80xf32>
    %c5_227 = arith.constant 5 : index
    %c0_228 = arith.constant 0 : index
    %c0_229 = arith.constant 0 : index
    %236 = vector.load %arg16[%c5_227, %c0_228, %c0_229] : memref<25x80x120xf32, #tpu.memory_space<vmem>>, vector<1x80x120xf32>
    %237 = vector.shape_cast %236 : vector<1x80x120xf32> to vector<80x120xf32>
    %cst_230 = arith.constant dense<0.000000e+00> : vector<30x120xf32>
    %238 = tpu.matmul %235, %237, %cst_230 {dimension_numbers = #tpu.dot_dimension_numbers<[1], [0], [0], [1], [0, 0, 1, 1], [], []>} : vector<30x80xf32>, vector<80x120xf32>, vector<30x120xf32> -> vector<30x120xf32>
    %239 = arith.addf %232, %238 : vector<30x120xf32>
    %c6_231 = arith.constant 6 : index
    %c0_232 = arith.constant 0 : index
    %c0_233 = arith.constant 0 : index
    %240 = vector.load %arg16[%c6_231, %c0_232, %c0_233] : memref<25x80x120xf32, #tpu.memory_space<vmem>>, vector<1x80x120xf32>
    %241 = vector.shape_cast %240 : vector<1x80x120xf32> to vector<80x120xf32>
    %cst_234 = arith.constant dense<0.000000e+00> : vector<30x120xf32>
    %242 = tpu.matmul %235, %241, %cst_234 {dimension_numbers = #tpu.dot_dimension_numbers<[1], [0], [0], [1], [0, 0, 1, 1], [], []>} : vector<30x80xf32>, vector<80x120xf32>, vector<30x120xf32> -> vector<30x120xf32>
    %243 = arith.addf %239, %242 : vector<30x120xf32>
    %c7_235 = arith.constant 7 : index
    %c0_236 = arith.constant 0 : index
    %c0_237 = arith.constant 0 : index
    %244 = vector.load %arg16[%c7_235, %c0_236, %c0_237] : memref<25x80x120xf32, #tpu.memory_space<vmem>>, vector<1x80x120xf32>
    %245 = vector.shape_cast %244 : vector<1x80x120xf32> to vector<80x120xf32>
    %cst_238 = arith.constant dense<0.000000e+00> : vector<30x120xf32>
    %246 = tpu.matmul %235, %245, %cst_238 {dimension_numbers = #tpu.dot_dimension_numbers<[1], [0], [0], [1], [0, 0, 1, 1], [], []>} : vector<30x80xf32>, vector<80x120xf32>, vector<30x120xf32> -> vector<30x120xf32>
    %247 = arith.addf %243, %246 : vector<30x120xf32>
    %c8_239 = arith.constant 8 : index
    %c0_240 = arith.constant 0 : index
    %c0_241 = arith.constant 0 : index
    %248 = vector.load %arg16[%c8_239, %c0_240, %c0_241] : memref<25x80x120xf32, #tpu.memory_space<vmem>>, vector<1x80x120xf32>
    %249 = vector.shape_cast %248 : vector<1x80x120xf32> to vector<80x120xf32>
    %cst_242 = arith.constant dense<0.000000e+00> : vector<30x120xf32>
    %250 = tpu.matmul %235, %249, %cst_242 {dimension_numbers = #tpu.dot_dimension_numbers<[1], [0], [0], [1], [0, 0, 1, 1], [], []>} : vector<30x80xf32>, vector<80x120xf32>, vector<30x120xf32> -> vector<30x120xf32>
    %251 = arith.addf %247, %250 : vector<30x120xf32>
    %c9 = arith.constant 9 : index
    %c0_243 = arith.constant 0 : index
    %c0_244 = arith.constant 0 : index
    %252 = vector.load %arg16[%c9, %c0_243, %c0_244] : memref<25x80x120xf32, #tpu.memory_space<vmem>>, vector<1x80x120xf32>
    %253 = vector.shape_cast %252 : vector<1x80x120xf32> to vector<80x120xf32>
    %cst_245 = arith.constant dense<0.000000e+00> : vector<30x120xf32>
    %254 = tpu.matmul %235, %253, %cst_245 {dimension_numbers = #tpu.dot_dimension_numbers<[1], [0], [0], [1], [0, 0, 1, 1], [], []>} : vector<30x80xf32>, vector<80x120xf32>, vector<30x120xf32> -> vector<30x120xf32>
    %255 = arith.addf %251, %254 : vector<30x120xf32>
    %c2_246 = arith.constant 2 : index
    %c0_247 = arith.constant 0 : index
    %c0_248 = arith.constant 0 : index
    %256 = vector.load %arg15[%c2_246, %c0_247, %c0_248] : memref<5x30x10xf32, #tpu.memory_space<vmem>>, vector<1x30x10xf32>
    %257 = vector.shape_cast %256 : vector<1x30x10xf32> to vector<30x10xf32>
    %cst_249 = arith.constant dense<0.000000e+00> : vector<30x80xf32>
    %258 = tpu.matmul %257, %210, %cst_249 {dimension_numbers = #tpu.dot_dimension_numbers<[1], [0], [0], [1], [0, 0, 1, 1], [], []>} : vector<30x10xf32>, vector<10x80xf32>, vector<30x80xf32> -> vector<30x80xf32>
    %c10 = arith.constant 10 : index
    %c0_250 = arith.constant 0 : index
    %c0_251 = arith.constant 0 : index
    %259 = vector.load %arg16[%c10, %c0_250, %c0_251] : memref<25x80x120xf32, #tpu.memory_space<vmem>>, vector<1x80x120xf32>
    %260 = vector.shape_cast %259 : vector<1x80x120xf32> to vector<80x120xf32>
    %cst_252 = arith.constant dense<0.000000e+00> : vector<30x120xf32>
    %261 = tpu.matmul %258, %260, %cst_252 {dimension_numbers = #tpu.dot_dimension_numbers<[1], [0], [0], [1], [0, 0, 1, 1], [], []>} : vector<30x80xf32>, vector<80x120xf32>, vector<30x120xf32> -> vector<30x120xf32>
    %262 = arith.addf %255, %261 : vector<30x120xf32>
    %c11 = arith.constant 11 : index
    %c0_253 = arith.constant 0 : index
    %c0_254 = arith.constant 0 : index
    %263 = vector.load %arg16[%c11, %c0_253, %c0_254] : memref<25x80x120xf32, #tpu.memory_space<vmem>>, vector<1x80x120xf32>
    %264 = vector.shape_cast %263 : vector<1x80x120xf32> to vector<80x120xf32>
    %cst_255 = arith.constant dense<0.000000e+00> : vector<30x120xf32>
    %265 = tpu.matmul %258, %264, %cst_255 {dimension_numbers = #tpu.dot_dimension_numbers<[1], [0], [0], [1], [0, 0, 1, 1], [], []>} : vector<30x80xf32>, vector<80x120xf32>, vector<30x120xf32> -> vector<30x120xf32>
    %266 = arith.addf %262, %265 : vector<30x120xf32>
    %c12 = arith.constant 12 : index
    %c0_256 = arith.constant 0 : index
    %c0_257 = arith.constant 0 : index
    %267 = vector.load %arg16[%c12, %c0_256, %c0_257] : memref<25x80x120xf32, #tpu.memory_space<vmem>>, vector<1x80x120xf32>
    %268 = vector.shape_cast %267 : vector<1x80x120xf32> to vector<80x120xf32>
    %cst_258 = arith.constant dense<0.000000e+00> : vector<30x120xf32>
    %269 = tpu.matmul %258, %268, %cst_258 {dimension_numbers = #tpu.dot_dimension_numbers<[1], [0], [0], [1], [0, 0, 1, 1], [], []>} : vector<30x80xf32>, vector<80x120xf32>, vector<30x120xf32> -> vector<30x120xf32>
    %270 = arith.addf %266, %269 : vector<30x120xf32>
    %c13 = arith.constant 13 : index
    %c0_259 = arith.constant 0 : index
    %c0_260 = arith.constant 0 : index
    %271 = vector.load %arg16[%c13, %c0_259, %c0_260] : memref<25x80x120xf32, #tpu.memory_space<vmem>>, vector<1x80x120xf32>
    %272 = vector.shape_cast %271 : vector<1x80x120xf32> to vector<80x120xf32>
    %cst_261 = arith.constant dense<0.000000e+00> : vector<30x120xf32>
    %273 = tpu.matmul %258, %272, %cst_261 {dimension_numbers = #tpu.dot_dimension_numbers<[1], [0], [0], [1], [0, 0, 1, 1], [], []>} : vector<30x80xf32>, vector<80x120xf32>, vector<30x120xf32> -> vector<30x120xf32>
    %274 = arith.addf %270, %273 : vector<30x120xf32>
    %c14 = arith.constant 14 : index
    %c0_262 = arith.constant 0 : index
    %c0_263 = arith.constant 0 : index
    %275 = vector.load %arg16[%c14, %c0_262, %c0_263] : memref<25x80x120xf32, #tpu.memory_space<vmem>>, vector<1x80x120xf32>
    %276 = vector.shape_cast %275 : vector<1x80x120xf32> to vector<80x120xf32>
    %cst_264 = arith.constant dense<0.000000e+00> : vector<30x120xf32>
    %277 = tpu.matmul %258, %276, %cst_264 {dimension_numbers = #tpu.dot_dimension_numbers<[1], [0], [0], [1], [0, 0, 1, 1], [], []>} : vector<30x80xf32>, vector<80x120xf32>, vector<30x120xf32> -> vector<30x120xf32>
    %278 = arith.addf %274, %277 : vector<30x120xf32>
    %c3_265 = arith.constant 3 : index
    %c0_266 = arith.constant 0 : index
    %c0_267 = arith.constant 0 : index
    %279 = vector.load %arg15[%c3_265, %c0_266, %c0_267] : memref<5x30x10xf32, #tpu.memory_space<vmem>>, vector<1x30x10xf32>
    %280 = vector.shape_cast %279 : vector<1x30x10xf32> to vector<30x10xf32>
    %cst_268 = arith.constant dense<0.000000e+00> : vector<30x80xf32>
    %281 = tpu.matmul %280, %210, %cst_268 {dimension_numbers = #tpu.dot_dimension_numbers<[1], [0], [0], [1], [0, 0, 1, 1], [], []>} : vector<30x10xf32>, vector<10x80xf32>, vector<30x80xf32> -> vector<30x80xf32>
    %c15 = arith.constant 15 : index
    %c0_269 = arith.constant 0 : index
    %c0_270 = arith.constant 0 : index
    %282 = vector.load %arg16[%c15, %c0_269, %c0_270] : memref<25x80x120xf32, #tpu.memory_space<vmem>>, vector<1x80x120xf32>
    %283 = vector.shape_cast %282 : vector<1x80x120xf32> to vector<80x120xf32>
    %cst_271 = arith.constant dense<0.000000e+00> : vector<30x120xf32>
    %284 = tpu.matmul %281, %283, %cst_271 {dimension_numbers = #tpu.dot_dimension_numbers<[1], [0], [0], [1], [0, 0, 1, 1], [], []>} : vector<30x80xf32>, vector<80x120xf32>, vector<30x120xf32> -> vector<30x120xf32>
    %285 = arith.addf %278, %284 : vector<30x120xf32>
    %c16 = arith.constant 16 : index
    %c0_272 = arith.constant 0 : index
    %c0_273 = arith.constant 0 : index
    %286 = vector.load %arg16[%c16, %c0_272, %c0_273] : memref<25x80x120xf32, #tpu.memory_space<vmem>>, vector<1x80x120xf32>
    %287 = vector.shape_cast %286 : vector<1x80x120xf32> to vector<80x120xf32>
    %cst_274 = arith.constant dense<0.000000e+00> : vector<30x120xf32>
    %288 = tpu.matmul %281, %287, %cst_274 {dimension_numbers = #tpu.dot_dimension_numbers<[1], [0], [0], [1], [0, 0, 1, 1], [], []>} : vector<30x80xf32>, vector<80x120xf32>, vector<30x120xf32> -> vector<30x120xf32>
    %289 = arith.addf %285, %288 : vector<30x120xf32>
    %c17 = arith.constant 17 : index
    %c0_275 = arith.constant 0 : index
    %c0_276 = arith.constant 0 : index
    %290 = vector.load %arg16[%c17, %c0_275, %c0_276] : memref<25x80x120xf32, #tpu.memory_space<vmem>>, vector<1x80x120xf32>
    %291 = vector.shape_cast %290 : vector<1x80x120xf32> to vector<80x120xf32>
    %cst_277 = arith.constant dense<0.000000e+00> : vector<30x120xf32>
    %292 = tpu.matmul %281, %291, %cst_277 {dimension_numbers = #tpu.dot_dimension_numbers<[1], [0], [0], [1], [0, 0, 1, 1], [], []>} : vector<30x80xf32>, vector<80x120xf32>, vector<30x120xf32> -> vector<30x120xf32>
    %293 = arith.addf %289, %292 : vector<30x120xf32>
    %c18 = arith.constant 18 : index
    %c0_278 = arith.constant 0 : index
    %c0_279 = arith.constant 0 : index
    %294 = vector.load %arg16[%c18, %c0_278, %c0_279] : memref<25x80x120xf32, #tpu.memory_space<vmem>>, vector<1x80x120xf32>
    %295 = vector.shape_cast %294 : vector<1x80x120xf32> to vector<80x120xf32>
    %cst_280 = arith.constant dense<0.000000e+00> : vector<30x120xf32>
    %296 = tpu.matmul %281, %295, %cst_280 {dimension_numbers = #tpu.dot_dimension_numbers<[1], [0], [0], [1], [0, 0, 1, 1], [], []>} : vector<30x80xf32>, vector<80x120xf32>, vector<30x120xf32> -> vector<30x120xf32>
    %297 = arith.addf %293, %296 : vector<30x120xf32>
    %c19 = arith.constant 19 : index
    %c0_281 = arith.constant 0 : index
    %c0_282 = arith.constant 0 : index
    %298 = vector.load %arg16[%c19, %c0_281, %c0_282] : memref<25x80x120xf32, #tpu.memory_space<vmem>>, vector<1x80x120xf32>
    %299 = vector.shape_cast %298 : vector<1x80x120xf32> to vector<80x120xf32>
    %cst_283 = arith.constant dense<0.000000e+00> : vector<30x120xf32>
    %300 = tpu.matmul %281, %299, %cst_283 {dimension_numbers = #tpu.dot_dimension_numbers<[1], [0], [0], [1], [0, 0, 1, 1], [], []>} : vector<30x80xf32>, vector<80x120xf32>, vector<30x120xf32> -> vector<30x120xf32>
    %301 = arith.addf %297, %300 : vector<30x120xf32>
    %c4_284 = arith.constant 4 : index
    %c0_285 = arith.constant 0 : index
    %c0_286 = arith.constant 0 : index
    %302 = vector.load %arg15[%c4_284, %c0_285, %c0_286] : memref<5x30x10xf32, #tpu.memory_space<vmem>>, vector<1x30x10xf32>
    %303 = vector.shape_cast %302 : vector<1x30x10xf32> to vector<30x10xf32>
    %cst_287 = arith.constant dense<0.000000e+00> : vector<30x80xf32>
    %304 = tpu.matmul %303, %210, %cst_287 {dimension_numbers = #tpu.dot_dimension_numbers<[1], [0], [0], [1], [0, 0, 1, 1], [], []>} : vector<30x10xf32>, vector<10x80xf32>, vector<30x80xf32> -> vector<30x80xf32>
    %c20 = arith.constant 20 : index
    %c0_288 = arith.constant 0 : index
    %c0_289 = arith.constant 0 : index
    %305 = vector.load %arg16[%c20, %c0_288, %c0_289] : memref<25x80x120xf32, #tpu.memory_space<vmem>>, vector<1x80x120xf32>
    %306 = vector.shape_cast %305 : vector<1x80x120xf32> to vector<80x120xf32>
    %cst_290 = arith.constant dense<0.000000e+00> : vector<30x120xf32>
    %307 = tpu.matmul %304, %306, %cst_290 {dimension_numbers = #tpu.dot_dimension_numbers<[1], [0], [0], [1], [0, 0, 1, 1], [], []>} : vector<30x80xf32>, vector<80x120xf32>, vector<30x120xf32> -> vector<30x120xf32>
    %308 = arith.addf %301, %307 : vector<30x120xf32>
    %c21 = arith.constant 21 : index
    %c0_291 = arith.constant 0 : index
    %c0_292 = arith.constant 0 : index
    %309 = vector.load %arg16[%c21, %c0_291, %c0_292] : memref<25x80x120xf32, #tpu.memory_space<vmem>>, vector<1x80x120xf32>
    %310 = vector.shape_cast %309 : vector<1x80x120xf32> to vector<80x120xf32>
    %cst_293 = arith.constant dense<0.000000e+00> : vector<30x120xf32>
    %311 = tpu.matmul %304, %310, %cst_293 {dimension_numbers = #tpu.dot_dimension_numbers<[1], [0], [0], [1], [0, 0, 1, 1], [], []>} : vector<30x80xf32>, vector<80x120xf32>, vector<30x120xf32> -> vector<30x120xf32>
    %312 = arith.addf %308, %311 : vector<30x120xf32>
    %c22 = arith.constant 22 : index
    %c0_294 = arith.constant 0 : index
    %c0_295 = arith.constant 0 : index
    %313 = vector.load %arg16[%c22, %c0_294, %c0_295] : memref<25x80x120xf32, #tpu.memory_space<vmem>>, vector<1x80x120xf32>
    %314 = vector.shape_cast %313 : vector<1x80x120xf32> to vector<80x120xf32>
    %cst_296 = arith.constant dense<0.000000e+00> : vector<30x120xf32>
    %315 = tpu.matmul %304, %314, %cst_296 {dimension_numbers = #tpu.dot_dimension_numbers<[1], [0], [0], [1], [0, 0, 1, 1], [], []>} : vector<30x80xf32>, vector<80x120xf32>, vector<30x120xf32> -> vector<30x120xf32>
    %316 = arith.addf %312, %315 : vector<30x120xf32>
    %c23 = arith.constant 23 : index
    %c0_297 = arith.constant 0 : index
    %c0_298 = arith.constant 0 : index
    %317 = vector.load %arg16[%c23, %c0_297, %c0_298] : memref<25x80x120xf32, #tpu.memory_space<vmem>>, vector<1x80x120xf32>
    %318 = vector.shape_cast %317 : vector<1x80x120xf32> to vector<80x120xf32>
    %cst_299 = arith.constant dense<0.000000e+00> : vector<30x120xf32>
    %319 = tpu.matmul %304, %318, %cst_299 {dimension_numbers = #tpu.dot_dimension_numbers<[1], [0], [0], [1], [0, 0, 1, 1], [], []>} : vector<30x80xf32>, vector<80x120xf32>, vector<30x120xf32> -> vector<30x120xf32>
    %320 = arith.addf %316, %319 : vector<30x120xf32>
    %c24 = arith.constant 24 : index
    %c0_300 = arith.constant 0 : index
    %c0_301 = arith.constant 0 : index
    %321 = vector.load %arg16[%c24, %c0_300, %c0_301] : memref<25x80x120xf32, #tpu.memory_space<vmem>>, vector<1x80x120xf32>
    %322 = vector.shape_cast %321 : vector<1x80x120xf32> to vector<80x120xf32>
    %cst_302 = arith.constant dense<0.000000e+00> : vector<30x120xf32>
    %323 = tpu.matmul %304, %322, %cst_302 {dimension_numbers = #tpu.dot_dimension_numbers<[1], [0], [0], [1], [0, 0, 1, 1], [], []>} : vector<30x80xf32>, vector<80x120xf32>, vector<30x120xf32> -> vector<30x120xf32>
    %324 = arith.addf %320, %323 : vector<30x120xf32>
    %c0_303 = arith.constant 0 : index
    %c0_304 = arith.constant 0 : index
    %325 = vector.load %arg17[%c0_303, %c0_304] : memref<1x120xf32, #tpu.memory_space<vmem>>, vector<1x120xf32>
    %326 = vector.broadcast %325 : vector<1x120xf32> to vector<30x120xf32>
    %327 = arith.addf %324, %326 : vector<30x120xf32>
    %cst_305 = arith.constant 2.000000e+01 : f32
    %328 = vector.broadcast %cst_305 : f32 to vector<30x120xf32>
    %329 = arith.cmpf ogt, %327, %328 : vector<30x120xf32>
    %cst_306 = arith.constant 2.000000e+01 : f32
    %330 = vector.broadcast %cst_306 : f32 to vector<30x120xf32>
    %331 = arith.minimumf %327, %330 : vector<30x120xf32>
    %332 = math.exp %331 : vector<30x120xf32>
    %cst_307 = arith.constant 1.000000e+00 : f32
    %333 = vector.broadcast %cst_307 : f32 to vector<30x120xf32>
    %334 = arith.addf %333, %332 : vector<30x120xf32>
    %335 = math.log %334 : vector<30x120xf32>
    %336 = arith.select %329, %327, %335 : vector<30x120xi1>, vector<30x120xf32>
    %c0_308 = arith.constant 0 : index
    %c0_309 = arith.constant 0 : index
    %c0_310 = arith.constant 0 : index
    %337 = vector.load %arg18[%c0_308, %c0_309, %c0_310] : memref<2x56x30xf32, #tpu.memory_space<vmem>>, vector<1x56x30xf32>
    %338 = vector.shape_cast %337 : vector<1x56x30xf32> to vector<56x30xf32>
    %cst_311 = arith.constant dense<0.000000e+00> : vector<56x120xf32>
    %339 = tpu.matmul %338, %336, %cst_311 {dimension_numbers = #tpu.dot_dimension_numbers<[1], [0], [0], [1], [0, 0, 1, 1], [], []>} : vector<56x30xf32>, vector<30x120xf32>, vector<56x120xf32> -> vector<56x120xf32>
    %c0_312 = arith.constant 0 : index
    %c0_313 = arith.constant 0 : index
    %c0_314 = arith.constant 0 : index
    %340 = vector.load %arg19[%c0_312, %c0_313, %c0_314] : memref<4x120x28xf32, #tpu.memory_space<vmem>>, vector<1x120x28xf32>
    %341 = vector.shape_cast %340 : vector<1x120x28xf32> to vector<120x28xf32>
    %cst_315 = arith.constant dense<0.000000e+00> : vector<56x28xf32>
    %342 = tpu.matmul %339, %341, %cst_315 {dimension_numbers = #tpu.dot_dimension_numbers<[1], [0], [0], [1], [0, 0, 1, 1], [], []>} : vector<56x120xf32>, vector<120x28xf32>, vector<56x28xf32> -> vector<56x28xf32>
    %c1_316 = arith.constant 1 : index
    %c0_317 = arith.constant 0 : index
    %c0_318 = arith.constant 0 : index
    %343 = vector.load %arg19[%c1_316, %c0_317, %c0_318] : memref<4x120x28xf32, #tpu.memory_space<vmem>>, vector<1x120x28xf32>
    %344 = vector.shape_cast %343 : vector<1x120x28xf32> to vector<120x28xf32>
    %cst_319 = arith.constant dense<0.000000e+00> : vector<56x28xf32>
    %345 = tpu.matmul %339, %344, %cst_319 {dimension_numbers = #tpu.dot_dimension_numbers<[1], [0], [0], [1], [0, 0, 1, 1], [], []>} : vector<56x120xf32>, vector<120x28xf32>, vector<56x28xf32> -> vector<56x28xf32>
    %346 = arith.addf %342, %345 : vector<56x28xf32>
    %c1_320 = arith.constant 1 : index
    %c0_321 = arith.constant 0 : index
    %c0_322 = arith.constant 0 : index
    %347 = vector.load %arg18[%c1_320, %c0_321, %c0_322] : memref<2x56x30xf32, #tpu.memory_space<vmem>>, vector<1x56x30xf32>
    %348 = vector.shape_cast %347 : vector<1x56x30xf32> to vector<56x30xf32>
    %cst_323 = arith.constant dense<0.000000e+00> : vector<56x120xf32>
    %349 = tpu.matmul %348, %336, %cst_323 {dimension_numbers = #tpu.dot_dimension_numbers<[1], [0], [0], [1], [0, 0, 1, 1], [], []>} : vector<56x30xf32>, vector<30x120xf32>, vector<56x120xf32> -> vector<56x120xf32>
    %c2_324 = arith.constant 2 : index
    %c0_325 = arith.constant 0 : index
    %c0_326 = arith.constant 0 : index
    %350 = vector.load %arg19[%c2_324, %c0_325, %c0_326] : memref<4x120x28xf32, #tpu.memory_space<vmem>>, vector<1x120x28xf32>
    %351 = vector.shape_cast %350 : vector<1x120x28xf32> to vector<120x28xf32>
    %cst_327 = arith.constant dense<0.000000e+00> : vector<56x28xf32>
    %352 = tpu.matmul %349, %351, %cst_327 {dimension_numbers = #tpu.dot_dimension_numbers<[1], [0], [0], [1], [0, 0, 1, 1], [], []>} : vector<56x120xf32>, vector<120x28xf32>, vector<56x28xf32> -> vector<56x28xf32>
    %353 = arith.addf %346, %352 : vector<56x28xf32>
    %c3_328 = arith.constant 3 : index
    %c0_329 = arith.constant 0 : index
    %c0_330 = arith.constant 0 : index
    %354 = vector.load %arg19[%c3_328, %c0_329, %c0_330] : memref<4x120x28xf32, #tpu.memory_space<vmem>>, vector<1x120x28xf32>
    %355 = vector.shape_cast %354 : vector<1x120x28xf32> to vector<120x28xf32>
    %cst_331 = arith.constant dense<0.000000e+00> : vector<56x28xf32>
    %356 = tpu.matmul %349, %355, %cst_331 {dimension_numbers = #tpu.dot_dimension_numbers<[1], [0], [0], [1], [0, 0, 1, 1], [], []>} : vector<56x120xf32>, vector<120x28xf32>, vector<56x28xf32> -> vector<56x28xf32>
    %357 = arith.addf %353, %356 : vector<56x28xf32>
    %c0_332 = arith.constant 0 : index
    %c0_333 = arith.constant 0 : index
    %358 = vector.load %arg20[%c0_332, %c0_333] : memref<1x28xf32, #tpu.memory_space<vmem>>, vector<1x28xf32>
    %359 = vector.broadcast %358 : vector<1x28xf32> to vector<56x28xf32>
    %360 = arith.addf %357, %359 : vector<56x28xf32>
    %361 = math.tanh %360 : vector<56x28xf32>
    %c0_334 = arith.constant 0 : index
    %c0_335 = arith.constant 0 : index
    %362 = vector.load %arg21[%c0_334, %c0_335] : memref<56x28xf32, #tpu.memory_space<vmem>>, vector<56x28xf32>
    tpu.vector_store %arg21[%c0_334, %c0_335], %361 {strides = array<i32>} : memref<56x28xf32, #tpu.memory_space<vmem>>, vector<56x28xf32>,
    return
  }
  func.func @transform_0(%arg0: i32) -> (i32, i32) {
    %c0_i32 = arith.constant 0 : i32
    %c0_i32_0 = arith.constant 0 : i32
    return %arg0, %c0_i32 : i32, i32
  }
  func.func @transform_1(%arg0: i32) -> (i32, i32, i32) {
    %c0_i32 = arith.constant 0 : i32
    %c0_i32_0 = arith.constant 0 : i32
    %c0_i32_1 = arith.constant 0 : i32
    %c0_i32_2 = arith.constant 0 : i32
    return %c0_i32, %c0_i32_0, %c0_i32_1 : i32, i32, i32
  }
  func.func @transform_2(%arg0: i32) -> (i32, i32, i32) {
    %c0_i32 = arith.constant 0 : i32
    %c0_i32_0 = arith.constant 0 : i32
    %c0_i32_1 = arith.constant 0 : i32
    %c0_i32_2 = arith.constant 0 : i32
    return %c0_i32, %c0_i32_0, %c0_i32_1 : i32, i32, i32
  }
  func.func @transform_3(%arg0: i32) -> (i32, i32) {
    %c0_i32 = arith.constant 0 : i32
    %c0_i32_0 = arith.constant 0 : i32
    %c0_i32_1 = arith.constant 0 : i32
    return %c0_i32, %c0_i32_0 : i32, i32
  }
  func.func @transform_4(%arg0: i32) -> (i32, i32, i32) {
    %c0_i32 = arith.constant 0 : i32
    %c0_i32_0 = arith.constant 0 : i32
    %c0_i32_1 = arith.constant 0 : i32
    %c0_i32_2 = arith.constant 0 : i32
    return %c0_i32, %c0_i32_0, %c0_i32_1 : i32, i32, i32
  }
  func.func @transform_5(%arg0: i32) -> (i32, i32, i32) {
    %c0_i32 = arith.constant 0 : i32
    %c0_i32_0 = arith.constant 0 : i32
    %c0_i32_1 = arith.constant 0 : i32
    %c0_i32_2 = arith.constant 0 : i32
    return %c0_i32, %c0_i32_0, %c0_i32_1 : i32, i32, i32
  }
  func.func @transform_6(%arg0: i32) -> (i32, i32, i32) {
    %c0_i32 = arith.constant 0 : i32
    %c0_i32_0 = arith.constant 0 : i32
    %c0_i32_1 = arith.constant 0 : i32
    %c0_i32_2 = arith.constant 0 : i32
    return %c0_i32, %c0_i32_0, %c0_i32_1 : i32, i32, i32
  }
  func.func @transform_7(%arg0: i32) -> (i32, i32, i32) {
    %c0_i32 = arith.constant 0 : i32
    %c0_i32_0 = arith.constant 0 : i32
    %c0_i32_1 = arith.constant 0 : i32
    %c0_i32_2 = arith.constant 0 : i32
    return %c0_i32, %c0_i32_0, %c0_i32_1 : i32, i32, i32
  }
  func.func @transform_8(%arg0: i32) -> (i32, i32) {
    %c0_i32 = arith.constant 0 : i32
    %c0_i32_0 = arith.constant 0 : i32
    %c0_i32_1 = arith.constant 0 : i32
    return %c0_i32, %c0_i32_0 : i32, i32
  }
  func.func @transform_9(%arg0: i32) -> (i32, i32, i32) {
    %c0_i32 = arith.constant 0 : i32
    %c0_i32_0 = arith.constant 0 : i32
    %c0_i32_1 = arith.constant 0 : i32
    %c0_i32_2 = arith.constant 0 : i32
    return %c0_i32, %c0_i32_0, %c0_i32_1 : i32, i32, i32
  }
  func.func @transform_10(%arg0: i32) -> (i32, i32, i32) {
    %c0_i32 = arith.constant 0 : i32
    %c0_i32_0 = arith.constant 0 : i32
    %c0_i32_1 = arith.constant 0 : i32
    %c0_i32_2 = arith.constant 0 : i32
    return %c0_i32, %c0_i32_0, %c0_i32_1 : i32, i32, i32
  }
  func.func @transform_11(%arg0: i32) -> (i32, i32, i32) {
    %c0_i32 = arith.constant 0 : i32
    %c0_i32_0 = arith.constant 0 : i32
    %c0_i32_1 = arith.constant 0 : i32
    %c0_i32_2 = arith.constant 0 : i32
    return %c0_i32, %c0_i32_0, %c0_i32_1 : i32, i32, i32
  }
  func.func @transform_12(%arg0: i32) -> (i32, i32, i32) {
    %c0_i32 = arith.constant 0 : i32
    %c0_i32_0 = arith.constant 0 : i32
    %c0_i32_1 = arith.constant 0 : i32
    %c0_i32_2 = arith.constant 0 : i32
    return %c0_i32, %c0_i32_0, %c0_i32_1 : i32, i32, i32
  }
  func.func @transform_13(%arg0: i32) -> (i32, i32) {
    %c0_i32 = arith.constant 0 : i32
    %c0_i32_0 = arith.constant 0 : i32
    %c0_i32_1 = arith.constant 0 : i32
    return %c0_i32, %c0_i32_0 : i32, i32
  }
  func.func @transform_14(%arg0: i32) -> (i32, i32, i32) {
    %c0_i32 = arith.constant 0 : i32
    %c0_i32_0 = arith.constant 0 : i32
    %c0_i32_1 = arith.constant 0 : i32
    %c0_i32_2 = arith.constant 0 : i32
    return %c0_i32, %c0_i32_0, %c0_i32_1 : i32, i32, i32
  }
  func.func @transform_15(%arg0: i32) -> (i32, i32, i32) {
    %c0_i32 = arith.constant 0 : i32
    %c0_i32_0 = arith.constant 0 : i32
    %c0_i32_1 = arith.constant 0 : i32
    %c0_i32_2 = arith.constant 0 : i32
    return %c0_i32, %c0_i32_0, %c0_i32_1 : i32, i32, i32
  }
  func.func @transform_16(%arg0: i32) -> (i32, i32) {
    %c0_i32 = arith.constant 0 : i32
    %c0_i32_0 = arith.constant 0 : i32
    %c0_i32_1 = arith.constant 0 : i32
    return %c0_i32, %c0_i32_0 : i32, i32
  }
  func.func @transform_17(%arg0: i32) -> (i32, i32, i32) {
    %c0_i32 = arith.constant 0 : i32
    %c0_i32_0 = arith.constant 0 : i32
    %c0_i32_1 = arith.constant 0 : i32
    %c0_i32_2 = arith.constant 0 : i32
    return %c0_i32, %c0_i32_0, %c0_i32_1 : i32, i32, i32
  }
  func.func @transform_18(%arg0: i32) -> (i32, i32, i32) {
    %c0_i32 = arith.constant 0 : i32
    %c0_i32_0 = arith.constant 0 : i32
    %c0_i32_1 = arith.constant 0 : i32
    %c0_i32_2 = arith.constant 0 : i32
    return %c0_i32, %c0_i32_0, %c0_i32_1 : i32, i32, i32
  }
  func.func @transform_19(%arg0: i32) -> (i32, i32) {
    %c0_i32 = arith.constant 0 : i32
    %c0_i32_0 = arith.constant 0 : i32
    %c0_i32_1 = arith.constant 0 : i32
    return %c0_i32, %c0_i32_0 : i32, i32
  }
  func.func @transform_20(%arg0: i32) -> (i32, i32) {
    %c0_i32 = arith.constant 0 : i32
    %c0_i32_0 = arith.constant 0 : i32
    return %arg0, %c0_i32 : i32, i32
  }
}

</mosaic_0001>

<llo_original>
// kernel: tile.34
$region0: #{tile.34}
  %s0 = inlined_call_operand.vmem [shape: f32[3,8], index: 0, kind: input, shape index: {}]
  %s1 = inlined_call_operand.vmem [shape: f32[1,24], index: 1, kind: output, shape index: {}]
  $region1: #{tile.34} parent=0
    #allocation0 [shape = 'u8[4096]{0}', space=vmem, size = 0x1000, scoped, tag = 'scoped mem for output reshape']
    #allocation1 [shape = 'u8[4096]{0}', space=vmem, size = 0x1000, scoped, tag = 'scoped mem for input reshape']
    %s3 = ssub.s32 16, 1
    %v4 = vld [vmem:[%s0] sm:%s3]
    %5 = vst [vmem:[#allocation1] sm:%s3] %v4
    %v6 = vld [vmem:[#allocation1] sm:$0x1]
    %vm7 = vcmask 64512
    %8 = vst.msk [vmem:[#allocation0] sm:$0x1] %vm7, %v6
    %s9 = scalar_lea.vmem [#allocation1], 2
    %v10 = vld [vmem:[%s9] sm:$0x1]
    %11 = vrot.lane.b32.xlu0 %v10, 16
    %v12 = vpop.permute.xlu0 %11
    %vm13 = vcmask 195712
    %14 = vst.msk [vmem:[#allocation0] sm:$0x1] %vm13, %v12
    %s15 = scalar_lea.vmem [#allocation1], 1
    %v16 = vld [vmem:[%s15] sm:$0x1]
    %17 = vrot.lane.b32.xlu0 %v16, 8
    %v18 = vpop.permute.xlu0 %17
    %vm19 = vcmask 130112
    %20 = vst.msk [vmem:[#allocation0] sm:$0x1] %vm19, %v18
    %s22 = ssub.s32 2, 1
    %v23 = vld [vmem:[#allocation0] sm:%s22]
    %s25 = ssub.s32 2, 1
    %26 = vst [vmem:[%s1] sm:%s25] %v23

// kernel: tile.33
$region0: #{tile.33}
  #allocation0 [shape = 's32[1]{0}', space=sflag, size = 0x4, scoped, tag = 'scoped memory for tile.33']
  %s0 = inlined_call_operand.vmem [shape: f32[8], index: 0, kind: input, shape index: {}]
  %s1 = inlined_call_operand.vmem [shape: f32[3,8], index: 1, kind: output, shape index: {}]
  // Predicated region
  $region2: #{tile.33} parent=0 // pred_check
    _
  $region3: #{tile.33} parent=0 // pred_check_branch
    %3 = sbr.rel (0) target = $region5
  $region4: #{tile.33} parent=0 // pred_region
    _
  $region5: #{tile.33} parent=0 // pred_fallthru
    _
  %v4 = vld [vmem:[%s0] ss:$0 sm:$0xff]
  %5 = vst [vmem:[%s1] sm:$0xf] %v4

// kernel: tile.38
$region0: #{tile.38}
  #allocation0 [shape = 's32[1]{0}', space=sflag, size = 0x4, scoped, tag = 'scoped memory for tile.38']
  %s0 = inlined_call_operand.vmem [shape: f32[16], index: 0, kind: input, shape index: {}]
  %s1 = inlined_call_operand.vmem [shape: f32[5,16], index: 1, kind: output, shape index: {}]
  // Predicated region
  $region2: #{tile.38} parent=0 // pred_check
    _
  $region3: #{tile.38} parent=0 // pred_check_branch
    %3 = sbr.rel (0) target = $region5
  $region4: #{tile.38} parent=0 // pred_region
    _
  $region5: #{tile.38} parent=0 // pred_fallthru
    _
  %v4 = vld [vmem:[%s0] ss:$0 sm:$0xff]
  %5 = vst [vmem:[%s1] sm:$0xff] %v4

// kernel: tile.39
$region0: #{tile.39}
  %s0 = inlined_call_operand.vmem [shape: f32[5,16], index: 0, kind: input, shape index: {}]
  %s1 = inlined_call_operand.vmem [shape: f32[1,80], index: 1, kind: output, shape index: {}]
  $region1: #{tile.39} parent=0
    #allocation0 [shape = 'u8[4096]{0}', space=vmem, size = 0x1000, scoped, tag = 'scoped mem for output reshape']
    %v2 = vld [vmem:[%s0] sm:$0x1]
    %vm3 = vcmask 130048
    %4 = vst.msk [vmem:[#allocation0] sm:$0x1] %vm3, %v2
    %s5 = scalar_lea.vmem %s0, 4
    %v6 = vld [vmem:[%s5] sm:$0x1]
    %7 = vrot.lane.b32.xlu0 %v6, 64
    %v8 = vpop.permute.xlu0 %7
    %vm9 = vcmask 654848
    %10 = vst.msk [vmem:[#allocation0] sm:$0x1] %vm9, %v8
    %s11 = scalar_lea.vmem %s0, 3
    %v12 = vld [vmem:[%s11] sm:$0x1]
    %13 = vrot.lane.b32.xlu0 %v12, 48
    %v14 = vpop.permute.xlu0 %13
    %vm15 = vcmask 523648
    %16 = vst.msk [vmem:[#allocation0] sm:$0x1] %vm15, %v14
    %s17 = scalar_lea.vmem %s0, 2
    %v18 = vld [vmem:[%s17] sm:$0x1]
    %19 = vrot.lane.b32.xlu0 %v18, 32
    %v20 = vpop.permute.xlu0 %19
    %vm21 = vcmask 392448
    %22 = vst.msk [vmem:[#allocation0] sm:$0x1] %vm21, %v20
    %s23 = scalar_lea.vmem %s0, 1
    %v24 = vld [vmem:[%s23] sm:$0x1]
    %25 = vrot.lane.b32.xlu0 %v24, 16
    %v26 = vpop.permute.xlu0 %25
    %vm27 = vcmask 261248
    %28 = vst.msk [vmem:[#allocation0] sm:$0x1] %vm27, %v26
    %s30 = ssub.s32 2, 1
    %v31 = vld [vmem:[#allocation0] sm:%s30]
    %s33 = ssub.s32 2, 1
    %34 = vst [vmem:[%s1] sm:%s33] %v31

// kernel: tile.44
$region0: #{tile.44}
  %s0 = inlined_call_operand.vmem [shape: f32[15,8], index: 0, kind: input, shape index: {}]
  %s1 = inlined_call_operand.vmem [shape: f32[1,120], index: 1, kind: output, shape index: {}]
  $region1: #{tile.44} parent=0
    #allocation0 [shape = 'u8[4096]{0}', space=vmem, size = 0x1000, scoped, tag = 'scoped mem for output reshape']
    %v2 = vld [vmem:[%s0] sm:$0x1]
    %vm3 = vcmask 64512
    %4 = vst.msk [vmem:[#allocation0] sm:$0x1] %vm3, %v2
    %s5 = scalar_lea.vmem %s0, 14
    %v6 = vld [vmem:[%s5] sm:$0x1]
    %7 = vrot.lane.b32.xlu0 %v6, 112
    %v8 = vpop.permute.xlu0 %7
    %vm9 = vcmask 982912
    %10 = vst.msk [vmem:[#allocation0] sm:$0x1] %vm9, %v8
    %s11 = scalar_lea.vmem %s0, 13
    %v12 = vld [vmem:[%s11] sm:$0x1]
    %13 = vrot.lane.b32.xlu0 %v12, 104
    %v14 = vpop.permute.xlu0 %13
    %vm15 = vcmask 917312
    %16 = vst.msk [vmem:[#allocation0] sm:$0x1] %vm15, %v14
    %s17 = scalar_lea.vmem %s0, 12
    %v18 = vld [vmem:[%s17] sm:$0x1]
    %19 = vrot.lane.b32.xlu0 %v18, 96
    %v20 = vpop.permute.xlu0 %19
    %vm21 = vcmask 851712
    %22 = vst.msk [vmem:[#allocation0] sm:$0x1] %vm21, %v20
    %s23 = scalar_lea.vmem %s0, 11
    %v24 = vld [vmem:[%s23] sm:$0x1]
    %25 = vrot.lane.b32.xlu0 %v24, 88
    %v26 = vpop.permute.xlu0 %25
    %vm27 = vcmask 786112
    %28 = vst.msk [vmem:[#allocation0] sm:$0x1] %vm27, %v26
    %s29 = scalar_lea.vmem %s0, 10
    %v30 = vld [vmem:[%s29] sm:$0x1]
    %31 = vrot.lane.b32.xlu0 %v30, 80
    %v32 = vpop.permute.xlu0 %31
    %vm33 = vcmask 720512
    %34 = vst.msk [vmem:[#allocation0] sm:$0x1] %vm33, %v32
    %s35 = scalar_lea.vmem %s0, 9
    %v36 = vld [vmem:[%s35] sm:$0x1]
    %37 = vrot.lane.b32.xlu0 %v36, 72
    %v38 = vpop.permute.xlu0 %37
    %vm39 = vcmask 654912
    %40 = vst.msk [vmem:[#allocation0] sm:$0x1] %vm39, %v38
    %s41 = scalar_lea.vmem %s0, 8
    %v42 = vld [vmem:[%s41] sm:$0x1]
    %43 = vrot.lane.b32.xlu0 %v42, 64
    %v44 = vpop.permute.xlu0 %43
    %vm45 = vcmask 589312
    %46 = vst.msk [vmem:[#allocation0] sm:$0x1] %vm45, %v44
    %s47 = scalar_lea.vmem %s0, 7
    %v48 = vld [vmem:[%s47] sm:$0x1]
    %49 = vrot.lane.b32.xlu0 %v48, 56
    %v50 = vpop.permute.xlu0 %49
    %vm51 = vcmask 523712
    %52 = vst.msk [vmem:[#allocation0] sm:$0x1] %vm51, %v50
    %s53 = scalar_lea.vmem %s0, 6
    %v54 = vld [vmem:[%s53] sm:$0x1]
    %55 = vrot.lane.b32.xlu0 %v54, 48
    %v56 = vpop.permute.xlu0 %55
    %vm57 = vcmask 458112
    %58 = vst.msk [vmem:[#allocation0] sm:$0x1] %vm57, %v56
    %s59 = scalar_lea.vmem %s0, 5
    %v60 = vld [vmem:[%s59] sm:$0x1]
    %61 = vrot.lane.b32.xlu0 %v60, 40
    %v62 = vpop.permute.xlu0 %61
    %vm63 = vcmask 392512
    %64 = vst.msk [vmem:[#allocation0] sm:$0x1] %vm63, %v62
    %s65 = scalar_lea.vmem %s0, 4
    %v66 = vld [vmem:[%s65] sm:$0x1]
    %67 = vrot.lane.b32.xlu0 %v66, 32
    %v68 = vpop.permute.xlu0 %67
    %vm69 = vcmask 326912
    %70 = vst.msk [vmem:[#allocation0] sm:$0x1] %vm69, %v68
    %s71 = scalar_lea.vmem %s0, 3
    %v72 = vld [vmem:[%s71] sm:$0x1]
    %73 = vrot.lane.b32.xlu0 %v72, 24
    %v74 = vpop.permute.xlu0 %73
    %vm75 = vcmask 261312
    %76 = vst.msk [vmem:[#allocation0] sm:$0x1] %vm75, %v74
    %s77 = scalar_lea.vmem %s0, 2
    %v78 = vld [vmem:[%s77] sm:$0x1]
    %79 = vrot.lane.b32.xlu0 %v78, 16
    %v80 = vpop.permute.xlu0 %79
    %vm81 = vcmask 195712
    %82 = vst.msk [vmem:[#allocation0] sm:$0x1] %vm81, %v80
    %s83 = scalar_lea.vmem %s0, 1
    %v84 = vld [vmem:[%s83] sm:$0x1]
    %85 = vrot.lane.b32.xlu0 %v84, 8
    %v86 = vpop.permute.xlu0 %85
    %vm87 = vcmask 130112
    %88 = vst.msk [vmem:[#allocation0] sm:$0x1] %vm87, %v86
    %s90 = ssub.s32 2, 1
    %v91 = vld [vmem:[#allocation0] sm:%s90]
    %s93 = ssub.s32 2, 1
    %94 = vst [vmem:[%s1] sm:%s93] %v91

// kernel: tile.29
$region0: #{tile.29}
  %s0 = inlined_call_operand.vmem [shape: f32[10,16], index: 0, kind: input, shape index: {}]
  %s1 = inlined_call_operand.vmem [shape: f32[1,160], index: 1, kind: output, shape index: {}]
  $region1: #{tile.29} parent=0
    #allocation0 [shape = 'u8[8192]{0}', space=vmem, size = 0x2000, scoped, tag = 'scoped mem for output reshape']
    %s2 = smov 3
    %v3 = vld [vmem:[%s0] ss:$8 sm:%s2]
    %vm4 = vcmask 130048
    %5 = vst.msk [vmem:[#allocation0] ss:$8 sm:$0x3] %vm4, %v3
    %s6 = scalar_lea.vmem %s0, 7
    %v7 = vld [vmem:[%s6] sm:$0x1]
    %8 = vrot.lane.b32.xlu0 %v7, 112
    %v9 = vpop.permute.xlu0 %8
    %vm10 = vcmask 1048448
    %11 = vst.msk [vmem:[#allocation0] sm:$0x1] %vm10, %v9
    %s12 = scalar_lea.vmem %s0, 6
    %v13 = vld [vmem:[%s12] sm:$0x1]
    %14 = vrot.lane.b32.xlu0 %v13, 96
    %v15 = vpop.permute.xlu0 %14
    %vm16 = vcmask 917248
    %17 = vst.msk [vmem:[#allocation0] sm:$0x1] %vm16, %v15
    %s18 = scalar_lea.vmem %s0, 5
    %v19 = vld [vmem:[%s18] sm:$0x1]
    %20 = vrot.lane.b32.xlu0 %v19, 80
    %v21 = vpop.permute.xlu0 %20
    %vm22 = vcmask 786048
    %23 = vst.msk [vmem:[#allocation0] sm:$0x1] %vm22, %v21
    %s24 = scalar_lea.vmem %s0, 4
    %v25 = vld [vmem:[%s24] sm:$0x1]
    %26 = vrot.lane.b32.xlu0 %v25, 64
    %v27 = vpop.permute.xlu0 %26
    %vm28 = vcmask 654848
    %29 = vst.msk [vmem:[#allocation0] sm:$0x1] %vm28, %v27
    %s30 = scalar_lea.vmem %s0, 3
    %v31 = vld [vmem:[%s30] sm:$0x1]
    %32 = vrot.lane.b32.xlu0 %v31, 48
    %v33 = vpop.permute.xlu0 %32
    %vm34 = vcmask 523648
    %35 = vst.msk [vmem:[#allocation0] sm:$0x1] %vm34, %v33
    %s36 = scalar_lea.vmem %s0, 2
    %v37 = vld [vmem:[%s36] sm:$0x1]
    %38 = vrot.lane.b32.xlu0 %v37, 32
    %v39 = vpop.permute.xlu0 %38
    %vm40 = vcmask 392448
    %41 = vst.msk [vmem:[#allocation0] sm:$0x1] %vm40, %v39
    %s42 = scalar_lea.vmem %s0, 1
    %s43 = smov 3
    %v44 = vld [vmem:[%s42] ss:$8 sm:%s43]
    %45 = vrot.lane.b32.xlu0 %v44, 16
    %v46 = vpop.permute.xlu0 %45
    %vm47 = vcmask 261248
    %48 = vst.msk [vmem:[#allocation0] ss:$8 sm:$0x3] %vm47, %v46
    %s50 = ssub.s32 2, 1
    %v51 = vld [vmem:[#allocation0] sm:%s50]
    %s53 = ssub.s32 2, 1
    %54 = vst [vmem:[%s1] sm:%s53] %v51
    %s55 = scalar_lea.vmem [#allocation0], 8
    %v56 = vld [vmem:[%s55] sm:%s50]
    %s58 = ssub.s32 2, 1
    %s59 = scalar_lea.vmem %s1, 1
    %60 = vst [vmem:[%s59] sm:%s58] %v56

// kernel: conv_ae_mnist_forward.1
$region0: #{conv_ae_mnist_forward.1}
  #allocation0 [shape = 'u32[]', space=smem, size = 0x4, offset = 0x4, fixed_abs, tag = 'smem constant byte address 0x4 - core index']
  #allocation1 [shape = 'u32[72,128]{1,0:T(1,128)}', space=vmem, size = 0x9000, scoped, tag = 'internal scratch']
  %s0 = inlined_call_operand.vmem [shape: f32[56,28], index: 0, kind: input, shape index: {}]
  %s1 = inlined_call_operand.vmem [shape: f32[3,20,56], index: 1, kind: input, shape index: {}]
  %s2 = inlined_call_operand.vmem [shape: f32[9,28,160], index: 2, kind: input, shape index: {}]
  %s3 = inlined_call_operand.vmem [shape: f32[1,160], index: 3, kind: input, shape index: {}]
  %s4 = inlined_call_operand.vmem [shape: f32[2,10,20], index: 4, kind: input, shape index: {}]
  %s5 = inlined_call_operand.vmem [shape: f32[2,160,80], index: 5, kind: input, shape index: {}]
  %s6 = inlined_call_operand.vmem [shape: f32[3,6,10], index: 6, kind: input, shape index: {}]
  %s7 = inlined_call_operand.vmem [shape: f32[9,80,24], index: 7, kind: input, shape index: {}]
  %s8 = inlined_call_operand.vmem [shape: f32[1,24], index: 8, kind: input, shape index: {}]
  %s9 = inlined_call_operand.vmem [shape: f32[2,4,6], index: 9, kind: input, shape index: {}]
  %s10 = inlined_call_operand.vmem [shape: f32[2,24,16], index: 10, kind: input, shape index: {}]
  %s11 = inlined_call_operand.vmem [shape: f32[3,10,4], index: 11, kind: input, shape index: {}]
  %s12 = inlined_call_operand.vmem [shape: f32[9,16,80], index: 12, kind: input, shape index: {}]
  %s13 = inlined_call_operand.vmem [shape: f32[1,80], index: 13, kind: input, shape index: {}]
  %s14 = inlined_call_operand.vmem [shape: f32[5,30,10], index: 14, kind: input, shape index: {}]
  %s15 = inlined_call_operand.vmem [shape: f32[25,80,120], index: 15, kind: input, shape index: {}]
  %s16 = inlined_call_operand.vmem [shape: f32[1,120], index: 16, kind: input, shape index: {}]
  %s17 = inlined_call_operand.vmem [shape: f32[2,56,30], index: 17, kind: input, shape index: {}]
  %s18 = inlined_call_operand.vmem [shape: f32[4,120,28], index: 18, kind: input, shape index: {}]
  %s19 = inlined_call_operand.vmem [shape: f32[1,28], index: 19, kind: input, shape index: {}]
  %s20 = inlined_call_operand.hbm [shape: f32[56,28], index: 20, kind: output, shape index: {}]
  %s21 = sld [smem:[#allocation0]]
  $region90: #{conv_ae_mnist_forward.1} parent=0
    _
  %s23 = ssub.s32 1, %s21
  %s24 = scalar_select 0, %s23, %s21
  $region1: #{conv_ae_mnist_forward.1} parent=0
    #allocation2 [shape = 'u8[28672]{0}', space=vmem, size = 0x7000, scoped, tag = 'output window, operand 0, single buffered']
    #allocation3 [shape = 's32[1]{0}', space=sflag, size = 0x4, scoped, tag = 'scoped memory for conv_ae_mnist_forward.1']
    %25 = vsyncpa [#allocation3], 0
    // Predicated region
    $region2: #{conv_ae_mnist_forward.1} parent=1 // pred_check
      _
    $region3: #{conv_ae_mnist_forward.1} parent=1 // pred_check_branch
      %27 = sbr.rel (0) target = $region5
    $region4: #{conv_ae_mnist_forward.1} parent=1 // pred_region
      _
    $region5: #{conv_ae_mnist_forward.1} parent=1 // pred_fallthru
      _
    // Predicated region
    $region6: #{conv_ae_mnist_forward.1} parent=1 // pred_check
      _
    $region7: #{conv_ae_mnist_forward.1} parent=1 // pred_check_branch
      %29 = sbr.rel (0) target = $region9
    $region8: #{conv_ae_mnist_forward.1} parent=1 // pred_region
      _
    $region9: #{conv_ae_mnist_forward.1} parent=1 // pred_fallthru
      _
    // Predicated region
    $region10: #{conv_ae_mnist_forward.1} parent=1 // pred_check
      _
    $region11: #{conv_ae_mnist_forward.1} parent=1 // pred_check_branch
      %31 = sbr.rel (0) target = $region13
    $region12: #{conv_ae_mnist_forward.1} parent=1 // pred_region
      _
    $region13: #{conv_ae_mnist_forward.1} parent=1 // pred_fallthru
      _
    // Predicated region
    $region14: #{conv_ae_mnist_forward.1} parent=1 // pred_check
      _
    $region15: #{conv_ae_mnist_forward.1} parent=1 // pred_check_branch
      %33 = sbr.rel (0) target = $region17
    $region16: #{conv_ae_mnist_forward.1} parent=1 // pred_region
      _
    $region17: #{conv_ae_mnist_forward.1} parent=1 // pred_fallthru
      _
    // Predicated region
    $region18: #{conv_ae_mnist_forward.1} parent=1 // pred_check
      _
    $region19: #{conv_ae_mnist_forward.1} parent=1 // pred_check_branch
      %35 = sbr.rel (0) target = $region21
    $region20: #{conv_ae_mnist_forward.1} parent=1 // pred_region
      _
    $region21: #{conv_ae_mnist_forward.1} parent=1 // pred_fallthru
      _
    // Predicated region
    $region22: #{conv_ae_mnist_forward.1} parent=1 // pred_check
      _
    $region23: #{conv_ae_mnist_forward.1} parent=1 // pred_check_branch
      %37 = sbr.rel (0) target = $region25
    $region24: #{conv_ae_mnist_forward.1} parent=1 // pred_region
      _
    $region25: #{conv_ae_mnist_forward.1} parent=1 // pred_fallthru
      _
    // Predicated region
    $region26: #{conv_ae_mnist_forward.1} parent=1 // pred_check
      _
    $region27: #{conv_ae_mnist_forward.1} parent=1 // pred_check_branch
      %39 = sbr.rel (0) target = $region29
    $region28: #{conv_ae_mnist_forward.1} parent=1 // pred_region
      _
    $region29: #{conv_ae_mnist_forward.1} parent=1 // pred_fallthru
      _
    // Predicated region
    $region30: #{conv_ae_mnist_forward.1} parent=1 // pred_check
      _
    $region31: #{conv_ae_mnist_forward.1} parent=1 // pred_check_branch
      %41 = sbr.rel (0) target = $region33
    $region32: #{conv_ae_mnist_forward.1} parent=1 // pred_region
      _
    $region33: #{conv_ae_mnist_forward.1} parent=1 // pred_fallthru
      _
    // Predicated region
    $region34: #{conv_ae_mnist_forward.1} parent=1 // pred_check
      _
    $region35: #{conv_ae_mnist_forward.1} parent=1 // pred_check_branch
      %43 = sbr.rel (0) target = $region37
    $region36: #{conv_ae_mnist_forward.1} parent=1 // pred_region
      _
    $region37: #{conv_ae_mnist_forward.1} parent=1 // pred_fallthru
      _
    // Predicated region
    $region38: #{conv_ae_mnist_forward.1} parent=1 // pred_check
      _
    $region39: #{conv_ae_mnist_forward.1} parent=1 // pred_check_branch
      %45 = sbr.rel (0) target = $region41
    $region40: #{conv_ae_mnist_forward.1} parent=1 // pred_region
      _
    $region41: #{conv_ae_mnist_forward.1} parent=1 // pred_fallthru
      _
    // Predicated region
    $region42: #{conv_ae_mnist_forward.1} parent=1 // pred_check
      _
    $region43: #{conv_ae_mnist_forward.1} parent=1 // pred_check_branch
      %47 = sbr.rel (0) target = $region45
    $region44: #{conv_ae_mnist_forward.1} parent=1 // pred_region
      _
    $region45: #{conv_ae_mnist_forward.1} parent=1 // pred_fallthru
      _
    // Predicated region
    $region46: #{conv_ae_mnist_forward.1} parent=1 // pred_check
      _
    $region47: #{conv_ae_mnist_forward.1} parent=1 // pred_check_branch
      %49 = sbr.rel (0) target = $region49
    $region48: #{conv_ae_mnist_forward.1} parent=1 // pred_region
      _
    $region49: #{conv_ae_mnist_forward.1} parent=1 // pred_fallthru
      _
    // Predicated region
    $region50: #{conv_ae_mnist_forward.1} parent=1 // pred_check
      _
    $region51: #{conv_ae_mnist_forward.1} parent=1 // pred_check_branch
      %51 = sbr.rel (0) target = $region53
    $region52: #{conv_ae_mnist_forward.1} parent=1 // pred_region
      _
    $region53: #{conv_ae_mnist_forward.1} parent=1 // pred_fallthru
      _
    // Predicated region
    $region54: #{conv_ae_mnist_forward.1} parent=1 // pred_check
      _
    $region55: #{conv_ae_mnist_forward.1} parent=1 // pred_check_branch
      %53 = sbr.rel (0) target = $region57
    $region56: #{conv_ae_mnist_forward.1} parent=1 // pred_region
      _
    $region57: #{conv_ae_mnist_forward.1} parent=1 // pred_fallthru
      _
    // Predicated region
    $region58: #{conv_ae_mnist_forward.1} parent=1 // pred_check
      _
    $region59: #{conv_ae_mnist_forward.1} parent=1 // pred_check_branch
      %55 = sbr.rel (0) target = $region61
    $region60: #{conv_ae_mnist_forward.1} parent=1 // pred_region
      _
    $region61: #{conv_ae_mnist_forward.1} parent=1 // pred_fallthru
      _
    // Predicated region
    $region62: #{conv_ae_mnist_forward.1} parent=1 // pred_check
      _
    $region63: #{conv_ae_mnist_forward.1} parent=1 // pred_check_branch
      %57 = sbr.rel (0) target = $region65
    $region64: #{conv_ae_mnist_forward.1} parent=1 // pred_region
      _
    $region65: #{conv_ae_mnist_forward.1} parent=1 // pred_fallthru
      _
    // Predicated region
    $region66: #{conv_ae_mnist_forward.1} parent=1 // pred_check
      _
    $region67: #{conv_ae_mnist_forward.1} parent=1 // pred_check_branch
      %59 = sbr.rel (0) target = $region69
    $region68: #{conv_ae_mnist_forward.1} parent=1 // pred_region
      _
    $region69: #{conv_ae_mnist_forward.1} parent=1 // pred_fallthru
      _
    // Predicated region
    $region70: #{conv_ae_mnist_forward.1} parent=1 // pred_check
      _
    $region71: #{conv_ae_mnist_forward.1} parent=1 // pred_check_branch
      %61 = sbr.rel (0) target = $region73
    $region72: #{conv_ae_mnist_forward.1} parent=1 // pred_region
      _
    $region73: #{conv_ae_mnist_forward.1} parent=1 // pred_fallthru
      _
    // Predicated region
    $region74: #{conv_ae_mnist_forward.1} parent=1 // pred_check
      _
    $region75: #{conv_ae_mnist_forward.1} parent=1 // pred_check_branch
      %63 = sbr.rel (0) target = $region77
    $region76: #{conv_ae_mnist_forward.1} parent=1 // pred_region
      _
    $region77: #{conv_ae_mnist_forward.1} parent=1 // pred_fallthru
      _
    // Predicated region
    $region78: #{conv_ae_mnist_forward.1} parent=1 // pred_check
      _
    $region79: #{conv_ae_mnist_forward.1} parent=1 // pred_check_branch
      %65 = sbr.rel (0) target = $region81
    $region80: #{conv_ae_mnist_forward.1} parent=1 // pred_region
      _
    $region81: #{conv_ae_mnist_forward.1} parent=1 // pred_fallthru
      _
    %v66 = vld [vmem:[%s0] sm:$0xff]
    %v67 = vld [vmem:[%s0 + $0x8] sm:$0xff]
    %v68 = vld [vmem:[%s0 + $0x10] sm:$0xff]
    %v69 = vld [vmem:[%s0 + $0x18] sm:$0xff]
    %v70 = vld [vmem:[%s0 + $0x20] sm:$0xff]
    %v71 = vld [vmem:[%s0 + $0x28] sm:$0xff]
    %v72 = vld [vmem:[%s0 + $0x30] sm:$0xff]
    %v73 = vld [vmem:[%s1] sm:$0xff]
    %v74 = vld [vmem:[%s1 + $0x8] sm:$0xff]
    %v75 = vld [vmem:[%s1 + $0x10] sm:$0xf]
    %vm76 = vcmask 457728
    %v78 = vsel %vm76, %v73, 0
    %v81 = vsel %vm76, %v74, 0
    %v84 = vsel %vm76, %v75, 0
    %86 = vmatpush.msra.mxu0 0.0
    %87 = vmatpush.msra.mxu0 0.0
    %88 = vmatpush.msra.mxu0 0.0
    %89 = vmatpush.msra.mxu0 0.0
    %90 = vmatpush.msra.mxu0 0.0
    %91 = vmatpush.msra.mxu0 0.0
    %92 = vmatpush.msra.mxu0 0.0
    %93 = vmatpush.msra.mxu0 0.0
    %94 = vmatpush.msra.mxu0 0.0
    %95 = vmatpush.msra.mxu0 %v72
    %96 = vmatpush.msra.mxu0 %v71
    %97 = vmatpush.msra.mxu0 %v70
    %98 = vmatpush.msra.mxu0 %v69
    %99 = vmatpush.msra.mxu0 %v68
    %100 = vmatpush.msra.mxu0 %v67
    %101 = vmatpush.msra.mxu0 %v66
    %102 = vmatmul.f32.gmra.mxu0 %v78
    %v103 = vpop.f32.mrf.mxu0
    %v104 = vadd.f32 0.0, %v103
    %105 = vmatmul.f32.gmra.mxu0 %v81
    %v106 = vpop.f32.mrf.mxu0
    %v107 = vadd.f32 0.0, %v106
    %108 = vmatmul.f32.gmra.mxu0 %v84
    %v109 = vpop.f32.mrf.mxu0
    %v110 = vadd.f32 0.0, %v109
    %111 = vdwg.mxu0
    %v112 = vld [vmem:[%s2] sm:$0xff]
    %v113 = vld [vmem:[%s2 + $0x8] sm:$0xff]
    %v114 = vld [vmem:[%s2 + $0x10] sm:$0xff]
    %v115 = vld [vmem:[%s2 + $0x18] sm:$0xff]
    %v116 = vld [vmem:[%s2 + $0x20] sm:$0xff]
    %v117 = vld [vmem:[%s2 + $0x28] sm:$0xff]
    %v118 = vld [vmem:[%s2 + $0x30] sm:$0xf]
    %v119 = vld [vmem:[%s2 + $0x38] sm:$0xf]
    %s120 = scalar_lea.vmem %s2, 64
    %v121 = vld [vmem:[%s120] sm:$0xff]
    %v122 = vld [vmem:[%s120 + $0x8] sm:$0xff]
    %v123 = vld [vmem:[%s120 + $0x10] sm:$0xff]
    %v124 = vld [vmem:[%s120 + $0x18] sm:$0xff]
    %v125 = vld [vmem:[%s120 + $0x20] sm:$0xff]
    %v126 = vld [vmem:[%s120 + $0x28] sm:$0xff]
    %v127 = vld [vmem:[%s120 + $0x30] sm:$0xf]
    %v128 = vld [vmem:[%s120 + $0x38] sm:$0xf]
    %vm129 = vcmask 228352
    %v131 = vsel %vm129, %v104, 0
    %v134 = vsel %vm129, %v107, 0
    %v137 = vsel %vm129, %v110, 0
    %vm139 = vcmask 1043456
    %v141 = vsel %vm139, %v127, 0
    %v144 = vsel %vm139, %v128, 0
    %146 = vmatpush.msra.mxu0 0.0
    %147 = vmatpush.msra.mxu0 0.0
    %148 = vmatpush.msra.mxu0 0.0
    %149 = vmatpush.msra.mxu0 0.0
    %150 = vmatpush.msra.mxu0 0.0
    %151 = vmatpush.msra.mxu0 0.0
    %152 = vmatpush.msra.mxu0 0.0
    %153 = vmatpush.msra.mxu0 0.0
    %154 = vmatpush.msra.mxu0 0.0
    %155 = vmatpush.msra.mxu0 0.0
    %156 = vmatpush.msra.mxu0 0.0
    %157 = vmatpush.msra.mxu0 0.0
    %158 = vmatpush.msra.mxu0 %v141
    %159 = vmatpush.msra.mxu0 %v125
    %160 = vmatpush.msra.mxu0 %v123
    %161 = vmatpush.msra.mxu0 %v121
    %162 = vmatmul.f32.gmra.mxu0 %v131
    %v163 = vpop.f32.mrf.mxu0
    %v164 = vadd.f32 0.0, %v163
    %165 = vmatmul.f32.gmra.mxu0 %v134
    %v166 = vpop.f32.mrf.mxu0
    %v167 = vadd.f32 0.0, %v166
    %168 = vmatmul.f32.gmra.mxu0 %v137
    %v169 = vpop.f32.mrf.mxu0
    %v170 = vadd.f32 0.0, %v169
    %171 = vdwg.mxu0
    %172 = vmatpush.msra.mxu0 0.0
    %173 = vmatpush.msra.mxu0 0.0
    %174 = vmatpush.msra.mxu0 0.0
    %175 = vmatpush.msra.mxu0 0.0
    %176 = vmatpush.msra.mxu0 0.0
    %177 = vmatpush.msra.mxu0 0.0
    %178 = vmatpush.msra.mxu0 0.0
    %179 = vmatpush.msra.mxu0 0.0
    %180 = vmatpush.msra.mxu0 0.0
    %181 = vmatpush.msra.mxu0 0.0
    %182 = vmatpush.msra.mxu0 0.0
    %183 = vmatpush.msra.mxu0 0.0
    %184 = vmatpush.msra.mxu0 %v144
    %185 = vmatpush.msra.mxu0 %v126
    %186 = vmatpush.msra.mxu0 %v124
    %187 = vmatpush.msra.mxu0 %v122
    %188 = vmatmul.f32.gmra.mxu0 %v131
    %v189 = vpop.f32.mrf.mxu0
    %v190 = vadd.f32 0.0, %v189
    %191 = vmatmul.f32.gmra.mxu0 %v134
    %v192 = vpop.f32.mrf.mxu0
    %v193 = vadd.f32 0.0, %v192
    %194 = vmatmul.f32.gmra.mxu0 %v137
    %v195 = vpop.f32.mrf.mxu0
    %v196 = vadd.f32 0.0, %v195
    %197 = vdwg.mxu0
    %v199 = vsel %vm139, %v118, 0
    %v202 = vsel %vm139, %v119, 0
    %204 = vmatpush.msra.mxu0 0.0
    %205 = vmatpush.msra.mxu0 0.0
    %206 = vmatpush.msra.mxu0 0.0
    %207 = vmatpush.msra.mxu0 0.0
    %208 = vmatpush.msra.mxu0 0.0
    %209 = vmatpush.msra.mxu0 0.0
    %210 = vmatpush.msra.mxu0 0.0
    %211 = vmatpush.msra.mxu0 0.0
    %212 = vmatpush.msra.mxu0 0.0
    %213 = vmatpush.msra.mxu0 0.0
    %214 = vmatpush.msra.mxu0 0.0
    %215 = vmatpush.msra.mxu0 0.0
    %216 = vmatpush.msra.mxu0 %v199
    %217 = vmatpush.msra.mxu0 %v116
    %218 = vmatpush.msra.mxu0 %v114
    %219 = vmatpush.msra.mxu0 %v112
    %220 = vmatmul.f32.gmra.mxu0 %v131
    %v221 = vpop.f32.mrf.mxu0
    %v222 = vadd.f32 %v164, %v221
    %223 = vmatmul.f32.gmra.mxu0 %v134
    %v224 = vpop.f32.mrf.mxu0
    %v225 = vadd.f32 %v167, %v224
    %226 = vmatmul.f32.gmra.mxu0 %v137
    %v227 = vpop.f32.mrf.mxu0
    %v228 = vadd.f32 %v170, %v227
    %229 = vdwg.mxu0
    %230 = vmatpush.msra.mxu0 0.0
    %231 = vmatpush.msra.mxu0 0.0
    %232 = vmatpush.msra.mxu0 0.0
    %233 = vmatpush.msra.mxu0 0.0
    %234 = vmatpush.msra.mxu0 0.0
    %235 = vmatpush.msra.mxu0 0.0
    %236 = vmatpush.msra.mxu0 0.0
    %237 = vmatpush.msra.mxu0 0.0
    %238 = vmatpush.msra.mxu0 0.0
    %239 = vmatpush.msra.mxu0 0.0
    %240 = vmatpush.msra.mxu0 0.0
    %241 = vmatpush.msra.mxu0 0.0
    %242 = vmatpush.msra.mxu0 %v202
    %243 = vmatpush.msra.mxu0 %v117
    %244 = vmatpush.msra.mxu0 %v115
    %245 = vmatpush.msra.mxu0 %v113
    %246 = vmatmul.f32.gmra.mxu0 %v131
    %v247 = vpop.f32.mrf.mxu0
    %v248 = vadd.f32 %v190, %v247
    %249 = vmatmul.f32.gmra.mxu0 %v134
    %v250 = vpop.f32.mrf.mxu0
    %v251 = vadd.f32 %v193, %v250
    %252 = vmatmul.f32.gmra.mxu0 %v137
    %v253 = vpop.f32.mrf.mxu0
    %v254 = vadd.f32 %v196, %v253
    %255 = vdwg.mxu0
    %s256 = scalar_lea.vmem %s2, 128
    %v257 = vld [vmem:[%s256] sm:$0xff]
    %v258 = vld [vmem:[%s256 + $0x8] sm:$0xff]
    %v259 = vld [vmem:[%s256 + $0x10] sm:$0xff]
    %v260 = vld [vmem:[%s256 + $0x18] sm:$0xff]
    %v261 = vld [vmem:[%s256 + $0x20] sm:$0xff]
    %v262 = vld [vmem:[%s256 + $0x28] sm:$0xff]
    %v263 = vld [vmem:[%s256 + $0x30] sm:$0xf]
    %v264 = vld [vmem:[%s256 + $0x38] sm:$0xf]
    %v266 = vsel %vm139, %v263, 0
    %v269 = vsel %vm139, %v264, 0
    %271 = vmatpush.msra.mxu0 0.0
    %272 = vmatpush.msra.mxu0 0.0
    %273 = vmatpush.msra.mxu0 0.0
    %274 = vmatpush.msra.mxu0 0.0
    %275 = vmatpush.msra.mxu0 0.0
    %276 = vmatpush.msra.mxu0 0.0
    %277 = vmatpush.msra.mxu0 0.0
    %278 = vmatpush.msra.mxu0 0.0
    %279 = vmatpush.msra.mxu0 0.0
    %280 = vmatpush.msra.mxu0 0.0
    %281 = vmatpush.msra.mxu0 0.0
    %282 = vmatpush.msra.mxu0 0.0
    %283 = vmatpush.msra.mxu0 %v266
    %284 = vmatpush.msra.mxu0 %v261
    %285 = vmatpush.msra.mxu0 %v259
    %286 = vmatpush.msra.mxu0 %v257
    %287 = vmatmul.f32.gmra.mxu0 %v131
    %v288 = vpop.f32.mrf.mxu0
    %v289 = vadd.f32 0.0, %v288
    %290 = vmatmul.f32.gmra.mxu0 %v134
    %v291 = vpop.f32.mrf.mxu0
    %v292 = vadd.f32 0.0, %v291
    %293 = vmatmul.f32.gmra.mxu0 %v137
    %v294 = vpop.f32.mrf.mxu0
    %v295 = vadd.f32 0.0, %v294
    %296 = vdwg.mxu0
    %297 = vmatpush.msra.mxu0 0.0
    %298 = vmatpush.msra.mxu0 0.0
    %299 = vmatpush.msra.mxu0 0.0
    %300 = vmatpush.msra.mxu0 0.0
    %301 = vmatpush.msra.mxu0 0.0
    %302 = vmatpush.msra.mxu0 0.0
    %303 = vmatpush.msra.mxu0 0.0
    %304 = vmatpush.msra.mxu0 0.0
    %305 = vmatpush.msra.mxu0 0.0
    %306 = vmatpush.msra.mxu0 0.0
    %307 = vmatpush.msra.mxu0 0.0
    %308 = vmatpush.msra.mxu0 0.0
    %309 = vmatpush.msra.mxu0 %v269
    %310 = vmatpush.msra.mxu0 %v262
    %311 = vmatpush.msra.mxu0 %v260
    %312 = vmatpush.msra.mxu0 %v258
    %313 = vmatmul.f32.gmra.mxu0 %v131
    %v314 = vpop.f32.mrf.mxu0
    %v315 = vadd.f32 0.0, %v314
    %316 = vmatmul.f32.gmra.mxu0 %v134
    %v317 = vpop.f32.mrf.mxu0
    %v318 = vadd.f32 0.0, %v317
    %319 = vmatmul.f32.gmra.mxu0 %v137
    %v320 = vpop.f32.mrf.mxu0
    %v321 = vadd.f32 0.0, %v320
    %322 = vdwg.mxu0
    %v323 = vadd.f32 %v222, %v289
    %v324 = vadd.f32 %v248, %v315
    %v325 = vadd.f32 %v225, %v292
    %v326 = vadd.f32 %v251, %v318
    %v327 = vadd.f32 %v228, %v295
    %v328 = vadd.f32 %v254, %v321
    %s329 = scalar_lea.vmem %s1, 24
    %v330 = vld [vmem:[%s329] sm:$0xff]
    %v331 = vld [vmem:[%s329 + $0x8] sm:$0xff]
    %v332 = vld [vmem:[%s329 + $0x10] sm:$0xf]
    %v334 = vsel %vm76, %v330, 0
    %v337 = vsel %vm76, %v331, 0
    %v340 = vsel %vm76, %v332, 0
    %342 = vmatpush.msra.mxu0 0.0
    %343 = vmatpush.msra.mxu0 0.0
    %344 = vmatpush.msra.mxu0 0.0
    %345 = vmatpush.msra.mxu0 0.0
    %346 = vmatpush.msra.mxu0 0.0
    %347 = vmatpush.msra.mxu0 0.0
    %348 = vmatpush.msra.mxu0 0.0
    %349 = vmatpush.msra.mxu0 0.0
    %350 = vmatpush.msra.mxu0 0.0
    %351 = vmatpush.msra.mxu0 %v72
    %352 = vmatpush.msra.mxu0 %v71
    %353 = vmatpush.msra.mxu0 %v70
    %354 = vmatpush.msra.mxu0 %v69
    %355 = vmatpush.msra.mxu0 %v68
    %356 = vmatpush.msra.mxu0 %v67
    %357 = vmatpush.msra.mxu0 %v66
    %358 = vmatmul.f32.gmra.mxu0 %v334
    %v359 = vpop.f32.mrf.mxu0
    %v360 = vadd.f32 0.0, %v359
    %361 = vmatmul.f32.gmra.mxu0 %v337
    %v362 = vpop.f32.mrf.mxu0
    %v363 = vadd.f32 0.0, %v362
    %364 = vmatmul.f32.gmra.mxu0 %v340
    %v365 = vpop.f32.mrf.mxu0
    %v366 = vadd.f32 0.0, %v365
    %367 = vdwg.mxu0
    %s368 = scalar_lea.vmem %s2, 192
    %v369 = vld [vmem:[%s368] sm:$0xff]
    %v370 = vld [vmem:[%s368 + $0x8] sm:$0xff]
    %v371 = vld [vmem:[%s368 + $0x10] sm:$0xff]
    %v372 = vld [vmem:[%s368 + $0x18] sm:$0xff]
    %v373 = vld [vmem:[%s368 + $0x20] sm:$0xff]
    %v374 = vld [vmem:[%s368 + $0x28] sm:$0xff]
    %v375 = vld [vmem:[%s368 + $0x30] sm:$0xf]
    %v376 = vld [vmem:[%s368 + $0x38] sm:$0xf]
    %v378 = vsel %vm129, %v360, 0
    %v381 = vsel %vm129, %v363, 0
    %v384 = vsel %vm129, %v366, 0
    %v387 = vsel %vm139, %v375, 0
    %v390 = vsel %vm139, %v376, 0
    %392 = vmatpush.msra.mxu0 0.0
    %393 = vmatpush.msra.mxu0 0.0
    %394 = vmatpush.msra.mxu0 0.0
    %395 = vmatpush.msra.mxu0 0.0
    %396 = vmatpush.msra.mxu0 0.0
    %397 = vmatpush.msra.mxu0 0.0
    %398 = vmatpush.msra.mxu0 0.0
    %399 = vmatpush.msra.mxu0 0.0
    %400 = vmatpush.msra.mxu0 0.0
    %401 = vmatpush.msra.mxu0 0.0
    %402 = vmatpush.msra.mxu0 0.0
    %403 = vmatpush.msra.mxu0 0.0
    %404 = vmatpush.msra.mxu0 %v387
    %405 = vmatpush.msra.mxu0 %v373
    %406 = vmatpush.msra.mxu0 %v371
    %407 = vmatpush.msra.mxu0 %v369
    %408 = vmatmul.f32.gmra.mxu0 %v378
    %v409 = vpop.f32.mrf.mxu0
    %v410 = vadd.f32 0.0, %v409
    %411 = vmatmul.f32.gmra.mxu0 %v381
    %v412 = vpop.f32.mrf.mxu0
    %v413 = vadd.f32 0.0, %v412
    %414 = vmatmul.f32.gmra.mxu0 %v384
    %v415 = vpop.f32.mrf.mxu0
    %v416 = vadd.f32 0.0, %v415
    %417 = vdwg.mxu0
    %418 = vmatpush.msra.mxu0 0.0
    %419 = vmatpush.msra.mxu0 0.0
    %420 = vmatpush.msra.mxu0 0.0
    %421 = vmatpush.msra.mxu0 0.0
    %422 = vmatpush.msra.mxu0 0.0
    %423 = vmatpush.msra.mxu0 0.0
    %424 = vmatpush.msra.mxu0 0.0
    %425 = vmatpush.msra.mxu0 0.0
    %426 = vmatpush.msra.mxu0 0.0
    %427 = vmatpush.msra.mxu0 0.0
    %428 = vmatpush.msra.mxu0 0.0
    %429 = vmatpush.msra.mxu0 0.0
    %430 = vmatpush.msra.mxu0 %v390
    %431 = vmatpush.msra.mxu0 %v374
    %432 = vmatpush.msra.mxu0 %v372
    %433 = vmatpush.msra.mxu0 %v370
    %434 = vmatmul.f32.gmra.mxu0 %v378
    %v435 = vpop.f32.mrf.mxu0
    %v436 = vadd.f32 0.0, %v435
    %437 = vmatmul.f32.gmra.mxu0 %v381
    %v438 = vpop.f32.mrf.mxu0
    %v439 = vadd.f32 0.0, %v438
    %440 = vmatmul.f32.gmra.mxu0 %v384
    %v441 = vpop.f32.mrf.mxu0
    %v442 = vadd.f32 0.0, %v441
    %443 = vdwg.mxu0
    %v444 = vadd.f32 %v323, %v410
    %v445 = vadd.f32 %v324, %v436
    %v446 = vadd.f32 %v325, %v413
    %v447 = vadd.f32 %v326, %v439
    %v448 = vadd.f32 %v327, %v416
    %v449 = vadd.f32 %v328, %v442
    %s450 = scalar_lea.vmem %s2, 256
    %v451 = vld [vmem:[%s450] sm:$0xff]
    %v452 = vld [vmem:[%s450 + $0x8] sm:$0xff]
    %v453 = vld [vmem:[%s450 + $0x10] sm:$0xff]
    %v454 = vld [vmem:[%s450 + $0x18] sm:$0xff]
    %v455 = vld [vmem:[%s450 + $0x20] sm:$0xff]
    %v456 = vld [vmem:[%s450 + $0x28] sm:$0xff]
    %v457 = vld [vmem:[%s450 + $0x30] sm:$0xf]
    %v458 = vld [vmem:[%s450 + $0x38] sm:$0xf]
    %v460 = vsel %vm139, %v457, 0
    %v463 = vsel %vm139, %v458, 0
    %465 = vmatpush.msra.mxu0 0.0
    %466 = vmatpush.msra.mxu0 0.0
    %467 = vmatpush.msra.mxu0 0.0
    %468 = vmatpush.msra.mxu0 0.0
    %469 = vmatpush.msra.mxu0 0.0
    %470 = vmatpush.msra.mxu0 0.0
    %471 = vmatpush.msra.mxu0 0.0
    %472 = vmatpush.msra.mxu0 0.0
    %473 = vmatpush.msra.mxu0 0.0
    %474 = vmatpush.msra.mxu0 0.0
    %475 = vmatpush.msra.mxu0 0.0
    %476 = vmatpush.msra.mxu0 0.0
    %477 = vmatpush.msra.mxu0 %v460
    %478 = vmatpush.msra.mxu0 %v455
    %479 = vmatpush.msra.mxu0 %v453
    %480 = vmatpush.msra.mxu0 %v451
    %481 = vmatmul.f32.gmra.mxu0 %v378
    %v482 = vpop.f32.mrf.mxu0
    %v483 = vadd.f32 0.0, %v482
    %484 = vmatmul.f32.gmra.mxu0 %v381
    %v485 = vpop.f32.mrf.mxu0
    %v486 = vadd.f32 0.0, %v485
    %487 = vmatmul.f32.gmra.mxu0 %v384
    %v488 = vpop.f32.mrf.mxu0
    %v489 = vadd.f32 0.0, %v488
    %490 = vdwg.mxu0
    %491 = vmatpush.msra.mxu0 0.0
    %492 = vmatpush.msra.mxu0 0.0
    %493 = vmatpush.msra.mxu0 0.0
    %494 = vmatpush.msra.mxu0 0.0
    %495 = vmatpush.msra.mxu0 0.0
    %496 = vmatpush.msra.mxu0 0.0
    %497 = vmatpush.msra.mxu0 0.0
    %498 = vmatpush.msra.mxu0 0.0
    %499 = vmatpush.msra.mxu0 0.0
    %500 = vmatpush.msra.mxu0 0.0
    %501 = vmatpush.msra.mxu0 0.0
    %502 = vmatpush.msra.mxu0 0.0
    %503 = vmatpush.msra.mxu0 %v463
    %504 = vmatpush.msra.mxu0 %v456
    %505 = vmatpush.msra.mxu0 %v454
    %506 = vmatpush.msra.mxu0 %v452
    %507 = vmatmul.f32.gmra.mxu0 %v378
    %v508 = vpop.f32.mrf.mxu0
    %v509 = vadd.f32 0.0, %v508
    %510 = vmatmul.f32.gmra.mxu0 %v381
    %v511 = vpop.f32.mrf.mxu0
    %v512 = vadd.f32 0.0, %v511
    %513 = vmatmul.f32.gmra.mxu0 %v384
    %v514 = vpop.f32.mrf.mxu0
    %v515 = vadd.f32 0.0, %v514
    %516 = vdwg.mxu0
    %v517 = vadd.f32 %v444, %v483
    %v518 = vadd.f32 %v445, %v509
    %v519 = vadd.f32 %v446, %v486
    %v520 = vadd.f32 %v447, %v512
    %v521 = vadd.f32 %v448, %v489
    %v522 = vadd.f32 %v449, %v515
    %s523 = scalar_lea.vmem %s2, 320
    %v524 = vld [vmem:[%s523] sm:$0xff]
    %v525 = vld [vmem:[%s523 + $0x8] sm:$0xff]
    %v526 = vld [vmem:[%s523 + $0x10] sm:$0xff]
    %v527 = vld [vmem:[%s523 + $0x18] sm:$0xff]
    %v528 = vld [vmem:[%s523 + $0x20] sm:$0xff]
    %v529 = vld [vmem:[%s523 + $0x28] sm:$0xff]
    %v530 = vld [vmem:[%s523 + $0x30] sm:$0xf]
    %v531 = vld [vmem:[%s523 + $0x38] sm:$0xf]
    %v533 = vsel %vm139, %v530, 0
    %v536 = vsel %vm139, %v531, 0
    %538 = vmatpush.msra.mxu0 0.0
    %539 = vmatpush.msra.mxu0 0.0
    %540 = vmatpush.msra.mxu0 0.0
    %541 = vmatpush.msra.mxu0 0.0
    %542 = vmatpush.msra.mxu0 0.0
    %543 = vmatpush.msra.mxu0 0.0
    %544 = vmatpush.msra.mxu0 0.0
    %545 = vmatpush.msra.mxu0 0.0
    %546 = vmatpush.msra.mxu0 0.0
    %547 = vmatpush.msra.mxu0 0.0
    %548 = vmatpush.msra.mxu0 0.0
    %549 = vmatpush.msra.mxu0 0.0
    %550 = vmatpush.msra.mxu0 %v533
    %551 = vmatpush.msra.mxu0 %v528
    %552 = vmatpush.msra.mxu0 %v526
    %553 = vmatpush.msra.mxu0 %v524
    %554 = vmatmul.f32.gmra.mxu0 %v378
    %v555 = vpop.f32.mrf.mxu0
    %v556 = vadd.f32 0.0, %v555
    %557 = vmatmul.f32.gmra.mxu0 %v381
    %v558 = vpop.f32.mrf.mxu0
    %v559 = vadd.f32 0.0, %v558
    %560 = vmatmul.f32.gmra.mxu0 %v384
    %v561 = vpop.f32.mrf.mxu0
    %v562 = vadd.f32 0.0, %v561
    %563 = vdwg.mxu0
    %564 = vmatpush.msra.mxu0 0.0
    %565 = vmatpush.msra.mxu0 0.0
    %566 = vmatpush.msra.mxu0 0.0
    %567 = vmatpush.msra.mxu0 0.0
    %568 = vmatpush.msra.mxu0 0.0
    %569 = vmatpush.msra.mxu0 0.0
    %570 = vmatpush.msra.mxu0 0.0
    %571 = vmatpush.msra.mxu0 0.0
    %572 = vmatpush.msra.mxu0 0.0
    %573 = vmatpush.msra.mxu0 0.0
    %574 = vmatpush.msra.mxu0 0.0
    %575 = vmatpush.msra.mxu0 0.0
    %576 = vmatpush.msra.mxu0 %v536
    %577 = vmatpush.msra.mxu0 %v529
    %578 = vmatpush.msra.mxu0 %v527
    %579 = vmatpush.msra.mxu0 %v525
    %580 = vmatmul.f32.gmra.mxu0 %v378
    %v581 = vpop.f32.mrf.mxu0
    %v582 = vadd.f32 0.0, %v581
    %583 = vmatmul.f32.gmra.mxu0 %v381
    %v584 = vpop.f32.mrf.mxu0
    %v585 = vadd.f32 0.0, %v584
    %586 = vmatmul.f32.gmra.mxu0 %v384
    %v587 = vpop.f32.mrf.mxu0
    %v588 = vadd.f32 0.0, %v587
    %589 = vdwg.mxu0
    %v590 = vadd.f32 %v517, %v556
    %v591 = vadd.f32 %v518, %v582
    %v592 = vadd.f32 %v519, %v559
    %v593 = vadd.f32 %v520, %v585
    %v594 = vadd.f32 %v521, %v562
    %v595 = vadd.f32 %v522, %v588
    %s596 = scalar_lea.vmem %s1, 48
    %v597 = vld [vmem:[%s596] sm:$0xff]
    %v598 = vld [vmem:[%s596 + $0x8] sm:$0xff]
    %v599 = vld [vmem:[%s596 + $0x10] sm:$0xf]
    %v601 = vsel %vm76, %v597, 0
    %v604 = vsel %vm76, %v598, 0
    %v607 = vsel %vm76, %v599, 0
    %609 = vmatpush.msra.mxu0 0.0
    %610 = vmatpush.msra.mxu0 0.0
    %611 = vmatpush.msra.mxu0 0.0
    %612 = vmatpush.msra.mxu0 0.0
    %613 = vmatpush.msra.mxu0 0.0
    %614 = vmatpush.msra.mxu0 0.0
    %615 = vmatpush.msra.mxu0 0.0
    %616 = vmatpush.msra.mxu0 0.0
    %617 = vmatpush.msra.mxu0 0.0
    %618 = vmatpush.msra.mxu0 %v72
    %619 = vmatpush.msra.mxu0 %v71
    %620 = vmatpush.msra.mxu0 %v70
    %621 = vmatpush.msra.mxu0 %v69
    %622 = vmatpush.msra.mxu0 %v68
    %623 = vmatpush.msra.mxu0 %v67
    %624 = vmatpush.msra.mxu0 %v66
    %625 = vmatmul.f32.gmra.mxu0 %v601
    %v626 = vpop.f32.mrf.mxu0
    %v627 = vadd.f32 0.0, %v626
    %628 = vmatmul.f32.gmra.mxu0 %v604
    %v629 = vpop.f32.mrf.mxu0
    %v630 = vadd.f32 0.0, %v629
    %631 = vmatmul.f32.gmra.mxu0 %v607
    %v632 = vpop.f32.mrf.mxu0
    %v633 = vadd.f32 0.0, %v632
    %634 = vdwg.mxu0
    %s635 = scalar_lea.vmem %s2, 384
    %v636 = vld [vmem:[%s635] sm:$0xff]
    %v637 = vld [vmem:[%s635 + $0x8] sm:$0xff]
    %v638 = vld [vmem:[%s635 + $0x10] sm:$0xff]
    %v639 = vld [vmem:[%s635 + $0x18] sm:$0xff]
    %v640 = vld [vmem:[%s635 + $0x20] sm:$0xff]
    %v641 = vld [vmem:[%s635 + $0x28] sm:$0xff]
    %v642 = vld [vmem:[%s635 + $0x30] sm:$0xf]
    %v643 = vld [vmem:[%s635 + $0x38] sm:$0xf]
    %v645 = vsel %vm129, %v627, 0
    %v648 = vsel %vm129, %v630, 0
    %v651 = vsel %vm129, %v633, 0
    %v654 = vsel %vm139, %v642, 0
    %v657 = vsel %vm139, %v643, 0
    %659 = vmatpush.msra.mxu0 0.0
    %660 = vmatpush.msra.mxu0 0.0
    %661 = vmatpush.msra.mxu0 0.0
    %662 = vmatpush.msra.mxu0 0.0
    %663 = vmatpush.msra.mxu0 0.0
    %664 = vmatpush.msra.mxu0 0.0
    %665 = vmatpush.msra.mxu0 0.0
    %666 = vmatpush.msra.mxu0 0.0
    %667 = vmatpush.msra.mxu0 0.0
    %668 = vmatpush.msra.mxu0 0.0
    %669 = vmatpush.msra.mxu0 0.0
    %670 = vmatpush.msra.mxu0 0.0
    %671 = vmatpush.msra.mxu0 %v654
    %672 = vmatpush.msra.mxu0 %v640
    %673 = vmatpush.msra.mxu0 %v638
    %674 = vmatpush.msra.mxu0 %v636
    %675 = vmatmul.f32.gmra.mxu0 %v645
    %v676 = vpop.f32.mrf.mxu0
    %v677 = vadd.f32 0.0, %v676
    %678 = vmatmul.f32.gmra.mxu0 %v648
    %v679 = vpop.f32.mrf.mxu0
    %v680 = vadd.f32 0.0, %v679
    %681 = vmatmul.f32.gmra.mxu0 %v651
    %v682 = vpop.f32.mrf.mxu0
    %v683 = vadd.f32 0.0, %v682
    %684 = vdwg.mxu0
    %685 = vmatpush.msra.mxu0 0.0
    %686 = vmatpush.msra.mxu0 0.0
    %687 = vmatpush.msra.mxu0 0.0
    %688 = vmatpush.msra.mxu0 0.0
    %689 = vmatpush.msra.mxu0 0.0
    %690 = vmatpush.msra.mxu0 0.0
    %691 = vmatpush.msra.mxu0 0.0
    %692 = vmatpush.msra.mxu0 0.0
    %693 = vmatpush.msra.mxu0 0.0
    %694 = vmatpush.msra.mxu0 0.0
    %695 = vmatpush.msra.mxu0 0.0
    %696 = vmatpush.msra.mxu0 0.0
    %697 = vmatpush.msra.mxu0 %v657
    %698 = vmatpush.msra.mxu0 %v641
    %699 = vmatpush.msra.mxu0 %v639
    %700 = vmatpush.msra.mxu0 %v637
    %701 = vmatmul.f32.gmra.mxu0 %v645
    %v702 = vpop.f32.mrf.mxu0
    %v703 = vadd.f32 0.0, %v702
    %704 = vmatmul.f32.gmra.mxu0 %v648
    %v705 = vpop.f32.mrf.mxu0
    %v706 = vadd.f32 0.0, %v705
    %707 = vmatmul.f32.gmra.mxu0 %v651
    %v708 = vpop.f32.mrf.mxu0
    %v709 = vadd.f32 0.0, %v708
    %710 = vdwg.mxu0
    %v711 = vadd.f32 %v590, %v677
    %v712 = vadd.f32 %v591, %v703
    %v713 = vadd.f32 %v592, %v680
    %v714 = vadd.f32 %v593, %v706
    %v715 = vadd.f32 %v594, %v683
    %v716 = vadd.f32 %v595, %v709
    %s717 = scalar_lea.vmem %s2, 448
    %v718 = vld [vmem:[%s717] sm:$0xff]
    %v719 = vld [vmem:[%s717 + $0x8] sm:$0xff]
    %v720 = vld [vmem:[%s717 + $0x10] sm:$0xff]
    %v721 = vld [vmem:[%s717 + $0x18] sm:$0xff]
    %v722 = vld [vmem:[%s717 + $0x20] sm:$0xff]
    %v723 = vld [vmem:[%s717 + $0x28] sm:$0xff]
    %v724 = vld [vmem:[%s717 + $0x30] sm:$0xf]
    %v725 = vld [vmem:[%s717 + $0x38] sm:$0xf]
    %v727 = vsel %vm139, %v724, 0
    %v730 = vsel %vm139, %v725, 0
    %732 = vmatpush.msra.mxu0 0.0
    %733 = vmatpush.msra.mxu0 0.0
    %734 = vmatpush.msra.mxu0 0.0
    %735 = vmatpush.msra.mxu0 0.0
    %736 = vmatpush.msra.mxu0 0.0
    %737 = vmatpush.msra.mxu0 0.0
    %738 = vmatpush.msra.mxu0 0.0
    %739 = vmatpush.msra.mxu0 0.0
    %740 = vmatpush.msra.mxu0 0.0
    %741 = vmatpush.msra.mxu0 0.0
    %742 = vmatpush.msra.mxu0 0.0
    %743 = vmatpush.msra.mxu0 0.0
    %744 = vmatpush.msra.mxu0 %v727
    %745 = vmatpush.msra.mxu0 %v722
    %746 = vmatpush.msra.mxu0 %v720
    %747 = vmatpush.msra.mxu0 %v718
    %748 = vmatmul.f32.gmra.mxu0 %v645
    %v749 = vpop.f32.mrf.mxu0
    %v750 = vadd.f32 0.0, %v749
    %751 = vmatmul.f32.gmra.mxu0 %v648
    %v752 = vpop.f32.mrf.mxu0
    %v753 = vadd.f32 0.0, %v752
    %754 = vmatmul.f32.gmra.mxu0 %v651
    %v755 = vpop.f32.mrf.mxu0
    %v756 = vadd.f32 0.0, %v755
    %757 = vdwg.mxu0
    %758 = vmatpush.msra.mxu0 0.0
    %759 = vmatpush.msra.mxu0 0.0
    %760 = vmatpush.msra.mxu0 0.0
    %761 = vmatpush.msra.mxu0 0.0
    %762 = vmatpush.msra.mxu0 0.0
    %763 = vmatpush.msra.mxu0 0.0
    %764 = vmatpush.msra.mxu0 0.0
    %765 = vmatpush.msra.mxu0 0.0
    %766 = vmatpush.msra.mxu0 0.0
    %767 = vmatpush.msra.mxu0 0.0
    %768 = vmatpush.msra.mxu0 0.0
    %769 = vmatpush.msra.mxu0 0.0
    %770 = vmatpush.msra.mxu0 %v730
    %771 = vmatpush.msra.mxu0 %v723
    %772 = vmatpush.msra.mxu0 %v721
    %773 = vmatpush.msra.mxu0 %v719
    %774 = vmatmul.f32.gmra.mxu0 %v645
    %v775 = vpop.f32.mrf.mxu0
    %v776 = vadd.f32 0.0, %v775
    %777 = vmatmul.f32.gmra.mxu0 %v648
    %v778 = vpop.f32.mrf.mxu0
    %v779 = vadd.f32 0.0, %v778
    %780 = vmatmul.f32.gmra.mxu0 %v651
    %v781 = vpop.f32.mrf.mxu0
    %v782 = vadd.f32 0.0, %v781
    %783 = vdwg.mxu0
    %v784 = vadd.f32 %v711, %v750
    %v785 = vadd.f32 %v712, %v776
    %v786 = vadd.f32 %v713, %v753
    %v787 = vadd.f32 %v714, %v779
    %v788 = vadd.f32 %v715, %v756
    %v789 = vadd.f32 %v716, %v782
    %s790 = scalar_lea.vmem %s2, 512
    %v791 = vld [vmem:[%s790] sm:$0xff]
    %v792 = vld [vmem:[%s790 + $0x8] sm:$0xff]
    %v793 = vld [vmem:[%s790 + $0x10] sm:$0xff]
    %v794 = vld [vmem:[%s790 + $0x18] sm:$0xff]
    %v795 = vld [vmem:[%s790 + $0x20] sm:$0xff]
    %v796 = vld [vmem:[%s790 + $0x28] sm:$0xff]
    %v797 = vld [vmem:[%s790 + $0x30] sm:$0xf]
    %v798 = vld [vmem:[%s790 + $0x38] sm:$0xf]
    %v800 = vsel %vm139, %v797, 0
    %v803 = vsel %vm139, %v798, 0
    %805 = vmatpush.msra.mxu0 0.0
    %806 = vmatpush.msra.mxu0 0.0
    %807 = vmatpush.msra.mxu0 0.0
    %808 = vmatpush.msra.mxu0 0.0
    %809 = vmatpush.msra.mxu0 0.0
    %810 = vmatpush.msra.mxu0 0.0
    %811 = vmatpush.msra.mxu0 0.0
    %812 = vmatpush.msra.mxu0 0.0
    %813 = vmatpush.msra.mxu0 0.0
    %814 = vmatpush.msra.mxu0 0.0
    %815 = vmatpush.msra.mxu0 0.0
    %816 = vmatpush.msra.mxu0 0.0
    %817 = vmatpush.msra.mxu0 %v800
    %818 = vmatpush.msra.mxu0 %v795
    %819 = vmatpush.msra.mxu0 %v793
    %820 = vmatpush.msra.mxu0 %v791
    %821 = vmatmul.f32.gmra.mxu0 %v645
    %v822 = vpop.f32.mrf.mxu0
    %v823 = vadd.f32 0.0, %v822
    %824 = vmatmul.f32.gmra.mxu0 %v648
    %v825 = vpop.f32.mrf.mxu0
    %v826 = vadd.f32 0.0, %v825
    %827 = vmatmul.f32.gmra.mxu0 %v651
    %v828 = vpop.f32.mrf.mxu0
    %v829 = vadd.f32 0.0, %v828
    %830 = vdwg.mxu0
    %831 = vmatpush.msra.mxu0 0.0
    %832 = vmatpush.msra.mxu0 0.0
    %833 = vmatpush.msra.mxu0 0.0
    %834 = vmatpush.msra.mxu0 0.0
    %835 = vmatpush.msra.mxu0 0.0
    %836 = vmatpush.msra.mxu0 0.0
    %837 = vmatpush.msra.mxu0 0.0
    %838 = vmatpush.msra.mxu0 0.0
    %839 = vmatpush.msra.mxu0 0.0
    %840 = vmatpush.msra.mxu0 0.0
    %841 = vmatpush.msra.mxu0 0.0
    %842 = vmatpush.msra.mxu0 0.0
    %843 = vmatpush.msra.mxu0 %v803
    %844 = vmatpush.msra.mxu0 %v796
    %845 = vmatpush.msra.mxu0 %v794
    %846 = vmatpush.msra.mxu0 %v792
    %847 = vmatmul.f32.gmra.mxu0 %v645
    %v848 = vpop.f32.mrf.mxu0
    %v849 = vadd.f32 0.0, %v848
    %850 = vmatmul.f32.gmra.mxu0 %v648
    %v851 = vpop.f32.mrf.mxu0
    %v852 = vadd.f32 0.0, %v851
    %853 = vmatmul.f32.gmra.mxu0 %v651
    %v854 = vpop.f32.mrf.mxu0
    %v855 = vadd.f32 0.0, %v854
    %856 = vdwg.mxu0
    %v857 = vadd.f32 %v784, %v823
    %v858 = vadd.f32 %v785, %v849
    %v859 = vadd.f32 %v786, %v826
    %v860 = vadd.f32 %v787, %v852
    %v861 = vadd.f32 %v788, %v829
    %v862 = vadd.f32 %v789, %v855
    %v863 = vld [vmem:[%s3] sm:$0x3]
    %v865 = vperm.slane %v863, 0
    %v866 = vperm.slane %v863, 1
    %v869 = vadd.f32 %v857, %v865
    %v870 = vadd.f32 %v858, %v866
    %v871 = vadd.f32 %v859, %v865
    %v872 = vadd.f32 %v860, %v866
    %v873 = vadd.f32 %v861, %v865
    %v874 = vadd.f32 %v862, %v866
    %vm875 = vcmp.gt.f32.partialorder %v869, 20.0
    %vm876 = vcmp.gt.f32.partialorder %v870, 20.0
    %vm877 = vcmp.gt.f32.partialorder %v871, 20.0
    %vm878 = vcmp.gt.f32.partialorder %v872, 20.0
    %vm879 = vcmp.gt.f32.partialorder %v873, 20.0
    %vm880 = vcmp.gt.f32.partialorder %v874, 20.0
    %v881 = vmin.f32 %v869, 20.0
    %v882 = vmin.f32 %v870, 20.0
    %v883 = vmin.f32 %v871, 20.0
    %v884 = vmin.f32 %v872, 20.0
    %v885 = vmin.f32 %v873, 20.0
    %v886 = vmin.f32 %v874, 20.0
    %v887 = vmul.f32 %v881, 1.442695
    %v888 = vpow.pop %v887
    %v889 = vmul.f32 %v882, 1.442695
    %v890 = vpow.pop %v889
    %v891 = vmul.f32 %v883, 1.442695
    %v892 = vpow.pop %v891
    %v893 = vmul.f32 %v884, 1.442695
    %v894 = vpow.pop %v893
    %v895 = vmul.f32 %v885, 1.442695
    %v896 = vpow.pop %v895
    %v897 = vmul.f32 %v886, 1.442695
    %v898 = vpow.pop %v897
    %v899 = vadd.f32 %v888, 1.0
    %v900 = vadd.f32 %v890, 1.0
    %v901 = vadd.f32 %v892, 1.0
    %v902 = vadd.f32 %v894, 1.0
    %v903 = vadd.f32 %v896, 1.0
    %v904 = vadd.f32 %v898, 1.0
    %v905 = vlog2.pop %v899
    %v906 = vmul.f32 %v905, 0.6931472
    %v907 = vlog2.pop %v900
    %v908 = vmul.f32 %v907, 0.6931472
    %v909 = vlog2.pop %v901
    %v910 = vmul.f32 %v909, 0.6931472
    %v911 = vlog2.pop %v902
    %v912 = vmul.f32 %v911, 0.6931472
    %v913 = vlog2.pop %v903
    %v914 = vmul.f32 %v913, 0.6931472
    %v915 = vlog2.pop %v904
    %v916 = vmul.f32 %v915, 0.6931472
    %v917 = vsel %vm875, %v869, %v906
    %v918 = vsel %vm876, %v870, %v908
    %v919 = vsel %vm877, %v871, %v910
    %v920 = vsel %vm878, %v872, %v912
    %v921 = vsel %vm879, %v873, %v914
    %v922 = vsel %vm880, %v874, %v916
    %v923 = vld [vmem:[%s4] sm:$0xff]
    %v924 = vld [vmem:[%s4 + $0x8] sm:$0x3]
    %vm925 = vcmask 162816
    %v927 = vsel %vm925, %v923, 0
    %v930 = vsel %vm925, %v924, 0
    %v933 = vsel %vm139, %v921, 0
    %v936 = vsel %vm139, %v922, 0
    %938 = vmatpush.msra.mxu0 0.0
    %939 = vmatpush.msra.mxu0 0.0
    %940 = vmatpush.msra.mxu0 0.0
    %941 = vmatpush.msra.mxu0 0.0
    %942 = vmatpush.msra.mxu0 0.0
    %943 = vmatpush.msra.mxu0 0.0
    %944 = vmatpush.msra.mxu0 0.0
    %945 = vmatpush.msra.mxu0 0.0
    %946 = vmatpush.msra.mxu0 0.0
    %947 = vmatpush.msra.mxu0 0.0
    %948 = vmatpush.msra.mxu0 0.0
    %949 = vmatpush.msra.mxu0 0.0
    %950 = vmatpush.msra.mxu0 0.0
    %951 = vmatpush.msra.mxu0 %v933
    %952 = vmatpush.msra.mxu0 %v919
    %953 = vmatpush.msra.mxu0 %v917
    %954 = vmatmul.f32.gmra.mxu0 %v927
    %v955 = vpop.f32.mrf.mxu0
    %v956 = vadd.f32 0.0, %v955
    %957 = vmatmul.f32.gmra.mxu0 %v930
    %v958 = vpop.f32.mrf.mxu0
    %v959 = vadd.f32 0.0, %v958
    %960 = vdwg.mxu0
    %961 = vmatpush.msra.mxu0 0.0
    %962 = vmatpush.msra.mxu0 0.0
    %963 = vmatpush.msra.mxu0 0.0
    %964 = vmatpush.msra.mxu0 0.0
    %965 = vmatpush.msra.mxu0 0.0
    %966 = vmatpush.msra.mxu0 0.0
    %967 = vmatpush.msra.mxu0 0.0
    %968 = vmatpush.msra.mxu0 0.0
    %969 = vmatpush.msra.mxu0 0.0
    %970 = vmatpush.msra.mxu0 0.0
    %971 = vmatpush.msra.mxu0 0.0
    %972 = vmatpush.msra.mxu0 0.0
    %973 = vmatpush.msra.mxu0 0.0
    %974 = vmatpush.msra.mxu0 %v936
    %975 = vmatpush.msra.mxu0 %v920
    %976 = vmatpush.msra.mxu0 %v918
    %977 = vmatmul.f32.gmra.mxu0 %v927
    %v978 = vpop.f32.mrf.mxu0
    %v979 = vadd.f32 0.0, %v978
    %980 = vmatmul.f32.gmra.mxu0 %v930
    %v981 = vpop.f32.mrf.mxu0
    %v982 = vadd.f32 0.0, %v981
    %983 = vdwg.mxu0
    %v984 = vld [vmem:[%s5] sm:$0xff]
    %v985 = vld [vmem:[%s5 + $0x8] sm:$0xff]
    %v986 = vld [vmem:[%s5 + $0x10] sm:$0xff]
    %v987 = vld [vmem:[%s5 + $0x18] sm:$0xff]
    %v988 = vld [vmem:[%s5 + $0x20] sm:$0xff]
    %v989 = vld [vmem:[%s5 + $0x28] sm:$0xff]
    %v990 = vld [vmem:[%s5 + $0x30] sm:$0xff]
    %v991 = vld [vmem:[%s5 + $0x38] sm:$0xff]
    %v992 = vld [vmem:[%s5 + $0x40] sm:$0xff]
    %v993 = vld [vmem:[%s5 + $0x48] sm:$0xff]
    %v994 = vld [vmem:[%s5 + $0x50] sm:$0xff]
    %v995 = vld [vmem:[%s5 + $0x58] sm:$0xff]
    %v996 = vld [vmem:[%s5 + $0x60] sm:$0xff]
    %v997 = vld [vmem:[%s5 + $0x68] sm:$0xff]
    %v998 = vld [vmem:[%s5 + $0x70] sm:$0xff]
    %v999 = vld [vmem:[%s5 + $0x78] sm:$0xff]
    %v1000 = vld [vmem:[%s5 + $0x80] sm:$0xff]
    %v1001 = vld [vmem:[%s5 + $0x88] sm:$0xff]
    %v1002 = vld [vmem:[%s5 + $0x90] sm:$0xff]
    %v1003 = vld [vmem:[%s5 + $0x98] sm:$0xff]
    %vm1004 = vcmask 261120
    %v1006 = vsel %vm1004, %v979, 0
    %v1009 = vsel %vm1004, %v982, 0
    %1011 = vmatpush.msra.mxu0 %v999
    %1012 = vmatpush.msra.mxu0 %v998
    %1013 = vmatpush.msra.mxu0 %v997
    %1014 = vmatpush.msra.mxu0 %v996
    %1015 = vmatpush.msra.mxu0 %v995
    %1016 = vmatpush.msra.mxu0 %v994
    %1017 = vmatpush.msra.mxu0 %v993
    %1018 = vmatpush.msra.mxu0 %v992
    %1019 = vmatpush.msra.mxu0 %v991
    %1020 = vmatpush.msra.mxu0 %v990
    %1021 = vmatpush.msra.mxu0 %v989
    %1022 = vmatpush.msra.mxu0 %v988
    %1023 = vmatpush.msra.mxu0 %v987
    %1024 = vmatpush.msra.mxu0 %v986
    %1025 = vmatpush.msra.mxu0 %v985
    %1026 = vmatpush.msra.mxu0 %v984
    %1027 = vmatmul.f32.gmra.mxu0 %v956
    %v1028 = vpop.f32.mrf.mxu0
    %v1029 = vadd.f32 0.0, %v1028
    %1030 = vmatmul.f32.gmra.mxu0 %v959
    %v1031 = vpop.f32.mrf.mxu0
    %v1032 = vadd.f32 0.0, %v1031
    %1033 = vdwg.mxu0
    %1034 = vmatpush.msra.mxu0 0.0
    %1035 = vmatpush.msra.mxu0 0.0
    %1036 = vmatpush.msra.mxu0 0.0
    %1037 = vmatpush.msra.mxu0 0.0
    %1038 = vmatpush.msra.mxu0 0.0
    %1039 = vmatpush.msra.mxu0 0.0
    %1040 = vmatpush.msra.mxu0 0.0
    %1041 = vmatpush.msra.mxu0 0.0
    %1042 = vmatpush.msra.mxu0 0.0
    %1043 = vmatpush.msra.mxu0 0.0
    %1044 = vmatpush.msra.mxu0 0.0
    %1045 = vmatpush.msra.mxu0 0.0
    %1046 = vmatpush.msra.mxu0 %v1003
    %1047 = vmatpush.msra.mxu0 %v1002
    %1048 = vmatpush.msra.mxu0 %v1001
    %1049 = vmatpush.msra.mxu0 %v1000
    %1050 = vmatmul.f32.gmra.mxu0 %v1006
    %v1051 = vpop.f32.mrf.mxu0
    %v1052 = vadd.f32 %v1029, %v1051
    %1053 = vmatmul.f32.gmra.mxu0 %v1009
    %v1054 = vpop.f32.mrf.mxu0
    %v1055 = vadd.f32 %v1032, %v1054
    %1056 = vdwg.mxu0
    %s1057 = scalar_lea.vmem %s5, 160
    %v1058 = vld [vmem:[%s1057] sm:$0xff]
    %v1059 = vld [vmem:[%s1057 + $0x8] sm:$0xff]
    %v1060 = vld [vmem:[%s1057 + $0x10] sm:$0xff]
    %v1061 = vld [vmem:[%s1057 + $0x18] sm:$0xff]
    %v1062 = vld [vmem:[%s1057 + $0x20] sm:$0xff]
    %v1063 = vld [vmem:[%s1057 + $0x28] sm:$0xff]
    %v1064 = vld [vmem:[%s1057 + $0x30] sm:$0xff]
    %v1065 = vld [vmem:[%s1057 + $0x38] sm:$0xff]
    %v1066 = vld [vmem:[%s1057 + $0x40] sm:$0xff]
    %v1067 = vld [vmem:[%s1057 + $0x48] sm:$0xff]
    %v1068 = vld [vmem:[%s1057 + $0x50] sm:$0xff]
    %v1069 = vld [vmem:[%s1057 + $0x58] sm:$0xff]
    %v1070 = vld [vmem:[%s1057 + $0x60] sm:$0xff]
    %v1071 = vld [vmem:[%s1057 + $0x68] sm:$0xff]
    %v1072 = vld [vmem:[%s1057 + $0x70] sm:$0xff]
    %v1073 = vld [vmem:[%s1057 + $0x78] sm:$0xff]
    %v1074 = vld [vmem:[%s1057 + $0x80] sm:$0xff]
    %v1075 = vld [vmem:[%s1057 + $0x88] sm:$0xff]
    %v1076 = vld [vmem:[%s1057 + $0x90] sm:$0xff]
    %v1077 = vld [vmem:[%s1057 + $0x98] sm:$0xff]
    %1078 = vmatpush.msra.mxu0 %v1073
    %1079 = vmatpush.msra.mxu0 %v1072
    %1080 = vmatpush.msra.mxu0 %v1071
    %1081 = vmatpush.msra.mxu0 %v1070
    %1082 = vmatpush.msra.mxu0 %v1069
    %1083 = vmatpush.msra.mxu0 %v1068
    %1084 = vmatpush.msra.mxu0 %v1067
    %1085 = vmatpush.msra.mxu0 %v1066
    %1086 = vmatpush.msra.mxu0 %v1065
    %1087 = vmatpush.msra.mxu0 %v1064
    %1088 = vmatpush.msra.mxu0 %v1063
    %1089 = vmatpush.msra.mxu0 %v1062
    %1090 = vmatpush.msra.mxu0 %v1061
    %1091 = vmatpush.msra.mxu0 %v1060
    %1092 = vmatpush.msra.mxu0 %v1059
    %1093 = vmatpush.msra.mxu0 %v1058
    %1094 = vmatmul.f32.gmra.mxu0 %v956
    %v1095 = vpop.f32.mrf.mxu0
    %v1096 = vadd.f32 0.0, %v1095
    %1097 = vmatmul.f32.gmra.mxu0 %v959
    %v1098 = vpop.f32.mrf.mxu0
    %v1099 = vadd.f32 0.0, %v1098
    %1100 = vdwg.mxu0
    %1101 = vmatpush.msra.mxu0 0.0
    %1102 = vmatpush.msra.mxu0 0.0
    %1103 = vmatpush.msra.mxu0 0.0
    %1104 = vmatpush.msra.mxu0 0.0
    %1105 = vmatpush.msra.mxu0 0.0
    %1106 = vmatpush.msra.mxu0 0.0
    %1107 = vmatpush.msra.mxu0 0.0
    %1108 = vmatpush.msra.mxu0 0.0
    %1109 = vmatpush.msra.mxu0 0.0
    %1110 = vmatpush.msra.mxu0 0.0
    %1111 = vmatpush.msra.mxu0 0.0
    %1112 = vmatpush.msra.mxu0 0.0
    %1113 = vmatpush.msra.mxu0 %v1077
    %1114 = vmatpush.msra.mxu0 %v1076
    %1115 = vmatpush.msra.mxu0 %v1075
    %1116 = vmatpush.msra.mxu0 %v1074
    %1117 = vmatmul.f32.gmra.mxu0 %v1006
    %v1118 = vpop.f32.mrf.mxu0
    %v1119 = vadd.f32 %v1096, %v1118
    %1120 = vmatmul.f32.gmra.mxu0 %v1009
    %v1121 = vpop.f32.mrf.mxu0
    %v1122 = vadd.f32 %v1099, %v1121
    %1123 = vdwg.mxu0
    %v1124 = vmax.f32 %v1052, %v1119
    %v1125 = vmax.f32 %v1055, %v1122
    %s1126 = scalar_lea.vmem %s4, 16
    %v1127 = vld [vmem:[%s1126] sm:$0xff]
    %v1128 = vld [vmem:[%s1126 + $0x8] sm:$0x3]
    %v1130 = vsel %vm925, %v1127, 0
    %v1133 = vsel %vm925, %v1128, 0
    %1135 = vmatpush.msra.mxu0 0.0
    %1136 = vmatpush.msra.mxu0 0.0
    %1137 = vmatpush.msra.mxu0 0.0
    %1138 = vmatpush.msra.mxu0 0.0
    %1139 = vmatpush.msra.mxu0 0.0
    %1140 = vmatpush.msra.mxu0 0.0
    %1141 = vmatpush.msra.mxu0 0.0
    %1142 = vmatpush.msra.mxu0 0.0
    %1143 = vmatpush.msra.mxu0 0.0
    %1144 = vmatpush.msra.mxu0 0.0
    %1145 = vmatpush.msra.mxu0 0.0
    %1146 = vmatpush.msra.mxu0 0.0
    %1147 = vmatpush.msra.mxu0 0.0
    %1148 = vmatpush.msra.mxu0 %v933
    %1149 = vmatpush.msra.mxu0 %v919
    %1150 = vmatpush.msra.mxu0 %v917
    %1151 = vmatmul.f32.gmra.mxu0 %v1130
    %v1152 = vpop.f32.mrf.mxu0
    %v1153 = vadd.f32 0.0, %v1152
    %1154 = vmatmul.f32.gmra.mxu0 %v1133
    %v1155 = vpop.f32.mrf.mxu0
    %v1156 = vadd.f32 0.0, %v1155
    %1157 = vdwg.mxu0
    %1158 = vmatpush.msra.mxu0 0.0
    %1159 = vmatpush.msra.mxu0 0.0
    %1160 = vmatpush.msra.mxu0 0.0
    %1161 = vmatpush.msra.mxu0 0.0
    %1162 = vmatpush.msra.mxu0 0.0
    %1163 = vmatpush.msra.mxu0 0.0
    %1164 = vmatpush.msra.mxu0 0.0
    %1165 = vmatpush.msra.mxu0 0.0
    %1166 = vmatpush.msra.mxu0 0.0
    %1167 = vmatpush.msra.mxu0 0.0
    %1168 = vmatpush.msra.mxu0 0.0
    %1169 = vmatpush.msra.mxu0 0.0
    %1170 = vmatpush.msra.mxu0 0.0
    %1171 = vmatpush.msra.mxu0 %v936
    %1172 = vmatpush.msra.mxu0 %v920
    %1173 = vmatpush.msra.mxu0 %v918
    %1174 = vmatmul.f32.gmra.mxu0 %v1130
    %v1175 = vpop.f32.mrf.mxu0
    %v1176 = vadd.f32 0.0, %v1175
    %1177 = vmatmul.f32.gmra.mxu0 %v1133
    %v1178 = vpop.f32.mrf.mxu0
    %v1179 = vadd.f32 0.0, %v1178
    %1180 = vdwg.mxu0
    %v1182 = vsel %vm1004, %v1176, 0
    %v1185 = vsel %vm1004, %v1179, 0
    %1187 = vmatpush.msra.mxu0 %v999
    %1188 = vmatpush.msra.mxu0 %v998
    %1189 = vmatpush.msra.mxu0 %v997
    %1190 = vmatpush.msra.mxu0 %v996
    %1191 = vmatpush.msra.mxu0 %v995
    %1192 = vmatpush.msra.mxu0 %v994
    %1193 = vmatpush.msra.mxu0 %v993
    %1194 = vmatpush.msra.mxu0 %v992
    %1195 = vmatpush.msra.mxu0 %v991
    %1196 = vmatpush.msra.mxu0 %v990
    %1197 = vmatpush.msra.mxu0 %v989
    %1198 = vmatpush.msra.mxu0 %v988
    %1199 = vmatpush.msra.mxu0 %v987
    %1200 = vmatpush.msra.mxu0 %v986
    %1201 = vmatpush.msra.mxu0 %v985
    %1202 = vmatpush.msra.mxu0 %v984
    %1203 = vmatmul.f32.gmra.mxu0 %v1153
    %v1204 = vpop.f32.mrf.mxu0
    %v1205 = vadd.f32 0.0, %v1204
    %1206 = vmatmul.f32.gmra.mxu0 %v1156
    %v1207 = vpop.f32.mrf.mxu0
    %v1208 = vadd.f32 0.0, %v1207
    %1209 = vdwg.mxu0
    %1210 = vmatpush.msra.mxu0 0.0
    %1211 = vmatpush.msra.mxu0 0.0
    %1212 = vmatpush.msra.mxu0 0.0
    %1213 = vmatpush.msra.mxu0 0.0
    %1214 = vmatpush.msra.mxu0 0.0
    %1215 = vmatpush.msra.mxu0 0.0
    %1216 = vmatpush.msra.mxu0 0.0
    %1217 = vmatpush.msra.mxu0 0.0
    %1218 = vmatpush.msra.mxu0 0.0
    %1219 = vmatpush.msra.mxu0 0.0
    %1220 = vmatpush.msra.mxu0 0.0
    %1221 = vmatpush.msra.mxu0 0.0
    %1222 = vmatpush.msra.mxu0 %v1003
    %1223 = vmatpush.msra.mxu0 %v1002
    %1224 = vmatpush.msra.mxu0 %v1001
    %1225 = vmatpush.msra.mxu0 %v1000
    %1226 = vmatmul.f32.gmra.mxu0 %v1182
    %v1227 = vpop.f32.mrf.mxu0
    %v1228 = vadd.f32 %v1205, %v1227
    %1229 = vmatmul.f32.gmra.mxu0 %v1185
    %v1230 = vpop.f32.mrf.mxu0
    %v1231 = vadd.f32 %v1208, %v1230
    %1232 = vdwg.mxu0
    %v1233 = vmax.f32 %v1124, %v1228
    %v1234 = vmax.f32 %v1125, %v1231
    %1235 = vmatpush.msra.mxu0 %v1073
    %1236 = vmatpush.msra.mxu0 %v1072
    %1237 = vmatpush.msra.mxu0 %v1071
    %1238 = vmatpush.msra.mxu0 %v1070
    %1239 = vmatpush.msra.mxu0 %v1069
    %1240 = vmatpush.msra.mxu0 %v1068
    %1241 = vmatpush.msra.mxu0 %v1067
    %1242 = vmatpush.msra.mxu0 %v1066
    %1243 = vmatpush.msra.mxu0 %v1065
    %1244 = vmatpush.msra.mxu0 %v1064
    %1245 = vmatpush.msra.mxu0 %v1063
    %1246 = vmatpush.msra.mxu0 %v1062
    %1247 = vmatpush.msra.mxu0 %v1061
    %1248 = vmatpush.msra.mxu0 %v1060
    %1249 = vmatpush.msra.mxu0 %v1059
    %1250 = vmatpush.msra.mxu0 %v1058
    %1251 = vmatmul.f32.gmra.mxu0 %v1153
    %v1252 = vpop.f32.mrf.mxu0
    %v1253 = vadd.f32 0.0, %v1252
    %1254 = vmatmul.f32.gmra.mxu0 %v1156
    %v1255 = vpop.f32.mrf.mxu0
    %v1256 = vadd.f32 0.0, %v1255
    %1257 = vdwg.mxu0
    %1258 = vmatpush.msra.mxu0 0.0
    %1259 = vmatpush.msra.mxu0 0.0
    %1260 = vmatpush.msra.mxu0 0.0
    %1261 = vmatpush.msra.mxu0 0.0
    %1262 = vmatpush.msra.mxu0 0.0
    %1263 = vmatpush.msra.mxu0 0.0
    %1264 = vmatpush.msra.mxu0 0.0
    %1265 = vmatpush.msra.mxu0 0.0
    %1266 = vmatpush.msra.mxu0 0.0
    %1267 = vmatpush.msra.mxu0 0.0
    %1268 = vmatpush.msra.mxu0 0.0
    %1269 = vmatpush.msra.mxu0 0.0
    %1270 = vmatpush.msra.mxu0 %v1077
    %1271 = vmatpush.msra.mxu0 %v1076
    %1272 = vmatpush.msra.mxu0 %v1075
    %1273 = vmatpush.msra.mxu0 %v1074
    %1274 = vmatmul.f32.gmra.mxu0 %v1182
    %v1275 = vpop.f32.mrf.mxu0
    %v1276 = vadd.f32 %v1253, %v1275
    %1277 = vmatmul.f32.gmra.mxu0 %v1185
    %v1278 = vpop.f32.mrf.mxu0
    %v1279 = vadd.f32 %v1256, %v1278
    %1280 = vdwg.mxu0
    %v1281 = vmax.f32 %v1233, %v1276
    %v1282 = vmax.f32 %v1234, %v1279
    %v1283 = vld [vmem:[%s6] sm:$0x3f]
    %vm1284 = vcmask 80896
    %v1286 = vsel %vm1284, %v1283, 0
    %vm1288 = vcmask 1041408
    %v1290 = vsel %vm1288, %v1282, 0
    %1292 = vmatpush.msra.mxu0 0.0
    %1293 = vmatpush.msra.mxu0 0.0
    %1294 = vmatpush.msra.mxu0 0.0
    %1295 = vmatpush.msra.mxu0 0.0
    %1296 = vmatpush.msra.mxu0 0.0
    %1297 = vmatpush.msra.mxu0 0.0
    %1298 = vmatpush.msra.mxu0 0.0
    %1299 = vmatpush.msra.mxu0 0.0
    %1300 = vmatpush.msra.mxu0 0.0
    %1301 = vmatpush.msra.mxu0 0.0
    %1302 = vmatpush.msra.mxu0 0.0
    %1303 = vmatpush.msra.mxu0 0.0
    %1304 = vmatpush.msra.mxu0 0.0
    %1305 = vmatpush.msra.mxu0 0.0
    %1306 = vmatpush.msra.mxu0 %v1290
    %1307 = vmatpush.msra.mxu0 %v1281
    %1308 = vmatmul.f32.gmra.mxu0 %v1286
    %v1309 = vpop.f32.mrf.mxu0
    %v1310 = vadd.f32 0.0, %v1309
    %1311 = vdwg.mxu0
    %v1312 = vld [vmem:[%s7] sm:$0xff]
    %v1313 = vld [vmem:[%s7 + $0x8] sm:$0xff]
    %v1314 = vld [vmem:[%s7 + $0x10] sm:$0xff]
    %v1315 = vld [vmem:[%s7 + $0x18] sm:$0xff]
    %v1316 = vld [vmem:[%s7 + $0x20] sm:$0xff]
    %v1317 = vld [vmem:[%s7 + $0x28] sm:$0xff]
    %v1318 = vld [vmem:[%s7 + $0x30] sm:$0xff]
    %v1319 = vld [vmem:[%s7 + $0x38] sm:$0xff]
    %v1320 = vld [vmem:[%s7 + $0x40] sm:$0xff]
    %v1321 = vld [vmem:[%s7 + $0x48] sm:$0xff]
    %s1322 = scalar_lea.vmem %s7, 80
    %v1323 = vld [vmem:[%s1322] sm:$0xff]
    %v1324 = vld [vmem:[%s1322 + $0x8] sm:$0xff]
    %v1325 = vld [vmem:[%s1322 + $0x10] sm:$0xff]
    %v1326 = vld [vmem:[%s1322 + $0x18] sm:$0xff]
    %v1327 = vld [vmem:[%s1322 + $0x20] sm:$0xff]
    %v1328 = vld [vmem:[%s1322 + $0x28] sm:$0xff]
    %v1329 = vld [vmem:[%s1322 + $0x30] sm:$0xff]
    %v1330 = vld [vmem:[%s1322 + $0x38] sm:$0xff]
    %v1331 = vld [vmem:[%s1322 + $0x40] sm:$0xff]
    %v1332 = vld [vmem:[%s1322 + $0x48] sm:$0xff]
    %vm1333 = vcmask 654336
    %v1335 = vsel %vm1333, %v1310, 0
    %1337 = vmatpush.msra.mxu0 0.0
    %1338 = vmatpush.msra.mxu0 0.0
    %1339 = vmatpush.msra.mxu0 0.0
    %1340 = vmatpush.msra.mxu0 0.0
    %1341 = vmatpush.msra.mxu0 0.0
    %1342 = vmatpush.msra.mxu0 0.0
    %1343 = vmatpush.msra.mxu0 %v1332
    %1344 = vmatpush.msra.mxu0 %v1331
    %1345 = vmatpush.msra.mxu0 %v1330
    %1346 = vmatpush.msra.mxu0 %v1329
    %1347 = vmatpush.msra.mxu0 %v1328
    %1348 = vmatpush.msra.mxu0 %v1327
    %1349 = vmatpush.msra.mxu0 %v1326
    %1350 = vmatpush.msra.mxu0 %v1325
    %1351 = vmatpush.msra.mxu0 %v1324
    %1352 = vmatpush.msra.mxu0 %v1323
    %1353 = vmatmul.f32.gmra.mxu0 %v1335
    %v1354 = vpop.f32.mrf.mxu0
    %v1355 = vadd.f32 0.0, %v1354
    %1356 = vdwg.mxu0
    %1357 = vmatpush.msra.mxu0 0.0
    %1358 = vmatpush.msra.mxu0 0.0
    %1359 = vmatpush.msra.mxu0 0.0
    %1360 = vmatpush.msra.mxu0 0.0
    %1361 = vmatpush.msra.mxu0 0.0
    %1362 = vmatpush.msra.mxu0 0.0
    %1363 = vmatpush.msra.mxu0 %v1321
    %1364 = vmatpush.msra.mxu0 %v1320
    %1365 = vmatpush.msra.mxu0 %v1319
    %1366 = vmatpush.msra.mxu0 %v1318
    %1367 = vmatpush.msra.mxu0 %v1317
    %1368 = vmatpush.msra.mxu0 %v1316
    %1369 = vmatpush.msra.mxu0 %v1315
    %1370 = vmatpush.msra.mxu0 %v1314
    %1371 = vmatpush.msra.mxu0 %v1313
    %1372 = vmatpush.msra.mxu0 %v1312
    %1373 = vmatmul.f32.gmra.mxu0 %v1335
    %v1374 = vpop.f32.mrf.mxu0
    %v1375 = vadd.f32 %v1355, %v1374
    %1376 = vdwg.mxu0
    %s1377 = scalar_lea.vmem %s7, 160
    %v1378 = vld [vmem:[%s1377] sm:$0xff]
    %v1379 = vld [vmem:[%s1377 + $0x8] sm:$0xff]
    %v1380 = vld [vmem:[%s1377 + $0x10] sm:$0xff]
    %v1381 = vld [vmem:[%s1377 + $0x18] sm:$0xff]
    %v1382 = vld [vmem:[%s1377 + $0x20] sm:$0xff]
    %v1383 = vld [vmem:[%s1377 + $0x28] sm:$0xff]
    %v1384 = vld [vmem:[%s1377 + $0x30] sm:$0xff]
    %v1385 = vld [vmem:[%s1377 + $0x38] sm:$0xff]
    %v1386 = vld [vmem:[%s1377 + $0x40] sm:$0xff]
    %v1387 = vld [vmem:[%s1377 + $0x48] sm:$0xff]
    %1388 = vmatpush.msra.mxu0 0.0
    %1389 = vmatpush.msra.mxu0 0.0
    %1390 = vmatpush.msra.mxu0 0.0
    %1391 = vmatpush.msra.mxu0 0.0
    %1392 = vmatpush.msra.mxu0 0.0
    %1393 = vmatpush.msra.mxu0 0.0
    %1394 = vmatpush.msra.mxu0 %v1387
    %1395 = vmatpush.msra.mxu0 %v1386
    %1396 = vmatpush.msra.mxu0 %v1385
    %1397 = vmatpush.msra.mxu0 %v1384
    %1398 = vmatpush.msra.mxu0 %v1383
    %1399 = vmatpush.msra.mxu0 %v1382
    %1400 = vmatpush.msra.mxu0 %v1381
    %1401 = vmatpush.msra.mxu0 %v1380
    %1402 = vmatpush.msra.mxu0 %v1379
    %1403 = vmatpush.msra.mxu0 %v1378
    %1404 = vmatmul.f32.gmra.mxu0 %v1335
    %v1405 = vpop.f32.mrf.mxu0
    %v1406 = vadd.f32 0.0, %v1405
    %1407 = vdwg.mxu0
    %v1408 = vadd.f32 %v1375, %v1406
    %s1409 = scalar_lea.vmem %s6, 8
    %v1410 = vld [vmem:[%s1409] sm:$0x3f]
    %v1412 = vsel %vm1284, %v1410, 0
    %1414 = vmatpush.msra.mxu0 0.0
    %1415 = vmatpush.msra.mxu0 0.0
    %1416 = vmatpush.msra.mxu0 0.0
    %1417 = vmatpush.msra.mxu0 0.0
    %1418 = vmatpush.msra.mxu0 0.0
    %1419 = vmatpush.msra.mxu0 0.0
    %1420 = vmatpush.msra.mxu0 0.0
    %1421 = vmatpush.msra.mxu0 0.0
    %1422 = vmatpush.msra.mxu0 0.0
    %1423 = vmatpush.msra.mxu0 0.0
    %1424 = vmatpush.msra.mxu0 0.0
    %1425 = vmatpush.msra.mxu0 0.0
    %1426 = vmatpush.msra.mxu0 0.0
    %1427 = vmatpush.msra.mxu0 0.0
    %1428 = vmatpush.msra.mxu0 %v1290
    %1429 = vmatpush.msra.mxu0 %v1281
    %1430 = vmatmul.f32.gmra.mxu0 %v1412
    %v1431 = vpop.f32.mrf.mxu0
    %v1432 = vadd.f32 0.0, %v1431
    %1433 = vdwg.mxu0
    %s1434 = scalar_lea.vmem %s7, 240
    %v1435 = vld [vmem:[%s1434] sm:$0xff]
    %v1436 = vld [vmem:[%s1434 + $0x8] sm:$0xff]
    %v1437 = vld [vmem:[%s1434 + $0x10] sm:$0xff]
    %v1438 = vld [vmem:[%s1434 + $0x18] sm:$0xff]
    %v1439 = vld [vmem:[%s1434 + $0x20] sm:$0xff]
    %v1440 = vld [vmem:[%s1434 + $0x28] sm:$0xff]
    %v1441 = vld [vmem:[%s1434 + $0x30] sm:$0xff]
    %v1442 = vld [vmem:[%s1434 + $0x38] sm:$0xff]
    %v1443 = vld [vmem:[%s1434 + $0x40] sm:$0xff]
    %v1444 = vld [vmem:[%s1434 + $0x48] sm:$0xff]
    %v1446 = vsel %vm1333, %v1432, 0
    %1448 = vmatpush.msra.mxu0 0.0
    %1449 = vmatpush.msra.mxu0 0.0
    %1450 = vmatpush.msra.mxu0 0.0
    %1451 = vmatpush.msra.mxu0 0.0
    %1452 = vmatpush.msra.mxu0 0.0
    %1453 = vmatpush.msra.mxu0 0.0
    %1454 = vmatpush.msra.mxu0 %v1444
    %1455 = vmatpush.msra.mxu0 %v1443
    %1456 = vmatpush.msra.mxu0 %v1442
    %1457 = vmatpush.msra.mxu0 %v1441
    %1458 = vmatpush.msra.mxu0 %v1440
    %1459 = vmatpush.msra.mxu0 %v1439
    %1460 = vmatpush.msra.mxu0 %v1438
    %1461 = vmatpush.msra.mxu0 %v1437
    %1462 = vmatpush.msra.mxu0 %v1436
    %1463 = vmatpush.msra.mxu0 %v1435
    %1464 = vmatmul.f32.gmra.mxu0 %v1446
    %v1465 = vpop.f32.mrf.mxu0
    %v1466 = vadd.f32 0.0, %v1465
    %1467 = vdwg.mxu0
    %v1468 = vadd.f32 %v1408, %v1466
    %s1469 = scalar_lea.vmem %s7, 320
    %v1470 = vld [vmem:[%s1469] sm:$0xff]
    %v1471 = vld [vmem:[%s1469 + $0x8] sm:$0xff]
    %v1472 = vld [vmem:[%s1469 + $0x10] sm:$0xff]
    %v1473 = vld [vmem:[%s1469 + $0x18] sm:$0xff]
    %v1474 = vld [vmem:[%s1469 + $0x20] sm:$0xff]
    %v1475 = vld [vmem:[%s1469 + $0x28] sm:$0xff]
    %v1476 = vld [vmem:[%s1469 + $0x30] sm:$0xff]
    %v1477 = vld [vmem:[%s1469 + $0x38] sm:$0xff]
    %v1478 = vld [vmem:[%s1469 + $0x40] sm:$0xff]
    %v1479 = vld [vmem:[%s1469 + $0x48] sm:$0xff]
    %1480 = vmatpush.msra.mxu0 0.0
    %1481 = vmatpush.msra.mxu0 0.0
    %1482 = vmatpush.msra.mxu0 0.0
    %1483 = vmatpush.msra.mxu0 0.0
    %1484 = vmatpush.msra.mxu0 0.0
    %1485 = vmatpush.msra.mxu0 0.0
    %1486 = vmatpush.msra.mxu0 %v1479
    %1487 = vmatpush.msra.mxu0 %v1478
    %1488 = vmatpush.msra.mxu0 %v1477
    %1489 = vmatpush.msra.mxu0 %v1476
    %1490 = vmatpush.msra.mxu0 %v1475
    %1491 = vmatpush.msra.mxu0 %v1474
    %1492 = vmatpush.msra.mxu0 %v1473
    %1493 = vmatpush.msra.mxu0 %v1472
    %1494 = vmatpush.msra.mxu0 %v1471
    %1495 = vmatpush.msra.mxu0 %v1470
    %1496 = vmatmul.f32.gmra.mxu0 %v1446
    %v1497 = vpop.f32.mrf.mxu0
    %v1498 = vadd.f32 0.0, %v1497
    %1499 = vdwg.mxu0
    %v1500 = vadd.f32 %v1468, %v1498
    %s1501 = scalar_lea.vmem %s7, 400
    %v1502 = vld [vmem:[%s1501] sm:$0xff]
    %v1503 = vld [vmem:[%s1501 + $0x8] sm:$0xff]
    %v1504 = vld [vmem:[%s1501 + $0x10] sm:$0xff]
    %v1505 = vld [vmem:[%s1501 + $0x18] sm:$0xff]
    %v1506 = vld [vmem:[%s1501 + $0x20] sm:$0xff]
    %v1507 = vld [vmem:[%s1501 + $0x28] sm:$0xff]
    %v1508 = vld [vmem:[%s1501 + $0x30] sm:$0xff]
    %v1509 = vld [vmem:[%s1501 + $0x38] sm:$0xff]
    %v1510 = vld [vmem:[%s1501 + $0x40] sm:$0xff]
    %v1511 = vld [vmem:[%s1501 + $0x48] sm:$0xff]
    %1512 = vmatpush.msra.mxu0 0.0
    %1513 = vmatpush.msra.mxu0 0.0
    %1514 = vmatpush.msra.mxu0 0.0
    %1515 = vmatpush.msra.mxu0 0.0
    %1516 = vmatpush.msra.mxu0 0.0
    %1517 = vmatpush.msra.mxu0 0.0
    %1518 = vmatpush.msra.mxu0 %v1511
    %1519 = vmatpush.msra.mxu0 %v1510
    %1520 = vmatpush.msra.mxu0 %v1509
    %1521 = vmatpush.msra.mxu0 %v1508
    %1522 = vmatpush.msra.mxu0 %v1507
    %1523 = vmatpush.msra.mxu0 %v1506
    %1524 = vmatpush.msra.mxu0 %v1505
    %1525 = vmatpush.msra.mxu0 %v1504
    %1526 = vmatpush.msra.mxu0 %v1503
    %1527 = vmatpush.msra.mxu0 %v1502
    %1528 = vmatmul.f32.gmra.mxu0 %v1446
    %v1529 = vpop.f32.mrf.mxu0
    %v1530 = vadd.f32 0.0, %v1529
    %1531 = vdwg.mxu0
    %v1532 = vadd.f32 %v1500, %v1530
    %s1533 = scalar_lea.vmem %s6, 16
    %v1534 = vld [vmem:[%s1533] sm:$0x3f]
    %v1536 = vsel %vm1284, %v1534, 0
    %1538 = vmatpush.msra.mxu0 0.0
    %1539 = vmatpush.msra.mxu0 0.0
    %1540 = vmatpush.msra.mxu0 0.0
    %1541 = vmatpush.msra.mxu0 0.0
    %1542 = vmatpush.msra.mxu0 0.0
    %1543 = vmatpush.msra.mxu0 0.0
    %1544 = vmatpush.msra.mxu0 0.0
    %1545 = vmatpush.msra.mxu0 0.0
    %1546 = vmatpush.msra.mxu0 0.0
    %1547 = vmatpush.msra.mxu0 0.0
    %1548 = vmatpush.msra.mxu0 0.0
    %1549 = vmatpush.msra.mxu0 0.0
    %1550 = vmatpush.msra.mxu0 0.0
    %1551 = vmatpush.msra.mxu0 0.0
    %1552 = vmatpush.msra.mxu0 %v1290
    %1553 = vmatpush.msra.mxu0 %v1281
    %1554 = vmatmul.f32.gmra.mxu0 %v1536
    %v1555 = vpop.f32.mrf.mxu0
    %v1556 = vadd.f32 0.0, %v1555
    %1557 = vdwg.mxu0
    %s1558 = scalar_lea.vmem %s7, 480
    %v1559 = vld [vmem:[%s1558] sm:$0xff]
    %v1560 = vld [vmem:[%s1558 + $0x8] sm:$0xff]
    %v1561 = vld [vmem:[%s1558 + $0x10] sm:$0xff]
    %v1562 = vld [vmem:[%s1558 + $0x18] sm:$0xff]
    %v1563 = vld [vmem:[%s1558 + $0x20] sm:$0xff]
    %v1564 = vld [vmem:[%s1558 + $0x28] sm:$0xff]
    %v1565 = vld [vmem:[%s1558 + $0x30] sm:$0xff]
    %v1566 = vld [vmem:[%s1558 + $0x38] sm:$0xff]
    %v1567 = vld [vmem:[%s1558 + $0x40] sm:$0xff]
    %v1568 = vld [vmem:[%s1558 + $0x48] sm:$0xff]
    %v1570 = vsel %vm1333, %v1556, 0
    %1572 = vmatpush.msra.mxu0 0.0
    %1573 = vmatpush.msra.mxu0 0.0
    %1574 = vmatpush.msra.mxu0 0.0
    %1575 = vmatpush.msra.mxu0 0.0
    %1576 = vmatpush.msra.mxu0 0.0
    %1577 = vmatpush.msra.mxu0 0.0
    %1578 = vmatpush.msra.mxu0 %v1568
    %1579 = vmatpush.msra.mxu0 %v1567
    %1580 = vmatpush.msra.mxu0 %v1566
    %1581 = vmatpush.msra.mxu0 %v1565
    %1582 = vmatpush.msra.mxu0 %v1564
    %1583 = vmatpush.msra.mxu0 %v1563
    %1584 = vmatpush.msra.mxu0 %v1562
    %1585 = vmatpush.msra.mxu0 %v1561
    %1586 = vmatpush.msra.mxu0 %v1560
    %1587 = vmatpush.msra.mxu0 %v1559
    %1588 = vmatmul.f32.gmra.mxu0 %v1570
    %v1589 = vpop.f32.mrf.mxu0
    %v1590 = vadd.f32 0.0, %v1589
    %1591 = vdwg.mxu0
    %v1592 = vadd.f32 %v1532, %v1590
    %s1593 = scalar_lea.vmem %s7, 560
    %v1594 = vld [vmem:[%s1593] sm:$0xff]
    %v1595 = vld [vmem:[%s1593 + $0x8] sm:$0xff]
    %v1596 = vld [vmem:[%s1593 + $0x10] sm:$0xff]
    %v1597 = vld [vmem:[%s1593 + $0x18] sm:$0xff]
    %v1598 = vld [vmem:[%s1593 + $0x20] sm:$0xff]
    %v1599 = vld [vmem:[%s1593 + $0x28] sm:$0xff]
    %v1600 = vld [vmem:[%s1593 + $0x30] sm:$0xff]
    %v1601 = vld [vmem:[%s1593 + $0x38] sm:$0xff]
    %v1602 = vld [vmem:[%s1593 + $0x40] sm:$0xff]
    %v1603 = vld [vmem:[%s1593 + $0x48] sm:$0xff]
    %1604 = vmatpush.msra.mxu0 0.0
    %1605 = vmatpush.msra.mxu0 0.0
    %1606 = vmatpush.msra.mxu0 0.0
    %1607 = vmatpush.msra.mxu0 0.0
    %1608 = vmatpush.msra.mxu0 0.0
    %1609 = vmatpush.msra.mxu0 0.0
    %1610 = vmatpush.msra.mxu0 %v1603
    %1611 = vmatpush.msra.mxu0 %v1602
    %1612 = vmatpush.msra.mxu0 %v1601
    %1613 = vmatpush.msra.mxu0 %v1600
    %1614 = vmatpush.msra.mxu0 %v1599
    %1615 = vmatpush.msra.mxu0 %v1598
    %1616 = vmatpush.msra.mxu0 %v1597
    %1617 = vmatpush.msra.mxu0 %v1596
    %1618 = vmatpush.msra.mxu0 %v1595
    %1619 = vmatpush.msra.mxu0 %v1594
    %1620 = vmatmul.f32.gmra.mxu0 %v1570
    %v1621 = vpop.f32.mrf.mxu0
    %v1622 = vadd.f32 0.0, %v1621
    %1623 = vdwg.mxu0
    %v1624 = vadd.f32 %v1592, %v1622
    %s1625 = scalar_lea.vmem %s7, 640
    %v1626 = vld [vmem:[%s1625] sm:$0xff]
    %v1627 = vld [vmem:[%s1625 + $0x8] sm:$0xff]
    %v1628 = vld [vmem:[%s1625 + $0x10] sm:$0xff]
    %v1629 = vld [vmem:[%s1625 + $0x18] sm:$0xff]
    %v1630 = vld [vmem:[%s1625 + $0x20] sm:$0xff]
    %v1631 = vld [vmem:[%s1625 + $0x28] sm:$0xff]
    %v1632 = vld [vmem:[%s1625 + $0x30] sm:$0xff]
    %v1633 = vld [vmem:[%s1625 + $0x38] sm:$0xff]
    %v1634 = vld [vmem:[%s1625 + $0x40] sm:$0xff]
    %v1635 = vld [vmem:[%s1625 + $0x48] sm:$0xff]
    %1636 = vmatpush.msra.mxu0 0.0
    %1637 = vmatpush.msra.mxu0 0.0
    %1638 = vmatpush.msra.mxu0 0.0
    %1639 = vmatpush.msra.mxu0 0.0
    %1640 = vmatpush.msra.mxu0 0.0
    %1641 = vmatpush.msra.mxu0 0.0
    %1642 = vmatpush.msra.mxu0 %v1635
    %1643 = vmatpush.msra.mxu0 %v1634
    %1644 = vmatpush.msra.mxu0 %v1633
    %1645 = vmatpush.msra.mxu0 %v1632
    %1646 = vmatpush.msra.mxu0 %v1631
    %1647 = vmatpush.msra.mxu0 %v1630
    %1648 = vmatpush.msra.mxu0 %v1629
    %1649 = vmatpush.msra.mxu0 %v1628
    %1650 = vmatpush.msra.mxu0 %v1627
    %1651 = vmatpush.msra.mxu0 %v1626
    %1652 = vmatmul.f32.gmra.mxu0 %v1570
    %v1653 = vpop.f32.mrf.mxu0
    %v1654 = vadd.f32 0.0, %v1653
    %1655 = vdwg.mxu0
    %v1656 = vadd.f32 %v1624, %v1654
    %v1657 = vld [vmem:[%s8] sm:$0x1]
    %v1659 = vperm.slane %v1657, 0
    %v1661 = vadd.f32 %v1656, %v1659
    %vm1662 = vcmp.gt.f32.partialorder %v1661, 20.0
    %v1663 = vmin.f32 %v1661, 20.0
    %v1664 = vmul.f32 %v1663, 1.442695
    %v1665 = vpow.pop %v1664
    %v1666 = vadd.f32 %v1665, 1.0
    %v1667 = vlog2.pop %v1666
    %v1668 = vmul.f32 %v1667, 0.6931472
    %v1669 = vsel %vm1662, %v1661, %v1668
    %v1670 = vld [vmem:[%s9] sm:$0xf]
    %vm1671 = vcmask 48128
    %v1673 = vsel %vm1671, %v1670, 0
    %vm1675 = vcmask 1045504
    %v1677 = vsel %vm1675, %v1669, 0
    %1679 = vmatpush.msra.mxu0 0.0
    %1680 = vmatpush.msra.mxu0 0.0
    %1681 = vmatpush.msra.mxu0 0.0
    %1682 = vmatpush.msra.mxu0 0.0
    %1683 = vmatpush.msra.mxu0 0.0
    %1684 = vmatpush.msra.mxu0 0.0
    %1685 = vmatpush.msra.mxu0 0.0
    %1686 = vmatpush.msra.mxu0 0.0
    %1687 = vmatpush.msra.mxu0 0.0
    %1688 = vmatpush.msra.mxu0 0.0
    %1689 = vmatpush.msra.mxu0 0.0
    %1690 = vmatpush.msra.mxu0 0.0
    %1691 = vmatpush.msra.mxu0 0.0
    %1692 = vmatpush.msra.mxu0 0.0
    %1693 = vmatpush.msra.mxu0 0.0
    %1694 = vmatpush.msra.mxu0 %v1677
    %1695 = vmatmul.f32.gmra.mxu0 %v1673
    %v1696 = vpop.f32.mrf.mxu0
    %v1697 = vadd.f32 0.0, %v1696
    %1698 = vdwg.mxu0
    %v1699 = vld [vmem:[%s10] sm:$0xff]
    %v1700 = vld [vmem:[%s10 + $0x8] sm:$0xff]
    %v1701 = vld [vmem:[%s10 + $0x10] sm:$0xff]
    %vm1702 = vcmask 195584
    %v1704 = vsel %vm1702, %v1697, 0
    %1706 = vmatpush.msra.mxu0 0.0
    %1707 = vmatpush.msra.mxu0 0.0
    %1708 = vmatpush.msra.mxu0 0.0
    %1709 = vmatpush.msra.mxu0 0.0
    %1710 = vmatpush.msra.mxu0 0.0
    %1711 = vmatpush.msra.mxu0 0.0
    %1712 = vmatpush.msra.mxu0 0.0
    %1713 = vmatpush.msra.mxu0 0.0
    %1714 = vmatpush.msra.mxu0 0.0
    %1715 = vmatpush.msra.mxu0 0.0
    %1716 = vmatpush.msra.mxu0 0.0
    %1717 = vmatpush.msra.mxu0 0.0
    %1718 = vmatpush.msra.mxu0 0.0
    %1719 = vmatpush.msra.mxu0 %v1701
    %1720 = vmatpush.msra.mxu0 %v1700
    %1721 = vmatpush.msra.mxu0 %v1699
    %1722 = vmatmul.f32.gmra.mxu0 %v1704
    %v1723 = vpop.f32.mrf.mxu0
    %v1724 = vadd.f32 0.0, %v1723
    %1725 = vdwg.mxu0
    %s1726 = scalar_lea.vmem %s10, 24
    %v1727 = vld [vmem:[%s1726] sm:$0xff]
    %v1728 = vld [vmem:[%s1726 + $0x8] sm:$0xff]
    %v1729 = vld [vmem:[%s1726 + $0x10] sm:$0xff]
    %1730 = vmatpush.msra.mxu0 0.0
    %1731 = vmatpush.msra.mxu0 0.0
    %1732 = vmatpush.msra.mxu0 0.0
    %1733 = vmatpush.msra.mxu0 0.0
    %1734 = vmatpush.msra.mxu0 0.0
    %1735 = vmatpush.msra.mxu0 0.0
    %1736 = vmatpush.msra.mxu0 0.0
    %1737 = vmatpush.msra.mxu0 0.0
    %1738 = vmatpush.msra.mxu0 0.0
    %1739 = vmatpush.msra.mxu0 0.0
    %1740 = vmatpush.msra.mxu0 0.0
    %1741 = vmatpush.msra.mxu0 0.0
    %1742 = vmatpush.msra.mxu0 0.0
    %1743 = vmatpush.msra.mxu0 %v1729
    %1744 = vmatpush.msra.mxu0 %v1728
    %1745 = vmatpush.msra.mxu0 %v1727
    %1746 = vmatmul.f32.gmra.mxu0 %v1704
    %v1747 = vpop.f32.mrf.mxu0
    %v1748 = vadd.f32 0.0, %v1747
    %1749 = vdwg.mxu0
    %v1750 = vmax.f32 %v1724, %v1748
    %s1751 = scalar_lea.vmem %s9, 4
    %v1752 = vld [vmem:[%s1751] sm:$0xf]
    %v1754 = vsel %vm1671, %v1752, 0
    %1756 = vmatpush.msra.mxu0 0.0
    %1757 = vmatpush.msra.mxu0 0.0
    %1758 = vmatpush.msra.mxu0 0.0
    %1759 = vmatpush.msra.mxu0 0.0
    %1760 = vmatpush.msra.mxu0 0.0
    %1761 = vmatpush.msra.mxu0 0.0
    %1762 = vmatpush.msra.mxu0 0.0
    %1763 = vmatpush.msra.mxu0 0.0
    %1764 = vmatpush.msra.mxu0 0.0
    %1765 = vmatpush.msra.mxu0 0.0
    %1766 = vmatpush.msra.mxu0 0.0
    %1767 = vmatpush.msra.mxu0 0.0
    %1768 = vmatpush.msra.mxu0 0.0
    %1769 = vmatpush.msra.mxu0 0.0
    %1770 = vmatpush.msra.mxu0 0.0
    %1771 = vmatpush.msra.mxu0 %v1677
    %1772 = vmatmul.f32.gmra.mxu0 %v1754
    %v1773 = vpop.f32.mrf.mxu0
    %v1774 = vadd.f32 0.0, %v1773
    %1775 = vdwg.mxu0
    %v1777 = vsel %vm1702, %v1774, 0
    %1779 = vmatpush.msra.mxu0 0.0
    %1780 = vmatpush.msra.mxu0 0.0
    %1781 = vmatpush.msra.mxu0 0.0
    %1782 = vmatpush.msra.mxu0 0.0
    %1783 = vmatpush.msra.mxu0 0.0
    %1784 = vmatpush.msra.mxu0 0.0
    %1785 = vmatpush.msra.mxu0 0.0
    %1786 = vmatpush.msra.mxu0 0.0
    %1787 = vmatpush.msra.mxu0 0.0
    %1788 = vmatpush.msra.mxu0 0.0
    %1789 = vmatpush.msra.mxu0 0.0
    %1790 = vmatpush.msra.mxu0 0.0
    %1791 = vmatpush.msra.mxu0 0.0
    %1792 = vmatpush.msra.mxu0 %v1701
    %1793 = vmatpush.msra.mxu0 %v1700
    %1794 = vmatpush.msra.mxu0 %v1699
    %1795 = vmatmul.f32.gmra.mxu0 %v1777
    %v1796 = vpop.f32.mrf.mxu0
    %v1797 = vadd.f32 0.0, %v1796
    %1798 = vdwg.mxu0
    %v1799 = vmax.f32 %v1750, %v1797
    %1800 = vmatpush.msra.mxu0 0.0
    %1801 = vmatpush.msra.mxu0 0.0
    %1802 = vmatpush.msra.mxu0 0.0
    %1803 = vmatpush.msra.mxu0 0.0
    %1804 = vmatpush.msra.mxu0 0.0
    %1805 = vmatpush.msra.mxu0 0.0
    %1806 = vmatpush.msra.mxu0 0.0
    %1807 = vmatpush.msra.mxu0 0.0
    %1808 = vmatpush.msra.mxu0 0.0
    %1809 = vmatpush.msra.mxu0 0.0
    %1810 = vmatpush.msra.mxu0 0.0
    %1811 = vmatpush.msra.mxu0 0.0
    %1812 = vmatpush.msra.mxu0 0.0
    %1813 = vmatpush.msra.mxu0 %v1729
    %1814 = vmatpush.msra.mxu0 %v1728
    %1815 = vmatpush.msra.mxu0 %v1727
    %1816 = vmatmul.f32.gmra.mxu0 %v1777
    %v1817 = vpop.f32.mrf.mxu0
    %v1818 = vadd.f32 0.0, %v1817
    %1819 = vdwg.mxu0
    %v1820 = vmax.f32 %v1799, %v1818
    %v1821 = vld [vmem:[%s11] sm:$0xff]
    %v1822 = vld [vmem:[%s11 + $0x8] sm:$0x3]
    %vm1823 = vcmask 31744
    %v1825 = vsel %vm1823, %v1821, 0
    %v1828 = vsel %vm1823, %v1822, 0
    %v1831 = vsel %vm139, %v1820, 0
    %1833 = vmatpush.msra.mxu0 0.0
    %1834 = vmatpush.msra.mxu0 0.0
    %1835 = vmatpush.msra.mxu0 0.0
    %1836 = vmatpush.msra.mxu0 0.0
    %1837 = vmatpush.msra.mxu0 0.0
    %1838 = vmatpush.msra.mxu0 0.0
    %1839 = vmatpush.msra.mxu0 0.0
    %1840 = vmatpush.msra.mxu0 0.0
    %1841 = vmatpush.msra.mxu0 0.0
    %1842 = vmatpush.msra.mxu0 0.0
    %1843 = vmatpush.msra.mxu0 0.0
    %1844 = vmatpush.msra.mxu0 0.0
    %1845 = vmatpush.msra.mxu0 0.0
    %1846 = vmatpush.msra.mxu0 0.0
    %1847 = vmatpush.msra.mxu0 0.0
    %1848 = vmatpush.msra.mxu0 %v1831
    %1849 = vmatmul.f32.gmra.mxu0 %v1825
    %v1850 = vpop.f32.mrf.mxu0
    %v1851 = vadd.f32 0.0, %v1850
    %1852 = vmatmul.f32.gmra.mxu0 %v1828
    %v1853 = vpop.f32.mrf.mxu0
    %v1854 = vadd.f32 0.0, %v1853
    %1855 = vdwg.mxu0
    %v1856 = vld [vmem:[%s12] sm:$0xff]
    %v1857 = vld [vmem:[%s12 + $0x8] sm:$0xff]
    %s1858 = scalar_lea.vmem %s12, 16
    %v1859 = vld [vmem:[%s1858] sm:$0xff]
    %v1860 = vld [vmem:[%s1858 + $0x8] sm:$0xff]
    %vm1861 = vcmask 130048
    %v1863 = vsel %vm1861, %v1851, 0
    %v1866 = vsel %vm1861, %v1854, 0
    %1868 = vmatpush.msra.mxu0 0.0
    %1869 = vmatpush.msra.mxu0 0.0
    %1870 = vmatpush.msra.mxu0 0.0
    %1871 = vmatpush.msra.mxu0 0.0
    %1872 = vmatpush.msra.mxu0 0.0
    %1873 = vmatpush.msra.mxu0 0.0
    %1874 = vmatpush.msra.mxu0 0.0
    %1875 = vmatpush.msra.mxu0 0.0
    %1876 = vmatpush.msra.mxu0 0.0
    %1877 = vmatpush.msra.mxu0 0.0
    %1878 = vmatpush.msra.mxu0 0.0
    %1879 = vmatpush.msra.mxu0 0.0
    %1880 = vmatpush.msra.mxu0 0.0
    %1881 = vmatpush.msra.mxu0 0.0
    %1882 = vmatpush.msra.mxu0 %v1860
    %1883 = vmatpush.msra.mxu0 %v1859
    %1884 = vmatmul.f32.gmra.mxu0 %v1863
    %v1885 = vpop.f32.mrf.mxu0
    %v1886 = vadd.f32 0.0, %v1885
    %1887 = vmatmul.f32.gmra.mxu0 %v1866
    %v1888 = vpop.f32.mrf.mxu0
    %v1889 = vadd.f32 0.0, %v1888
    %1890 = vdwg.mxu0
    %1891 = vmatpush.msra.mxu0 0.0
    %1892 = vmatpush.msra.mxu0 0.0
    %1893 = vmatpush.msra.mxu0 0.0
    %1894 = vmatpush.msra.mxu0 0.0
    %1895 = vmatpush.msra.mxu0 0.0
    %1896 = vmatpush.msra.mxu0 0.0
    %1897 = vmatpush.msra.mxu0 0.0
    %1898 = vmatpush.msra.mxu0 0.0
    %1899 = vmatpush.msra.mxu0 0.0
    %1900 = vmatpush.msra.mxu0 0.0
    %1901 = vmatpush.msra.mxu0 0.0
    %1902 = vmatpush.msra.mxu0 0.0
    %1903 = vmatpush.msra.mxu0 0.0
    %1904 = vmatpush.msra.mxu0 0.0
    %1905 = vmatpush.msra.mxu0 %v1857
    %1906 = vmatpush.msra.mxu0 %v1856
    %1907 = vmatmul.f32.gmra.mxu0 %v1863
    %v1908 = vpop.f32.mrf.mxu0
    %v1909 = vadd.f32 %v1886, %v1908
    %1910 = vmatmul.f32.gmra.mxu0 %v1866
    %v1911 = vpop.f32.mrf.mxu0
    %v1912 = vadd.f32 %v1889, %v1911
    %1913 = vdwg.mxu0
    %s1914 = scalar_lea.vmem %s12, 32
    %v1915 = vld [vmem:[%s1914] sm:$0xff]
    %v1916 = vld [vmem:[%s1914 + $0x8] sm:$0xff]
    %1917 = vmatpush.msra.mxu0 0.0
    %1918 = vmatpush.msra.mxu0 0.0
    %1919 = vmatpush.msra.mxu0 0.0
    %1920 = vmatpush.msra.mxu0 0.0
    %1921 = vmatpush.msra.mxu0 0.0
    %1922 = vmatpush.msra.mxu0 0.0
    %1923 = vmatpush.msra.mxu0 0.0
    %1924 = vmatpush.msra.mxu0 0.0
    %1925 = vmatpush.msra.mxu0 0.0
    %1926 = vmatpush.msra.mxu0 0.0
    %1927 = vmatpush.msra.mxu0 0.0
    %1928 = vmatpush.msra.mxu0 0.0
    %1929 = vmatpush.msra.mxu0 0.0
    %1930 = vmatpush.msra.mxu0 0.0
    %1931 = vmatpush.msra.mxu0 %v1916
    %1932 = vmatpush.msra.mxu0 %v1915
    %1933 = vmatmul.f32.gmra.mxu0 %v1863
    %v1934 = vpop.f32.mrf.mxu0
    %v1935 = vadd.f32 0.0, %v1934
    %1936 = vmatmul.f32.gmra.mxu0 %v1866
    %v1937 = vpop.f32.mrf.mxu0
    %v1938 = vadd.f32 0.0, %v1937
    %1939 = vdwg.mxu0
    %v1940 = vadd.f32 %v1909, %v1935
    %v1941 = vadd.f32 %v1912, %v1938
    %s1942 = scalar_lea.vmem %s11, 16
    %v1943 = vld [vmem:[%s1942] sm:$0xff]
    %v1944 = vld [vmem:[%s1942 + $0x8] sm:$0x3]
    %v1946 = vsel %vm1823, %v1943, 0
    %v1949 = vsel %vm1823, %v1944, 0
    %1951 = vmatpush.msra.mxu0 0.0
    %1952 = vmatpush.msra.mxu0 0.0
    %1953 = vmatpush.msra.mxu0 0.0
    %1954 = vmatpush.msra.mxu0 0.0
    %1955 = vmatpush.msra.mxu0 0.0
    %1956 = vmatpush.msra.mxu0 0.0
    %1957 = vmatpush.msra.mxu0 0.0
    %1958 = vmatpush.msra.mxu0 0.0
    %1959 = vmatpush.msra.mxu0 0.0
    %1960 = vmatpush.msra.mxu0 0.0
    %1961 = vmatpush.msra.mxu0 0.0
    %1962 = vmatpush.msra.mxu0 0.0
    %1963 = vmatpush.msra.mxu0 0.0
    %1964 = vmatpush.msra.mxu0 0.0
    %1965 = vmatpush.msra.mxu0 0.0
    %1966 = vmatpush.msra.mxu0 %v1831
    %1967 = vmatmul.f32.gmra.mxu0 %v1946
    %v1968 = vpop.f32.mrf.mxu0
    %v1969 = vadd.f32 0.0, %v1968
    %1970 = vmatmul.f32.gmra.mxu0 %v1949
    %v1971 = vpop.f32.mrf.mxu0
    %v1972 = vadd.f32 0.0, %v1971
    %1973 = vdwg.mxu0
    %s1974 = scalar_lea.vmem %s12, 48
    %v1975 = vld [vmem:[%s1974] sm:$0xff]
    %v1976 = vld [vmem:[%s1974 + $0x8] sm:$0xff]
    %v1978 = vsel %vm1861, %v1969, 0
    %v1981 = vsel %vm1861, %v1972, 0
    %1983 = vmatpush.msra.mxu0 0.0
    %1984 = vmatpush.msra.mxu0 0.0
    %1985 = vmatpush.msra.mxu0 0.0
    %1986 = vmatpush.msra.mxu0 0.0
    %1987 = vmatpush.msra.mxu0 0.0
    %1988 = vmatpush.msra.mxu0 0.0
    %1989 = vmatpush.msra.mxu0 0.0
    %1990 = vmatpush.msra.mxu0 0.0
    %1991 = vmatpush.msra.mxu0 0.0
    %1992 = vmatpush.msra.mxu0 0.0
    %1993 = vmatpush.msra.mxu0 0.0
    %1994 = vmatpush.msra.mxu0 0.0
    %1995 = vmatpush.msra.mxu0 0.0
    %1996 = vmatpush.msra.mxu0 0.0
    %1997 = vmatpush.msra.mxu0 %v1976
    %1998 = vmatpush.msra.mxu0 %v1975
    %1999 = vmatmul.f32.gmra.mxu0 %v1978
    %v2000 = vpop.f32.mrf.mxu0
    %v2001 = vadd.f32 0.0, %v2000
    %2002 = vmatmul.f32.gmra.mxu0 %v1981
    %v2003 = vpop.f32.mrf.mxu0
    %v2004 = vadd.f32 0.0, %v2003
    %2005 = vdwg.mxu0
    %v2006 = vadd.f32 %v1940, %v2001
    %v2007 = vadd.f32 %v1941, %v2004
    %s2008 = scalar_lea.vmem %s12, 64
    %v2009 = vld [vmem:[%s2008] sm:$0xff]
    %v2010 = vld [vmem:[%s2008 + $0x8] sm:$0xff]
    %2011 = vmatpush.msra.mxu0 0.0
    %2012 = vmatpush.msra.mxu0 0.0
    %2013 = vmatpush.msra.mxu0 0.0
    %2014 = vmatpush.msra.mxu0 0.0
    %2015 = vmatpush.msra.mxu0 0.0
    %2016 = vmatpush.msra.mxu0 0.0
    %2017 = vmatpush.msra.mxu0 0.0
    %2018 = vmatpush.msra.mxu0 0.0
    %2019 = vmatpush.msra.mxu0 0.0
    %2020 = vmatpush.msra.mxu0 0.0
    %2021 = vmatpush.msra.mxu0 0.0
    %2022 = vmatpush.msra.mxu0 0.0
    %2023 = vmatpush.msra.mxu0 0.0
    %2024 = vmatpush.msra.mxu0 0.0
    %2025 = vmatpush.msra.mxu0 %v2010
    %2026 = vmatpush.msra.mxu0 %v2009
    %2027 = vmatmul.f32.gmra.mxu0 %v1978
    %v2028 = vpop.f32.mrf.mxu0
    %v2029 = vadd.f32 0.0, %v2028
    %2030 = vmatmul.f32.gmra.mxu0 %v1981
    %v2031 = vpop.f32.mrf.mxu0
    %v2032 = vadd.f32 0.0, %v2031
    %2033 = vdwg.mxu0
    %v2034 = vadd.f32 %v2006, %v2029
    %v2035 = vadd.f32 %v2007, %v2032
    %s2036 = scalar_lea.vmem %s12, 80
    %v2037 = vld [vmem:[%s2036] sm:$0xff]
    %v2038 = vld [vmem:[%s2036 + $0x8] sm:$0xff]
    %2039 = vmatpush.msra.mxu0 0.0
    %2040 = vmatpush.msra.mxu0 0.0
    %2041 = vmatpush.msra.mxu0 0.0
    %2042 = vmatpush.msra.mxu0 0.0
    %2043 = vmatpush.msra.mxu0 0.0
    %2044 = vmatpush.msra.mxu0 0.0
    %2045 = vmatpush.msra.mxu0 0.0
    %2046 = vmatpush.msra.mxu0 0.0
    %2047 = vmatpush.msra.mxu0 0.0
    %2048 = vmatpush.msra.mxu0 0.0
    %2049 = vmatpush.msra.mxu0 0.0
    %2050 = vmatpush.msra.mxu0 0.0
    %2051 = vmatpush.msra.mxu0 0.0
    %2052 = vmatpush.msra.mxu0 0.0
    %2053 = vmatpush.msra.mxu0 %v2038
    %2054 = vmatpush.msra.mxu0 %v2037
    %2055 = vmatmul.f32.gmra.mxu0 %v1978
    %v2056 = vpop.f32.mrf.mxu0
    %v2057 = vadd.f32 0.0, %v2056
    %2058 = vmatmul.f32.gmra.mxu0 %v1981
    %v2059 = vpop.f32.mrf.mxu0
    %v2060 = vadd.f32 0.0, %v2059
    %2061 = vdwg.mxu0
    %v2062 = vadd.f32 %v2034, %v2057
    %v2063 = vadd.f32 %v2035, %v2060
    %s2064 = scalar_lea.vmem %s11, 32
    %v2065 = vld [vmem:[%s2064] sm:$0xff]
    %v2066 = vld [vmem:[%s2064 + $0x8] sm:$0x3]
    %v2068 = vsel %vm1823, %v2065, 0
    %v2071 = vsel %vm1823, %v2066, 0
    %2073 = vmatpush.msra.mxu0 0.0
    %2074 = vmatpush.msra.mxu0 0.0
    %2075 = vmatpush.msra.mxu0 0.0
    %2076 = vmatpush.msra.mxu0 0.0
    %2077 = vmatpush.msra.mxu0 0.0
    %2078 = vmatpush.msra.mxu0 0.0
    %2079 = vmatpush.msra.mxu0 0.0
    %2080 = vmatpush.msra.mxu0 0.0
    %2081 = vmatpush.msra.mxu0 0.0
    %2082 = vmatpush.msra.mxu0 0.0
    %2083 = vmatpush.msra.mxu0 0.0
    %2084 = vmatpush.msra.mxu0 0.0
    %2085 = vmatpush.msra.mxu0 0.0
    %2086 = vmatpush.msra.mxu0 0.0
    %2087 = vmatpush.msra.mxu0 0.0
    %2088 = vmatpush.msra.mxu0 %v1831
    %2089 = vmatmul.f32.gmra.mxu0 %v2068
    %v2090 = vpop.f32.mrf.mxu0
    %v2091 = vadd.f32 0.0, %v2090
    %2092 = vmatmul.f32.gmra.mxu0 %v2071
    %v2093 = vpop.f32.mrf.mxu0
    %v2094 = vadd.f32 0.0, %v2093
    %2095 = vdwg.mxu0
    %s2096 = scalar_lea.vmem %s12, 96
    %v2097 = vld [vmem:[%s2096] sm:$0xff]
    %v2098 = vld [vmem:[%s2096 + $0x8] sm:$0xff]
    %v2100 = vsel %vm1861, %v2091, 0
    %v2103 = vsel %vm1861, %v2094, 0
    %2105 = vmatpush.msra.mxu0 0.0
    %2106 = vmatpush.msra.mxu0 0.0
    %2107 = vmatpush.msra.mxu0 0.0
    %2108 = vmatpush.msra.mxu0 0.0
    %2109 = vmatpush.msra.mxu0 0.0
    %2110 = vmatpush.msra.mxu0 0.0
    %2111 = vmatpush.msra.mxu0 0.0
    %2112 = vmatpush.msra.mxu0 0.0
    %2113 = vmatpush.msra.mxu0 0.0
    %2114 = vmatpush.msra.mxu0 0.0
    %2115 = vmatpush.msra.mxu0 0.0
    %2116 = vmatpush.msra.mxu0 0.0
    %2117 = vmatpush.msra.mxu0 0.0
    %2118 = vmatpush.msra.mxu0 0.0
    %2119 = vmatpush.msra.mxu0 %v2098
    %2120 = vmatpush.msra.mxu0 %v2097
    %2121 = vmatmul.f32.gmra.mxu0 %v2100
    %v2122 = vpop.f32.mrf.mxu0
    %v2123 = vadd.f32 0.0, %v2122
    %2124 = vmatmul.f32.gmra.mxu0 %v2103
    %v2125 = vpop.f32.mrf.mxu0
    %v2126 = vadd.f32 0.0, %v2125
    %2127 = vdwg.mxu0
    %v2128 = vadd.f32 %v2062, %v2123
    %v2129 = vadd.f32 %v2063, %v2126
    %s2130 = scalar_lea.vmem %s12, 112
    %v2131 = vld [vmem:[%s2130] sm:$0xff]
    %v2132 = vld [vmem:[%s2130 + $0x8] sm:$0xff]
    %2133 = vmatpush.msra.mxu0 0.0
    %2134 = vmatpush.msra.mxu0 0.0
    %2135 = vmatpush.msra.mxu0 0.0
    %2136 = vmatpush.msra.mxu0 0.0
    %2137 = vmatpush.msra.mxu0 0.0
    %2138 = vmatpush.msra.mxu0 0.0
    %2139 = vmatpush.msra.mxu0 0.0
    %2140 = vmatpush.msra.mxu0 0.0
    %2141 = vmatpush.msra.mxu0 0.0
    %2142 = vmatpush.msra.mxu0 0.0
    %2143 = vmatpush.msra.mxu0 0.0
    %2144 = vmatpush.msra.mxu0 0.0
    %2145 = vmatpush.msra.mxu0 0.0
    %2146 = vmatpush.msra.mxu0 0.0
    %2147 = vmatpush.msra.mxu0 %v2132
    %2148 = vmatpush.msra.mxu0 %v2131
    %2149 = vmatmul.f32.gmra.mxu0 %v2100
    %v2150 = vpop.f32.mrf.mxu0
    %v2151 = vadd.f32 0.0, %v2150
    %2152 = vmatmul.f32.gmra.mxu0 %v2103
    %v2153 = vpop.f32.mrf.mxu0
    %v2154 = vadd.f32 0.0, %v2153
    %2155 = vdwg.mxu0
    %v2156 = vadd.f32 %v2128, %v2151
    %v2157 = vadd.f32 %v2129, %v2154
    %s2158 = scalar_lea.vmem %s12, 128
    %v2159 = vld [vmem:[%s2158] sm:$0xff]
    %v2160 = vld [vmem:[%s2158 + $0x8] sm:$0xff]
    %2161 = vmatpush.msra.mxu0 0.0
    %2162 = vmatpush.msra.mxu0 0.0
    %2163 = vmatpush.msra.mxu0 0.0
    %2164 = vmatpush.msra.mxu0 0.0
    %2165 = vmatpush.msra.mxu0 0.0
    %2166 = vmatpush.msra.mxu0 0.0
    %2167 = vmatpush.msra.mxu0 0.0
    %2168 = vmatpush.msra.mxu0 0.0
    %2169 = vmatpush.msra.mxu0 0.0
    %2170 = vmatpush.msra.mxu0 0.0
    %2171 = vmatpush.msra.mxu0 0.0
    %2172 = vmatpush.msra.mxu0 0.0
    %2173 = vmatpush.msra.mxu0 0.0
    %2174 = vmatpush.msra.mxu0 0.0
    %2175 = vmatpush.msra.mxu0 %v2160
    %2176 = vmatpush.msra.mxu0 %v2159
    %2177 = vmatmul.f32.gmra.mxu0 %v2100
    %v2178 = vpop.f32.mrf.mxu0
    %v2179 = vadd.f32 0.0, %v2178
    %2180 = vmatmul.f32.gmra.mxu0 %v2103
    %v2181 = vpop.f32.mrf.mxu0
    %v2182 = vadd.f32 0.0, %v2181
    %2183 = vdwg.mxu0
    %v2184 = vadd.f32 %v2156, %v2179
    %v2185 = vadd.f32 %v2157, %v2182
    %v2186 = vld [vmem:[%s13] sm:$0x1]
    %v2188 = vperm.slane %v2186, 0
    %v2190 = vadd.f32 %v2184, %v2188
    %v2191 = vadd.f32 %v2185, %v2188
    %vm2192 = vcmp.gt.f32.partialorder %v2190, 20.0
    %vm2193 = vcmp.gt.f32.partialorder %v2191, 20.0
    %v2194 = vmin.f32 %v2190, 20.0
    %v2195 = vmin.f32 %v2191, 20.0
    %v2196 = vmul.f32 %v2194, 1.442695
    %v2197 = vpow.pop %v2196
    %v2198 = vmul.f32 %v2195, 1.442695
    %v2199 = vpow.pop %v2198
    %v2200 = vadd.f32 %v2197, 1.0
    %v2201 = vadd.f32 %v2199, 1.0
    %v2202 = vlog2.pop %v2200
    %v2203 = vmul.f32 %v2202, 0.6931472
    %v2204 = vlog2.pop %v2201
    %v2205 = vmul.f32 %v2204, 0.6931472
    %v2206 = vsel %vm2192, %v2190, %v2203
    %v2207 = vsel %vm2193, %v2191, %v2205
    %v2208 = vld [vmem:[%s14] sm:$0xff]
    %v2209 = vld [vmem:[%s14 + $0x8] sm:$0xff]
    %v2210 = vld [vmem:[%s14 + $0x10] sm:$0xff]
    %v2211 = vld [vmem:[%s14 + $0x18] sm:$0x3f]
    %v2213 = vsel %vm1284, %v2208, 0
    %v2216 = vsel %vm1284, %v2209, 0
    %v2219 = vsel %vm1284, %v2210, 0
    %v2222 = vsel %vm1284, %v2211, 0
    %v2225 = vsel %vm1288, %v2207, 0
    %2227 = vmatpush.msra.mxu0 0.0
    %2228 = vmatpush.msra.mxu0 0.0
    %2229 = vmatpush.msra.mxu0 0.0
    %2230 = vmatpush.msra.mxu0 0.0
    %2231 = vmatpush.msra.mxu0 0.0
    %2232 = vmatpush.msra.mxu0 0.0
    %2233 = vmatpush.msra.mxu0 0.0
    %2234 = vmatpush.msra.mxu0 0.0
    %2235 = vmatpush.msra.mxu0 0.0
    %2236 = vmatpush.msra.mxu0 0.0
    %2237 = vmatpush.msra.mxu0 0.0
    %2238 = vmatpush.msra.mxu0 0.0
    %2239 = vmatpush.msra.mxu0 0.0
    %2240 = vmatpush.msra.mxu0 0.0
    %2241 = vmatpush.msra.mxu0 %v2225
    %2242 = vmatpush.msra.mxu0 %v2206
    %2243 = vmatmul.f32.gmra.mxu0 %v2213
    %v2244 = vpop.f32.mrf.mxu0
    %v2245 = vadd.f32 0.0, %v2244
    %2246 = vmatmul.f32.gmra.mxu0 %v2216
    %v2247 = vpop.f32.mrf.mxu0
    %v2248 = vadd.f32 0.0, %v2247
    %2249 = vmatmul.f32.gmra.mxu0 %v2219
    %v2250 = vpop.f32.mrf.mxu0
    %v2251 = vadd.f32 0.0, %v2250
    %2252 = vmatmul.f32.gmra.mxu0 %v2222
    %v2253 = vpop.f32.mrf.mxu0
    %v2254 = vadd.f32 0.0, %v2253
    %2255 = vdwg.mxu0
    %v2256 = vld [vmem:[%s15] sm:$0xff]
    %v2257 = vld [vmem:[%s15 + $0x8] sm:$0xff]
    %v2258 = vld [vmem:[%s15 + $0x10] sm:$0xff]
    %v2259 = vld [vmem:[%s15 + $0x18] sm:$0xff]
    %v2260 = vld [vmem:[%s15 + $0x20] sm:$0xff]
    %v2261 = vld [vmem:[%s15 + $0x28] sm:$0xff]
    %v2262 = vld [vmem:[%s15 + $0x30] sm:$0xff]
    %v2263 = vld [vmem:[%s15 + $0x38] sm:$0xff]
    %v2264 = vld [vmem:[%s15 + $0x40] sm:$0xff]
    %v2265 = vld [vmem:[%s15 + $0x48] sm:$0xff]
    %s2266 = scalar_lea.vmem %s15, 80
    %v2267 = vld [vmem:[%s2266] sm:$0xff]
    %v2268 = vld [vmem:[%s2266 + $0x8] sm:$0xff]
    %v2269 = vld [vmem:[%s2266 + $0x10] sm:$0xff]
    %v2270 = vld [vmem:[%s2266 + $0x18] sm:$0xff]
    %v2271 = vld [vmem:[%s2266 + $0x20] sm:$0xff]
    %v2272 = vld [vmem:[%s2266 + $0x28] sm:$0xff]
    %v2273 = vld [vmem:[%s2266 + $0x30] sm:$0xff]
    %v2274 = vld [vmem:[%s2266 + $0x38] sm:$0xff]
    %v2275 = vld [vmem:[%s2266 + $0x40] sm:$0xff]
    %v2276 = vld [vmem:[%s2266 + $0x48] sm:$0xff]
    %v2278 = vsel %vm1333, %v2245, 0
    %v2281 = vsel %vm1333, %v2248, 0
    %v2284 = vsel %vm1333, %v2251, 0
    %v2287 = vsel %vm1333, %v2254, 0
    %2289 = vmatpush.msra.mxu0 0.0
    %2290 = vmatpush.msra.mxu0 0.0
    %2291 = vmatpush.msra.mxu0 0.0
    %2292 = vmatpush.msra.mxu0 0.0
    %2293 = vmatpush.msra.mxu0 0.0
    %2294 = vmatpush.msra.mxu0 0.0
    %2295 = vmatpush.msra.mxu0 %v2276
    %2296 = vmatpush.msra.mxu0 %v2275
    %2297 = vmatpush.msra.mxu0 %v2274
    %2298 = vmatpush.msra.mxu0 %v2273
    %2299 = vmatpush.msra.mxu0 %v2272
    %2300 = vmatpush.msra.mxu0 %v2271
    %2301 = vmatpush.msra.mxu0 %v2270
    %2302 = vmatpush.msra.mxu0 %v2269
    %2303 = vmatpush.msra.mxu0 %v2268
    %2304 = vmatpush.msra.mxu0 %v2267
    %2305 = vmatmul.f32.gmra.mxu0 %v2278
    %v2306 = vpop.f32.mrf.mxu0
    %v2307 = vadd.f32 0.0, %v2306
    %2308 = vmatmul.f32.gmra.mxu0 %v2281
    %v2309 = vpop.f32.mrf.mxu0
    %v2310 = vadd.f32 0.0, %v2309
    %2311 = vmatmul.f32.gmra.mxu0 %v2284
    %v2312 = vpop.f32.mrf.mxu0
    %v2313 = vadd.f32 0.0, %v2312
    %2314 = vmatmul.f32.gmra.mxu0 %v2287
    %v2315 = vpop.f32.mrf.mxu0
    %v2316 = vadd.f32 0.0, %v2315
    %2317 = vdwg.mxu0
    %2318 = vmatpush.msra.mxu0 0.0
    %2319 = vmatpush.msra.mxu0 0.0
    %2320 = vmatpush.msra.mxu0 0.0
    %2321 = vmatpush.msra.mxu0 0.0
    %2322 = vmatpush.msra.mxu0 0.0
    %2323 = vmatpush.msra.mxu0 0.0
    %2324 = vmatpush.msra.mxu0 %v2265
    %2325 = vmatpush.msra.mxu0 %v2264
    %2326 = vmatpush.msra.mxu0 %v2263
    %2327 = vmatpush.msra.mxu0 %v2262
    %2328 = vmatpush.msra.mxu0 %v2261
    %2329 = vmatpush.msra.mxu0 %v2260
    %2330 = vmatpush.msra.mxu0 %v2259
    %2331 = vmatpush.msra.mxu0 %v2258
    %2332 = vmatpush.msra.mxu0 %v2257
    %2333 = vmatpush.msra.mxu0 %v2256
    %2334 = vmatmul.f32.gmra.mxu0 %v2278
    %v2335 = vpop.f32.mrf.mxu0
    %v2336 = vadd.f32 %v2307, %v2335
    %2337 = vmatmul.f32.gmra.mxu0 %v2281
    %v2338 = vpop.f32.mrf.mxu0
    %v2339 = vadd.f32 %v2310, %v2338
    %2340 = vmatmul.f32.gmra.mxu0 %v2284
    %v2341 = vpop.f32.mrf.mxu0
    %v2342 = vadd.f32 %v2313, %v2341
    %2343 = vmatmul.f32.gmra.mxu0 %v2287
    %v2344 = vpop.f32.mrf.mxu0
    %v2345 = vadd.f32 %v2316, %v2344
    %2346 = vdwg.mxu0
    %s2347 = scalar_lea.vmem %s15, 160
    %v2348 = vld [vmem:[%s2347] sm:$0xff]
    %v2349 = vld [vmem:[%s2347 + $0x8] sm:$0xff]
    %v2350 = vld [vmem:[%s2347 + $0x10] sm:$0xff]
    %v2351 = vld [vmem:[%s2347 + $0x18] sm:$0xff]
    %v2352 = vld [vmem:[%s2347 + $0x20] sm:$0xff]
    %v2353 = vld [vmem:[%s2347 + $0x28] sm:$0xff]
    %v2354 = vld [vmem:[%s2347 + $0x30] sm:$0xff]
    %v2355 = vld [vmem:[%s2347 + $0x38] sm:$0xff]
    %v2356 = vld [vmem:[%s2347 + $0x40] sm:$0xff]
    %v2357 = vld [vmem:[%s2347 + $0x48] sm:$0xff]
    %2358 = vmatpush.msra.mxu0 0.0
    %2359 = vmatpush.msra.mxu0 0.0
    %2360 = vmatpush.msra.mxu0 0.0
    %2361 = vmatpush.msra.mxu0 0.0
    %2362 = vmatpush.msra.mxu0 0.0
    %2363 = vmatpush.msra.mxu0 0.0
    %2364 = vmatpush.msra.mxu0 %v2357
    %2365 = vmatpush.msra.mxu0 %v2356
    %2366 = vmatpush.msra.mxu0 %v2355
    %2367 = vmatpush.msra.mxu0 %v2354
    %2368 = vmatpush.msra.mxu0 %v2353
    %2369 = vmatpush.msra.mxu0 %v2352
    %2370 = vmatpush.msra.mxu0 %v2351
    %2371 = vmatpush.msra.mxu0 %v2350
    %2372 = vmatpush.msra.mxu0 %v2349
    %2373 = vmatpush.msra.mxu0 %v2348
    %2374 = vmatmul.f32.gmra.mxu0 %v2278
    %v2375 = vpop.f32.mrf.mxu0
    %v2376 = vadd.f32 0.0, %v2375
    %2377 = vmatmul.f32.gmra.mxu0 %v2281
    %v2378 = vpop.f32.mrf.mxu0
    %v2379 = vadd.f32 0.0, %v2378
    %2380 = vmatmul.f32.gmra.mxu0 %v2284
    %v2381 = vpop.f32.mrf.mxu0
    %v2382 = vadd.f32 0.0, %v2381
    %2383 = vmatmul.f32.gmra.mxu0 %v2287
    %v2384 = vpop.f32.mrf.mxu0
    %v2385 = vadd.f32 0.0, %v2384
    %2386 = vdwg.mxu0
    %v2387 = vadd.f32 %v2336, %v2376
    %v2388 = vadd.f32 %v2339, %v2379
    %v2389 = vadd.f32 %v2342, %v2382
    %v2390 = vadd.f32 %v2345, %v2385
    %s2391 = scalar_lea.vmem %s15, 240
    %v2392 = vld [vmem:[%s2391] sm:$0xff]
    %v2393 = vld [vmem:[%s2391 + $0x8] sm:$0xff]
    %v2394 = vld [vmem:[%s2391 + $0x10] sm:$0xff]
    %v2395 = vld [vmem:[%s2391 + $0x18] sm:$0xff]
    %v2396 = vld [vmem:[%s2391 + $0x20] sm:$0xff]
    %v2397 = vld [vmem:[%s2391 + $0x28] sm:$0xff]
    %v2398 = vld [vmem:[%s2391 + $0x30] sm:$0xff]
    %v2399 = vld [vmem:[%s2391 + $0x38] sm:$0xff]
    %v2400 = vld [vmem:[%s2391 + $0x40] sm:$0xff]
    %v2401 = vld [vmem:[%s2391 + $0x48] sm:$0xff]
    %2402 = vmatpush.msra.mxu0 0.0
    %2403 = vmatpush.msra.mxu0 0.0
    %2404 = vmatpush.msra.mxu0 0.0
    %2405 = vmatpush.msra.mxu0 0.0
    %2406 = vmatpush.msra.mxu0 0.0
    %2407 = vmatpush.msra.mxu0 0.0
    %2408 = vmatpush.msra.mxu0 %v2401
    %2409 = vmatpush.msra.mxu0 %v2400
    %2410 = vmatpush.msra.mxu0 %v2399
    %2411 = vmatpush.msra.mxu0 %v2398
    %2412 = vmatpush.msra.mxu0 %v2397
    %2413 = vmatpush.msra.mxu0 %v2396
    %2414 = vmatpush.msra.mxu0 %v2395
    %2415 = vmatpush.msra.mxu0 %v2394
    %2416 = vmatpush.msra.mxu0 %v2393
    %2417 = vmatpush.msra.mxu0 %v2392
    %2418 = vmatmul.f32.gmra.mxu0 %v2278
    %v2419 = vpop.f32.mrf.mxu0
    %v2420 = vadd.f32 0.0, %v2419
    %2421 = vmatmul.f32.gmra.mxu0 %v2281
    %v2422 = vpop.f32.mrf.mxu0
    %v2423 = vadd.f32 0.0, %v2422
    %2424 = vmatmul.f32.gmra.mxu0 %v2284
    %v2425 = vpop.f32.mrf.mxu0
    %v2426 = vadd.f32 0.0, %v2425
    %2427 = vmatmul.f32.gmra.mxu0 %v2287
    %v2428 = vpop.f32.mrf.mxu0
    %v2429 = vadd.f32 0.0, %v2428
    %2430 = vdwg.mxu0
    %v2431 = vadd.f32 %v2387, %v2420
    %v2432 = vadd.f32 %v2388, %v2423
    %v2433 = vadd.f32 %v2389, %v2426
    %v2434 = vadd.f32 %v2390, %v2429
    %s2435 = scalar_lea.vmem %s15, 320
    %v2436 = vld [vmem:[%s2435] sm:$0xff]
    %v2437 = vld [vmem:[%s2435 + $0x8] sm:$0xff]
    %v2438 = vld [vmem:[%s2435 + $0x10] sm:$0xff]
    %v2439 = vld [vmem:[%s2435 + $0x18] sm:$0xff]
    %v2440 = vld [vmem:[%s2435 + $0x20] sm:$0xff]
    %v2441 = vld [vmem:[%s2435 + $0x28] sm:$0xff]
    %v2442 = vld [vmem:[%s2435 + $0x30] sm:$0xff]
    %v2443 = vld [vmem:[%s2435 + $0x38] sm:$0xff]
    %v2444 = vld [vmem:[%s2435 + $0x40] sm:$0xff]
    %v2445 = vld [vmem:[%s2435 + $0x48] sm:$0xff]
    %2446 = vmatpush.msra.mxu0 0.0
    %2447 = vmatpush.msra.mxu0 0.0
    %2448 = vmatpush.msra.mxu0 0.0
    %2449 = vmatpush.msra.mxu0 0.0
    %2450 = vmatpush.msra.mxu0 0.0
    %2451 = vmatpush.msra.mxu0 0.0
    %2452 = vmatpush.msra.mxu0 %v2445
    %2453 = vmatpush.msra.mxu0 %v2444
    %2454 = vmatpush.msra.mxu0 %v2443
    %2455 = vmatpush.msra.mxu0 %v2442
    %2456 = vmatpush.msra.mxu0 %v2441
    %2457 = vmatpush.msra.mxu0 %v2440
    %2458 = vmatpush.msra.mxu0 %v2439
    %2459 = vmatpush.msra.mxu0 %v2438
    %2460 = vmatpush.msra.mxu0 %v2437
    %2461 = vmatpush.msra.mxu0 %v2436
    %2462 = vmatmul.f32.gmra.mxu0 %v2278
    %v2463 = vpop.f32.mrf.mxu0
    %v2464 = vadd.f32 0.0, %v2463
    %2465 = vmatmul.f32.gmra.mxu0 %v2281
    %v2466 = vpop.f32.mrf.mxu0
    %v2467 = vadd.f32 0.0, %v2466
    %2468 = vmatmul.f32.gmra.mxu0 %v2284
    %v2469 = vpop.f32.mrf.mxu0
    %v2470 = vadd.f32 0.0, %v2469
    %2471 = vmatmul.f32.gmra.mxu0 %v2287
    %v2472 = vpop.f32.mrf.mxu0
    %v2473 = vadd.f32 0.0, %v2472
    %2474 = vdwg.mxu0
    %v2475 = vadd.f32 %v2431, %v2464
    %v2476 = vadd.f32 %v2432, %v2467
    %v2477 = vadd.f32 %v2433, %v2470
    %v2478 = vadd.f32 %v2434, %v2473
    %s2479 = scalar_lea.vmem %s14, 32
    %v2480 = vld [vmem:[%s2479] sm:$0xff]
    %v2481 = vld [vmem:[%s2479 + $0x8] sm:$0xff]
    %v2482 = vld [vmem:[%s2479 + $0x10] sm:$0xff]
    %v2483 = vld [vmem:[%s2479 + $0x18] sm:$0x3f]
    %v2485 = vsel %vm1284, %v2480, 0
    %v2488 = vsel %vm1284, %v2481, 0
    %v2491 = vsel %vm1284, %v2482, 0
    %v2494 = vsel %vm1284, %v2483, 0
    %2496 = vmatpush.msra.mxu0 0.0
    %2497 = vmatpush.msra.mxu0 0.0
    %2498 = vmatpush.msra.mxu0 0.0
    %2499 = vmatpush.msra.mxu0 0.0
    %2500 = vmatpush.msra.mxu0 0.0
    %2501 = vmatpush.msra.mxu0 0.0
    %2502 = vmatpush.msra.mxu0 0.0
    %2503 = vmatpush.msra.mxu0 0.0
    %2504 = vmatpush.msra.mxu0 0.0
    %2505 = vmatpush.msra.mxu0 0.0
    %2506 = vmatpush.msra.mxu0 0.0
    %2507 = vmatpush.msra.mxu0 0.0
    %2508 = vmatpush.msra.mxu0 0.0
    %2509 = vmatpush.msra.mxu0 0.0
    %2510 = vmatpush.msra.mxu0 %v2225
    %2511 = vmatpush.msra.mxu0 %v2206
    %2512 = vmatmul.f32.gmra.mxu0 %v2485
    %v2513 = vpop.f32.mrf.mxu0
    %v2514 = vadd.f32 0.0, %v2513
    %2515 = vmatmul.f32.gmra.mxu0 %v2488
    %v2516 = vpop.f32.mrf.mxu0
    %v2517 = vadd.f32 0.0, %v2516
    %2518 = vmatmul.f32.gmra.mxu0 %v2491
    %v2519 = vpop.f32.mrf.mxu0
    %v2520 = vadd.f32 0.0, %v2519
    %2521 = vmatmul.f32.gmra.mxu0 %v2494
    %v2522 = vpop.f32.mrf.mxu0
    %v2523 = vadd.f32 0.0, %v2522
    %2524 = vdwg.mxu0
    %s2525 = scalar_lea.vmem %s15, 400
    %v2526 = vld [vmem:[%s2525] sm:$0xff]
    %v2527 = vld [vmem:[%s2525 + $0x8] sm:$0xff]
    %v2528 = vld [vmem:[%s2525 + $0x10] sm:$0xff]
    %v2529 = vld [vmem:[%s2525 + $0x18] sm:$0xff]
    %v2530 = vld [vmem:[%s2525 + $0x20] sm:$0xff]
    %v2531 = vld [vmem:[%s2525 + $0x28] sm:$0xff]
    %v2532 = vld [vmem:[%s2525 + $0x30] sm:$0xff]
    %v2533 = vld [vmem:[%s2525 + $0x38] sm:$0xff]
    %v2534 = vld [vmem:[%s2525 + $0x40] sm:$0xff]
    %v2535 = vld [vmem:[%s2525 + $0x48] sm:$0xff]
    %v2537 = vsel %vm1333, %v2514, 0
    %v2540 = vsel %vm1333, %v2517, 0
    %v2543 = vsel %vm1333, %v2520, 0
    %v2546 = vsel %vm1333, %v2523, 0
    %2548 = vmatpush.msra.mxu0 0.0
    %2549 = vmatpush.msra.mxu0 0.0
    %2550 = vmatpush.msra.mxu0 0.0
    %2551 = vmatpush.msra.mxu0 0.0
    %2552 = vmatpush.msra.mxu0 0.0
    %2553 = vmatpush.msra.mxu0 0.0
    %2554 = vmatpush.msra.mxu0 %v2535
    %2555 = vmatpush.msra.mxu0 %v2534
    %2556 = vmatpush.msra.mxu0 %v2533
    %2557 = vmatpush.msra.mxu0 %v2532
    %2558 = vmatpush.msra.mxu0 %v2531
    %2559 = vmatpush.msra.mxu0 %v2530
    %2560 = vmatpush.msra.mxu0 %v2529
    %2561 = vmatpush.msra.mxu0 %v2528
    %2562 = vmatpush.msra.mxu0 %v2527
    %2563 = vmatpush.msra.mxu0 %v2526
    %2564 = vmatmul.f32.gmra.mxu0 %v2537
    %v2565 = vpop.f32.mrf.mxu0
    %v2566 = vadd.f32 0.0, %v2565
    %2567 = vmatmul.f32.gmra.mxu0 %v2540
    %v2568 = vpop.f32.mrf.mxu0
    %v2569 = vadd.f32 0.0, %v2568
    %2570 = vmatmul.f32.gmra.mxu0 %v2543
    %v2571 = vpop.f32.mrf.mxu0
    %v2572 = vadd.f32 0.0, %v2571
    %2573 = vmatmul.f32.gmra.mxu0 %v2546
    %v2574 = vpop.f32.mrf.mxu0
    %v2575 = vadd.f32 0.0, %v2574
    %2576 = vdwg.mxu0
    %v2577 = vadd.f32 %v2475, %v2566
    %v2578 = vadd.f32 %v2476, %v2569
    %v2579 = vadd.f32 %v2477, %v2572
    %v2580 = vadd.f32 %v2478, %v2575
    %s2581 = scalar_lea.vmem %s15, 480
    %v2582 = vld [vmem:[%s2581] sm:$0xff]
    %v2583 = vld [vmem:[%s2581 + $0x8] sm:$0xff]
    %v2584 = vld [vmem:[%s2581 + $0x10] sm:$0xff]
    %v2585 = vld [vmem:[%s2581 + $0x18] sm:$0xff]
    %v2586 = vld [vmem:[%s2581 + $0x20] sm:$0xff]
    %v2587 = vld [vmem:[%s2581 + $0x28] sm:$0xff]
    %v2588 = vld [vmem:[%s2581 + $0x30] sm:$0xff]
    %v2589 = vld [vmem:[%s2581 + $0x38] sm:$0xff]
    %v2590 = vld [vmem:[%s2581 + $0x40] sm:$0xff]
    %v2591 = vld [vmem:[%s2581 + $0x48] sm:$0xff]
    %2592 = vmatpush.msra.mxu0 0.0
    %2593 = vmatpush.msra.mxu0 0.0
    %2594 = vmatpush.msra.mxu0 0.0
    %2595 = vmatpush.msra.mxu0 0.0
    %2596 = vmatpush.msra.mxu0 0.0
    %2597 = vmatpush.msra.mxu0 0.0
    %2598 = vmatpush.msra.mxu0 %v2591
    %2599 = vmatpush.msra.mxu0 %v2590
    %2600 = vmatpush.msra.mxu0 %v2589
    %2601 = vmatpush.msra.mxu0 %v2588
    %2602 = vmatpush.msra.mxu0 %v2587
    %2603 = vmatpush.msra.mxu0 %v2586
    %2604 = vmatpush.msra.mxu0 %v2585
    %2605 = vmatpush.msra.mxu0 %v2584
    %2606 = vmatpush.msra.mxu0 %v2583
    %2607 = vmatpush.msra.mxu0 %v2582
    %2608 = vmatmul.f32.gmra.mxu0 %v2537
    %v2609 = vpop.f32.mrf.mxu0
    %v2610 = vadd.f32 0.0, %v2609
    %2611 = vmatmul.f32.gmra.mxu0 %v2540
    %v2612 = vpop.f32.mrf.mxu0
    %v2613 = vadd.f32 0.0, %v2612
    %2614 = vmatmul.f32.gmra.mxu0 %v2543
    %v2615 = vpop.f32.mrf.mxu0
    %v2616 = vadd.f32 0.0, %v2615
    %2617 = vmatmul.f32.gmra.mxu0 %v2546
    %v2618 = vpop.f32.mrf.mxu0
    %v2619 = vadd.f32 0.0, %v2618
    %2620 = vdwg.mxu0
    %v2621 = vadd.f32 %v2577, %v2610
    %v2622 = vadd.f32 %v2578, %v2613
    %v2623 = vadd.f32 %v2579, %v2616
    %v2624 = vadd.f32 %v2580, %v2619
    %s2625 = scalar_lea.vmem %s15, 560
    %v2626 = vld [vmem:[%s2625] sm:$0xff]
    %v2627 = vld [vmem:[%s2625 + $0x8] sm:$0xff]
    %v2628 = vld [vmem:[%s2625 + $0x10] sm:$0xff]
    %v2629 = vld [vmem:[%s2625 + $0x18] sm:$0xff]
    %v2630 = vld [vmem:[%s2625 + $0x20] sm:$0xff]
    %v2631 = vld [vmem:[%s2625 + $0x28] sm:$0xff]
    %v2632 = vld [vmem:[%s2625 + $0x30] sm:$0xff]
    %v2633 = vld [vmem:[%s2625 + $0x38] sm:$0xff]
    %v2634 = vld [vmem:[%s2625 + $0x40] sm:$0xff]
    %v2635 = vld [vmem:[%s2625 + $0x48] sm:$0xff]
    %2636 = vmatpush.msra.mxu0 0.0
    %2637 = vmatpush.msra.mxu0 0.0
    %2638 = vmatpush.msra.mxu0 0.0
    %2639 = vmatpush.msra.mxu0 0.0
    %2640 = vmatpush.msra.mxu0 0.0
    %2641 = vmatpush.msra.mxu0 0.0
    %2642 = vmatpush.msra.mxu0 %v2635
    %2643 = vmatpush.msra.mxu0 %v2634
    %2644 = vmatpush.msra.mxu0 %v2633
    %2645 = vmatpush.msra.mxu0 %v2632
    %2646 = vmatpush.msra.mxu0 %v2631
    %2647 = vmatpush.msra.mxu0 %v2630
    %2648 = vmatpush.msra.mxu0 %v2629
    %2649 = vmatpush.msra.mxu0 %v2628
    %2650 = vmatpush.msra.mxu0 %v2627
    %2651 = vmatpush.msra.mxu0 %v2626
    %2652 = vmatmul.f32.gmra.mxu0 %v2537
    %v2653 = vpop.f32.mrf.mxu0
    %v2654 = vadd.f32 0.0, %v2653
    %2655 = vmatmul.f32.gmra.mxu0 %v2540
    %v2656 = vpop.f32.mrf.mxu0
    %v2657 = vadd.f32 0.0, %v2656
    %2658 = vmatmul.f32.gmra.mxu0 %v2543
    %v2659 = vpop.f32.mrf.mxu0
    %v2660 = vadd.f32 0.0, %v2659
    %2661 = vmatmul.f32.gmra.mxu0 %v2546
    %v2662 = vpop.f32.mrf.mxu0
    %v2663 = vadd.f32 0.0, %v2662
    %2664 = vdwg.mxu0
    %v2665 = vadd.f32 %v2621, %v2654
    %v2666 = vadd.f32 %v2622, %v2657
    %v2667 = vadd.f32 %v2623, %v2660
    %v2668 = vadd.f32 %v2624, %v2663
    %s2669 = scalar_lea.vmem %s15, 640
    %v2670 = vld [vmem:[%s2669] sm:$0xff]
    %v2671 = vld [vmem:[%s2669 + $0x8] sm:$0xff]
    %v2672 = vld [vmem:[%s2669 + $0x10] sm:$0xff]
    %v2673 = vld [vmem:[%s2669 + $0x18] sm:$0xff]
    %v2674 = vld [vmem:[%s2669 + $0x20] sm:$0xff]
    %v2675 = vld [vmem:[%s2669 + $0x28] sm:$0xff]
    %v2676 = vld [vmem:[%s2669 + $0x30] sm:$0xff]
    %v2677 = vld [vmem:[%s2669 + $0x38] sm:$0xff]
    %v2678 = vld [vmem:[%s2669 + $0x40] sm:$0xff]
    %v2679 = vld [vmem:[%s2669 + $0x48] sm:$0xff]
    %2680 = vmatpush.msra.mxu0 0.0
    %2681 = vmatpush.msra.mxu0 0.0
    %2682 = vmatpush.msra.mxu0 0.0
    %2683 = vmatpush.msra.mxu0 0.0
    %2684 = vmatpush.msra.mxu0 0.0
    %2685 = vmatpush.msra.mxu0 0.0
    %2686 = vmatpush.msra.mxu0 %v2679
    %2687 = vmatpush.msra.mxu0 %v2678
    %2688 = vmatpush.msra.mxu0 %v2677
    %2689 = vmatpush.msra.mxu0 %v2676
    %2690 = vmatpush.msra.mxu0 %v2675
    %2691 = vmatpush.msra.mxu0 %v2674
    %2692 = vmatpush.msra.mxu0 %v2673
    %2693 = vmatpush.msra.mxu0 %v2672
    %2694 = vmatpush.msra.mxu0 %v2671
    %2695 = vmatpush.msra.mxu0 %v2670
    %2696 = vmatmul.f32.gmra.mxu0 %v2537
    %v2697 = vpop.f32.mrf.mxu0
    %v2698 = vadd.f32 0.0, %v2697
    %2699 = vmatmul.f32.gmra.mxu0 %v2540
    %v2700 = vpop.f32.mrf.mxu0
    %v2701 = vadd.f32 0.0, %v2700
    %2702 = vmatmul.f32.gmra.mxu0 %v2543
    %v2703 = vpop.f32.mrf.mxu0
    %v2704 = vadd.f32 0.0, %v2703
    %2705 = vmatmul.f32.gmra.mxu0 %v2546
    %v2706 = vpop.f32.mrf.mxu0
    %v2707 = vadd.f32 0.0, %v2706
    %2708 = vdwg.mxu0
    %v2709 = vadd.f32 %v2665, %v2698
    %v2710 = vadd.f32 %v2666, %v2701
    %v2711 = vadd.f32 %v2667, %v2704
    %v2712 = vadd.f32 %v2668, %v2707
    %s2713 = scalar_lea.vmem %s15, 720
    %v2714 = vld [vmem:[%s2713] sm:$0xff]
    %v2715 = vld [vmem:[%s2713 + $0x8] sm:$0xff]
    %v2716 = vld [vmem:[%s2713 + $0x10] sm:$0xff]
    %v2717 = vld [vmem:[%s2713 + $0x18] sm:$0xff]
    %v2718 = vld [vmem:[%s2713 + $0x20] sm:$0xff]
    %v2719 = vld [vmem:[%s2713 + $0x28] sm:$0xff]
    %v2720 = vld [vmem:[%s2713 + $0x30] sm:$0xff]
    %v2721 = vld [vmem:[%s2713 + $0x38] sm:$0xff]
    %v2722 = vld [vmem:[%s2713 + $0x40] sm:$0xff]
    %v2723 = vld [vmem:[%s2713 + $0x48] sm:$0xff]
    %2724 = vmatpush.msra.mxu0 0.0
    %2725 = vmatpush.msra.mxu0 0.0
    %2726 = vmatpush.msra.mxu0 0.0
    %2727 = vmatpush.msra.mxu0 0.0
    %2728 = vmatpush.msra.mxu0 0.0
    %2729 = vmatpush.msra.mxu0 0.0
    %2730 = vmatpush.msra.mxu0 %v2723
    %2731 = vmatpush.msra.mxu0 %v2722
    %2732 = vmatpush.msra.mxu0 %v2721
    %2733 = vmatpush.msra.mxu0 %v2720
    %2734 = vmatpush.msra.mxu0 %v2719
    %2735 = vmatpush.msra.mxu0 %v2718
    %2736 = vmatpush.msra.mxu0 %v2717
    %2737 = vmatpush.msra.mxu0 %v2716
    %2738 = vmatpush.msra.mxu0 %v2715
    %2739 = vmatpush.msra.mxu0 %v2714
    %2740 = vmatmul.f32.gmra.mxu0 %v2537
    %v2741 = vpop.f32.mrf.mxu0
    %v2742 = vadd.f32 0.0, %v2741
    %2743 = vmatmul.f32.gmra.mxu0 %v2540
    %v2744 = vpop.f32.mrf.mxu0
    %v2745 = vadd.f32 0.0, %v2744
    %2746 = vmatmul.f32.gmra.mxu0 %v2543
    %v2747 = vpop.f32.mrf.mxu0
    %v2748 = vadd.f32 0.0, %v2747
    %2749 = vmatmul.f32.gmra.mxu0 %v2546
    %v2750 = vpop.f32.mrf.mxu0
    %v2751 = vadd.f32 0.0, %v2750
    %2752 = vdwg.mxu0
    %v2753 = vadd.f32 %v2709, %v2742
    %v2754 = vadd.f32 %v2710, %v2745
    %v2755 = vadd.f32 %v2711, %v2748
    %v2756 = vadd.f32 %v2712, %v2751
    %s2757 = scalar_lea.vmem %s14, 64
    %v2758 = vld [vmem:[%s2757] sm:$0xff]
    %v2759 = vld [vmem:[%s2757 + $0x8] sm:$0xff]
    %v2760 = vld [vmem:[%s2757 + $0x10] sm:$0xff]
    %v2761 = vld [vmem:[%s2757 + $0x18] sm:$0x3f]
    %v2763 = vsel %vm1284, %v2758, 0
    %v2766 = vsel %vm1284, %v2759, 0
    %v2769 = vsel %vm1284, %v2760, 0
    %v2772 = vsel %vm1284, %v2761, 0
    %2774 = vmatpush.msra.mxu0 0.0
    %2775 = vmatpush.msra.mxu0 0.0
    %2776 = vmatpush.msra.mxu0 0.0
    %2777 = vmatpush.msra.mxu0 0.0
    %2778 = vmatpush.msra.mxu0 0.0
    %2779 = vmatpush.msra.mxu0 0.0
    %2780 = vmatpush.msra.mxu0 0.0
    %2781 = vmatpush.msra.mxu0 0.0
    %2782 = vmatpush.msra.mxu0 0.0
    %2783 = vmatpush.msra.mxu0 0.0
    %2784 = vmatpush.msra.mxu0 0.0
    %2785 = vmatpush.msra.mxu0 0.0
    %2786 = vmatpush.msra.mxu0 0.0
    %2787 = vmatpush.msra.mxu0 0.0
    %2788 = vmatpush.msra.mxu0 %v2225
    %2789 = vmatpush.msra.mxu0 %v2206
    %2790 = vmatmul.f32.gmra.mxu0 %v2763
    %v2791 = vpop.f32.mrf.mxu0
    %v2792 = vadd.f32 0.0, %v2791
    %2793 = vmatmul.f32.gmra.mxu0 %v2766
    %v2794 = vpop.f32.mrf.mxu0
    %v2795 = vadd.f32 0.0, %v2794
    %2796 = vmatmul.f32.gmra.mxu0 %v2769
    %v2797 = vpop.f32.mrf.mxu0
    %v2798 = vadd.f32 0.0, %v2797
    %2799 = vmatmul.f32.gmra.mxu0 %v2772
    %v2800 = vpop.f32.mrf.mxu0
    %v2801 = vadd.f32 0.0, %v2800
    %2802 = vdwg.mxu0
    %s2803 = scalar_lea.vmem %s15, 800
    %v2804 = vld [vmem:[%s2803] sm:$0xff]
    %v2805 = vld [vmem:[%s2803 + $0x8] sm:$0xff]
    %v2806 = vld [vmem:[%s2803 + $0x10] sm:$0xff]
    %v2807 = vld [vmem:[%s2803 + $0x18] sm:$0xff]
    %v2808 = vld [vmem:[%s2803 + $0x20] sm:$0xff]
    %v2809 = vld [vmem:[%s2803 + $0x28] sm:$0xff]
    %v2810 = vld [vmem:[%s2803 + $0x30] sm:$0xff]
    %v2811 = vld [vmem:[%s2803 + $0x38] sm:$0xff]
    %v2812 = vld [vmem:[%s2803 + $0x40] sm:$0xff]
    %v2813 = vld [vmem:[%s2803 + $0x48] sm:$0xff]
    %v2815 = vsel %vm1333, %v2792, 0
    %v2818 = vsel %vm1333, %v2795, 0
    %v2821 = vsel %vm1333, %v2798, 0
    %v2824 = vsel %vm1333, %v2801, 0
    %2826 = vmatpush.msra.mxu0 0.0
    %2827 = vmatpush.msra.mxu0 0.0
    %2828 = vmatpush.msra.mxu0 0.0
    %2829 = vmatpush.msra.mxu0 0.0
    %2830 = vmatpush.msra.mxu0 0.0
    %2831 = vmatpush.msra.mxu0 0.0
    %2832 = vmatpush.msra.mxu0 %v2813
    %2833 = vmatpush.msra.mxu0 %v2812
    %2834 = vmatpush.msra.mxu0 %v2811
    %2835 = vmatpush.msra.mxu0 %v2810
    %2836 = vmatpush.msra.mxu0 %v2809
    %2837 = vmatpush.msra.mxu0 %v2808
    %2838 = vmatpush.msra.mxu0 %v2807
    %2839 = vmatpush.msra.mxu0 %v2806
    %2840 = vmatpush.msra.mxu0 %v2805
    %2841 = vmatpush.msra.mxu0 %v2804
    %2842 = vmatmul.f32.gmra.mxu0 %v2815
    %v2843 = vpop.f32.mrf.mxu0
    %v2844 = vadd.f32 0.0, %v2843
    %2845 = vmatmul.f32.gmra.mxu0 %v2818
    %v2846 = vpop.f32.mrf.mxu0
    %v2847 = vadd.f32 0.0, %v2846
    %2848 = vmatmul.f32.gmra.mxu0 %v2821
    %v2849 = vpop.f32.mrf.mxu0
    %v2850 = vadd.f32 0.0, %v2849
    %2851 = vmatmul.f32.gmra.mxu0 %v2824
    %v2852 = vpop.f32.mrf.mxu0
    %v2853 = vadd.f32 0.0, %v2852
    %2854 = vdwg.mxu0
    %v2855 = vadd.f32 %v2753, %v2844
    %v2856 = vadd.f32 %v2754, %v2847
    %v2857 = vadd.f32 %v2755, %v2850
    %v2858 = vadd.f32 %v2756, %v2853
    %s2859 = scalar_lea.vmem %s15, 880
    %v2860 = vld [vmem:[%s2859] sm:$0xff]
    %v2861 = vld [vmem:[%s2859 + $0x8] sm:$0xff]
    %v2862 = vld [vmem:[%s2859 + $0x10] sm:$0xff]
    %v2863 = vld [vmem:[%s2859 + $0x18] sm:$0xff]
    %v2864 = vld [vmem:[%s2859 + $0x20] sm:$0xff]
    %v2865 = vld [vmem:[%s2859 + $0x28] sm:$0xff]
    %v2866 = vld [vmem:[%s2859 + $0x30] sm:$0xff]
    %v2867 = vld [vmem:[%s2859 + $0x38] sm:$0xff]
    %v2868 = vld [vmem:[%s2859 + $0x40] sm:$0xff]
    %v2869 = vld [vmem:[%s2859 + $0x48] sm:$0xff]
    %2870 = vmatpush.msra.mxu0 0.0
    %2871 = vmatpush.msra.mxu0 0.0
    %2872 = vmatpush.msra.mxu0 0.0
    %2873 = vmatpush.msra.mxu0 0.0
    %2874 = vmatpush.msra.mxu0 0.0
    %2875 = vmatpush.msra.mxu0 0.0
    %2876 = vmatpush.msra.mxu0 %v2869
    %2877 = vmatpush.msra.mxu0 %v2868
    %2878 = vmatpush.msra.mxu0 %v2867
    %2879 = vmatpush.msra.mxu0 %v2866
    %2880 = vmatpush.msra.mxu0 %v2865
    %2881 = vmatpush.msra.mxu0 %v2864
    %2882 = vmatpush.msra.mxu0 %v2863
    %2883 = vmatpush.msra.mxu0 %v2862
    %2884 = vmatpush.msra.mxu0 %v2861
    %2885 = vmatpush.msra.mxu0 %v2860
    %2886 = vmatmul.f32.gmra.mxu0 %v2815
    %v2887 = vpop.f32.mrf.mxu0
    %v2888 = vadd.f32 0.0, %v2887
    %2889 = vmatmul.f32.gmra.mxu0 %v2818
    %v2890 = vpop.f32.mrf.mxu0
    %v2891 = vadd.f32 0.0, %v2890
    %2892 = vmatmul.f32.gmra.mxu0 %v2821
    %v2893 = vpop.f32.mrf.mxu0
    %v2894 = vadd.f32 0.0, %v2893
    %2895 = vmatmul.f32.gmra.mxu0 %v2824
    %v2896 = vpop.f32.mrf.mxu0
    %v2897 = vadd.f32 0.0, %v2896
    %2898 = vdwg.mxu0
    %v2899 = vadd.f32 %v2855, %v2888
    %v2900 = vadd.f32 %v2856, %v2891
    %v2901 = vadd.f32 %v2857, %v2894
    %v2902 = vadd.f32 %v2858, %v2897
    %s2903 = scalar_lea.vmem %s15, 960
    %v2904 = vld [vmem:[%s2903] sm:$0xff]
    %v2905 = vld [vmem:[%s2903 + $0x8] sm:$0xff]
    %v2906 = vld [vmem:[%s2903 + $0x10] sm:$0xff]
    %v2907 = vld [vmem:[%s2903 + $0x18] sm:$0xff]
    %v2908 = vld [vmem:[%s2903 + $0x20] sm:$0xff]
    %v2909 = vld [vmem:[%s2903 + $0x28] sm:$0xff]
    %v2910 = vld [vmem:[%s2903 + $0x30] sm:$0xff]
    %v2911 = vld [vmem:[%s2903 + $0x38] sm:$0xff]
    %v2912 = vld [vmem:[%s2903 + $0x40] sm:$0xff]
    %v2913 = vld [vmem:[%s2903 + $0x48] sm:$0xff]
    %2914 = vmatpush.msra.mxu0 0.0
    %2915 = vmatpush.msra.mxu0 0.0
    %2916 = vmatpush.msra.mxu0 0.0
    %2917 = vmatpush.msra.mxu0 0.0
    %2918 = vmatpush.msra.mxu0 0.0
    %2919 = vmatpush.msra.mxu0 0.0
    %2920 = vmatpush.msra.mxu0 %v2913
    %2921 = vmatpush.msra.mxu0 %v2912
    %2922 = vmatpush.msra.mxu0 %v2911
    %2923 = vmatpush.msra.mxu0 %v2910
    %2924 = vmatpush.msra.mxu0 %v2909
    %2925 = vmatpush.msra.mxu0 %v2908
    %2926 = vmatpush.msra.mxu0 %v2907
    %2927 = vmatpush.msra.mxu0 %v2906
    %2928 = vmatpush.msra.mxu0 %v2905
    %2929 = vmatpush.msra.mxu0 %v2904
    %2930 = vmatmul.f32.gmra.mxu0 %v2815
    %v2931 = vpop.f32.mrf.mxu0
    %v2932 = vadd.f32 0.0, %v2931
    %2933 = vmatmul.f32.gmra.mxu0 %v2818
    %v2934 = vpop.f32.mrf.mxu0
    %v2935 = vadd.f32 0.0, %v2934
    %2936 = vmatmul.f32.gmra.mxu0 %v2821
    %v2937 = vpop.f32.mrf.mxu0
    %v2938 = vadd.f32 0.0, %v2937
    %2939 = vmatmul.f32.gmra.mxu0 %v2824
    %v2940 = vpop.f32.mrf.mxu0
    %v2941 = vadd.f32 0.0, %v2940
    %2942 = vdwg.mxu0
    %v2943 = vadd.f32 %v2899, %v2932
    %v2944 = vadd.f32 %v2900, %v2935
    %v2945 = vadd.f32 %v2901, %v2938
    %v2946 = vadd.f32 %v2902, %v2941
    %s2947 = scalar_lea.vmem %s15, 1040
    %v2948 = vld [vmem:[%s2947] sm:$0xff]
    %v2949 = vld [vmem:[%s2947 + $0x8] sm:$0xff]
    %v2950 = vld [vmem:[%s2947 + $0x10] sm:$0xff]
    %v2951 = vld [vmem:[%s2947 + $0x18] sm:$0xff]
    %v2952 = vld [vmem:[%s2947 + $0x20] sm:$0xff]
    %v2953 = vld [vmem:[%s2947 + $0x28] sm:$0xff]
    %v2954 = vld [vmem:[%s2947 + $0x30] sm:$0xff]
    %v2955 = vld [vmem:[%s2947 + $0x38] sm:$0xff]
    %v2956 = vld [vmem:[%s2947 + $0x40] sm:$0xff]
    %v2957 = vld [vmem:[%s2947 + $0x48] sm:$0xff]
    %2958 = vmatpush.msra.mxu0 0.0
    %2959 = vmatpush.msra.mxu0 0.0
    %2960 = vmatpush.msra.mxu0 0.0
    %2961 = vmatpush.msra.mxu0 0.0
    %2962 = vmatpush.msra.mxu0 0.0
    %2963 = vmatpush.msra.mxu0 0.0
    %2964 = vmatpush.msra.mxu0 %v2957
    %2965 = vmatpush.msra.mxu0 %v2956
    %2966 = vmatpush.msra.mxu0 %v2955
    %2967 = vmatpush.msra.mxu0 %v2954
    %2968 = vmatpush.msra.mxu0 %v2953
    %2969 = vmatpush.msra.mxu0 %v2952
    %2970 = vmatpush.msra.mxu0 %v2951
    %2971 = vmatpush.msra.mxu0 %v2950
    %2972 = vmatpush.msra.mxu0 %v2949
    %2973 = vmatpush.msra.mxu0 %v2948
    %2974 = vmatmul.f32.gmra.mxu0 %v2815
    %v2975 = vpop.f32.mrf.mxu0
    %v2976 = vadd.f32 0.0, %v2975
    %2977 = vmatmul.f32.gmra.mxu0 %v2818
    %v2978 = vpop.f32.mrf.mxu0
    %v2979 = vadd.f32 0.0, %v2978
    %2980 = vmatmul.f32.gmra.mxu0 %v2821
    %v2981 = vpop.f32.mrf.mxu0
    %v2982 = vadd.f32 0.0, %v2981
    %2983 = vmatmul.f32.gmra.mxu0 %v2824
    %v2984 = vpop.f32.mrf.mxu0
    %v2985 = vadd.f32 0.0, %v2984
    %2986 = vdwg.mxu0
    %v2987 = vadd.f32 %v2943, %v2976
    %v2988 = vadd.f32 %v2944, %v2979
    %v2989 = vadd.f32 %v2945, %v2982
    %v2990 = vadd.f32 %v2946, %v2985
    %s2991 = scalar_lea.vmem %s15, 1120
    %v2992 = vld [vmem:[%s2991] sm:$0xff]
    %v2993 = vld [vmem:[%s2991 + $0x8] sm:$0xff]
    %v2994 = vld [vmem:[%s2991 + $0x10] sm:$0xff]
    %v2995 = vld [vmem:[%s2991 + $0x18] sm:$0xff]
    %v2996 = vld [vmem:[%s2991 + $0x20] sm:$0xff]
    %v2997 = vld [vmem:[%s2991 + $0x28] sm:$0xff]
    %v2998 = vld [vmem:[%s2991 + $0x30] sm:$0xff]
    %v2999 = vld [vmem:[%s2991 + $0x38] sm:$0xff]
    %v3000 = vld [vmem:[%s2991 + $0x40] sm:$0xff]
    %v3001 = vld [vmem:[%s2991 + $0x48] sm:$0xff]
    %3002 = vmatpush.msra.mxu0 0.0
    %3003 = vmatpush.msra.mxu0 0.0
    %3004 = vmatpush.msra.mxu0 0.0
    %3005 = vmatpush.msra.mxu0 0.0
    %3006 = vmatpush.msra.mxu0 0.0
    %3007 = vmatpush.msra.mxu0 0.0
    %3008 = vmatpush.msra.mxu0 %v3001
    %3009 = vmatpush.msra.mxu0 %v3000
    %3010 = vmatpush.msra.mxu0 %v2999
    %3011 = vmatpush.msra.mxu0 %v2998
    %3012 = vmatpush.msra.mxu0 %v2997
    %3013 = vmatpush.msra.mxu0 %v2996
    %3014 = vmatpush.msra.mxu0 %v2995
    %3015 = vmatpush.msra.mxu0 %v2994
    %3016 = vmatpush.msra.mxu0 %v2993
    %3017 = vmatpush.msra.mxu0 %v2992
    %3018 = vmatmul.f32.gmra.mxu0 %v2815
    %v3019 = vpop.f32.mrf.mxu0
    %v3020 = vadd.f32 0.0, %v3019
    %3021 = vmatmul.f32.gmra.mxu0 %v2818
    %v3022 = vpop.f32.mrf.mxu0
    %v3023 = vadd.f32 0.0, %v3022
    %3024 = vmatmul.f32.gmra.mxu0 %v2821
    %v3025 = vpop.f32.mrf.mxu0
    %v3026 = vadd.f32 0.0, %v3025
    %3027 = vmatmul.f32.gmra.mxu0 %v2824
    %v3028 = vpop.f32.mrf.mxu0
    %v3029 = vadd.f32 0.0, %v3028
    %3030 = vdwg.mxu0
    %v3031 = vadd.f32 %v2987, %v3020
    %v3032 = vadd.f32 %v2988, %v3023
    %v3033 = vadd.f32 %v2989, %v3026
    %v3034 = vadd.f32 %v2990, %v3029
    %s3035 = scalar_lea.vmem %s14, 96
    %v3036 = vld [vmem:[%s3035] sm:$0xff]
    %v3037 = vld [vmem:[%s3035 + $0x8] sm:$0xff]
    %v3038 = vld [vmem:[%s3035 + $0x10] sm:$0xff]
    %v3039 = vld [vmem:[%s3035 + $0x18] sm:$0x3f]
    %v3041 = vsel %vm1284, %v3036, 0
    %v3044 = vsel %vm1284, %v3037, 0
    %v3047 = vsel %vm1284, %v3038, 0
    %v3050 = vsel %vm1284, %v3039, 0
    %3052 = vmatpush.msra.mxu0 0.0
    %3053 = vmatpush.msra.mxu0 0.0
    %3054 = vmatpush.msra.mxu0 0.0
    %3055 = vmatpush.msra.mxu0 0.0
    %3056 = vmatpush.msra.mxu0 0.0
    %3057 = vmatpush.msra.mxu0 0.0
    %3058 = vmatpush.msra.mxu0 0.0
    %3059 = vmatpush.msra.mxu0 0.0
    %3060 = vmatpush.msra.mxu0 0.0
    %3061 = vmatpush.msra.mxu0 0.0
    %3062 = vmatpush.msra.mxu0 0.0
    %3063 = vmatpush.msra.mxu0 0.0
    %3064 = vmatpush.msra.mxu0 0.0
    %3065 = vmatpush.msra.mxu0 0.0
    %3066 = vmatpush.msra.mxu0 %v2225
    %3067 = vmatpush.msra.mxu0 %v2206
    %3068 = vmatmul.f32.gmra.mxu0 %v3041
    %v3069 = vpop.f32.mrf.mxu0
    %v3070 = vadd.f32 0.0, %v3069
    %3071 = vmatmul.f32.gmra.mxu0 %v3044
    %v3072 = vpop.f32.mrf.mxu0
    %v3073 = vadd.f32 0.0, %v3072
    %3074 = vmatmul.f32.gmra.mxu0 %v3047
    %v3075 = vpop.f32.mrf.mxu0
    %v3076 = vadd.f32 0.0, %v3075
    %3077 = vmatmul.f32.gmra.mxu0 %v3050
    %v3078 = vpop.f32.mrf.mxu0
    %v3079 = vadd.f32 0.0, %v3078
    %3080 = vdwg.mxu0
    %s3081 = scalar_lea.vmem %s15, 1200
    %v3082 = vld [vmem:[%s3081] sm:$0xff]
    %v3083 = vld [vmem:[%s3081 + $0x8] sm:$0xff]
    %v3084 = vld [vmem:[%s3081 + $0x10] sm:$0xff]
    %v3085 = vld [vmem:[%s3081 + $0x18] sm:$0xff]
    %v3086 = vld [vmem:[%s3081 + $0x20] sm:$0xff]
    %v3087 = vld [vmem:[%s3081 + $0x28] sm:$0xff]
    %v3088 = vld [vmem:[%s3081 + $0x30] sm:$0xff]
    %v3089 = vld [vmem:[%s3081 + $0x38] sm:$0xff]
    %v3090 = vld [vmem:[%s3081 + $0x40] sm:$0xff]
    %v3091 = vld [vmem:[%s3081 + $0x48] sm:$0xff]
    %v3093 = vsel %vm1333, %v3070, 0
    %v3096 = vsel %vm1333, %v3073, 0
    %v3099 = vsel %vm1333, %v3076, 0
    %v3102 = vsel %vm1333, %v3079, 0
    %3104 = vmatpush.msra.mxu0 0.0
    %3105 = vmatpush.msra.mxu0 0.0
    %3106 = vmatpush.msra.mxu0 0.0
    %3107 = vmatpush.msra.mxu0 0.0
    %3108 = vmatpush.msra.mxu0 0.0
    %3109 = vmatpush.msra.mxu0 0.0
    %3110 = vmatpush.msra.mxu0 %v3091
    %3111 = vmatpush.msra.mxu0 %v3090
    %3112 = vmatpush.msra.mxu0 %v3089
    %3113 = vmatpush.msra.mxu0 %v3088
    %3114 = vmatpush.msra.mxu0 %v3087
    %3115 = vmatpush.msra.mxu0 %v3086
    %3116 = vmatpush.msra.mxu0 %v3085
    %3117 = vmatpush.msra.mxu0 %v3084
    %3118 = vmatpush.msra.mxu0 %v3083
    %3119 = vmatpush.msra.mxu0 %v3082
    %3120 = vmatmul.f32.gmra.mxu0 %v3093
    %v3121 = vpop.f32.mrf.mxu0
    %v3122 = vadd.f32 0.0, %v3121
    %3123 = vmatmul.f32.gmra.mxu0 %v3096
    %v3124 = vpop.f32.mrf.mxu0
    %v3125 = vadd.f32 0.0, %v3124
    %3126 = vmatmul.f32.gmra.mxu0 %v3099
    %v3127 = vpop.f32.mrf.mxu0
    %v3128 = vadd.f32 0.0, %v3127
    %3129 = vmatmul.f32.gmra.mxu0 %v3102
    %v3130 = vpop.f32.mrf.mxu0
    %v3131 = vadd.f32 0.0, %v3130
    %3132 = vdwg.mxu0
    %v3133 = vadd.f32 %v3031, %v3122
    %v3134 = vadd.f32 %v3032, %v3125
    %v3135 = vadd.f32 %v3033, %v3128
    %v3136 = vadd.f32 %v3034, %v3131
    %s3137 = scalar_lea.vmem %s15, 1280
    %v3138 = vld [vmem:[%s3137] sm:$0xff]
    %v3139 = vld [vmem:[%s3137 + $0x8] sm:$0xff]
    %v3140 = vld [vmem:[%s3137 + $0x10] sm:$0xff]
    %v3141 = vld [vmem:[%s3137 + $0x18] sm:$0xff]
    %v3142 = vld [vmem:[%s3137 + $0x20] sm:$0xff]
    %v3143 = vld [vmem:[%s3137 + $0x28] sm:$0xff]
    %v3144 = vld [vmem:[%s3137 + $0x30] sm:$0xff]
    %v3145 = vld [vmem:[%s3137 + $0x38] sm:$0xff]
    %v3146 = vld [vmem:[%s3137 + $0x40] sm:$0xff]
    %v3147 = vld [vmem:[%s3137 + $0x48] sm:$0xff]
    %3148 = vmatpush.msra.mxu0 0.0
    %3149 = vmatpush.msra.mxu0 0.0
    %3150 = vmatpush.msra.mxu0 0.0
    %3151 = vmatpush.msra.mxu0 0.0
    %3152 = vmatpush.msra.mxu0 0.0
    %3153 = vmatpush.msra.mxu0 0.0
    %3154 = vmatpush.msra.mxu0 %v3147
    %3155 = vmatpush.msra.mxu0 %v3146
    %3156 = vmatpush.msra.mxu0 %v3145
    %3157 = vmatpush.msra.mxu0 %v3144
    %3158 = vmatpush.msra.mxu0 %v3143
    %3159 = vmatpush.msra.mxu0 %v3142
    %3160 = vmatpush.msra.mxu0 %v3141
    %3161 = vmatpush.msra.mxu0 %v3140
    %3162 = vmatpush.msra.mxu0 %v3139
    %3163 = vmatpush.msra.mxu0 %v3138
    %3164 = vmatmul.f32.gmra.mxu0 %v3093
    %v3165 = vpop.f32.mrf.mxu0
    %v3166 = vadd.f32 0.0, %v3165
    %3167 = vmatmul.f32.gmra.mxu0 %v3096
    %v3168 = vpop.f32.mrf.mxu0
    %v3169 = vadd.f32 0.0, %v3168
    %3170 = vmatmul.f32.gmra.mxu0 %v3099
    %v3171 = vpop.f32.mrf.mxu0
    %v3172 = vadd.f32 0.0, %v3171
    %3173 = vmatmul.f32.gmra.mxu0 %v3102
    %v3174 = vpop.f32.mrf.mxu0
    %v3175 = vadd.f32 0.0, %v3174
    %3176 = vdwg.mxu0
    %v3177 = vadd.f32 %v3133, %v3166
    %v3178 = vadd.f32 %v3134, %v3169
    %v3179 = vadd.f32 %v3135, %v3172
    %v3180 = vadd.f32 %v3136, %v3175
    %s3181 = scalar_lea.vmem %s15, 1360
    %v3182 = vld [vmem:[%s3181] sm:$0xff]
    %v3183 = vld [vmem:[%s3181 + $0x8] sm:$0xff]
    %v3184 = vld [vmem:[%s3181 + $0x10] sm:$0xff]
    %v3185 = vld [vmem:[%s3181 + $0x18] sm:$0xff]
    %v3186 = vld [vmem:[%s3181 + $0x20] sm:$0xff]
    %v3187 = vld [vmem:[%s3181 + $0x28] sm:$0xff]
    %v3188 = vld [vmem:[%s3181 + $0x30] sm:$0xff]
    %v3189 = vld [vmem:[%s3181 + $0x38] sm:$0xff]
    %v3190 = vld [vmem:[%s3181 + $0x40] sm:$0xff]
    %v3191 = vld [vmem:[%s3181 + $0x48] sm:$0xff]
    %3192 = vmatpush.msra.mxu0 0.0
    %3193 = vmatpush.msra.mxu0 0.0
    %3194 = vmatpush.msra.mxu0 0.0
    %3195 = vmatpush.msra.mxu0 0.0
    %3196 = vmatpush.msra.mxu0 0.0
    %3197 = vmatpush.msra.mxu0 0.0
    %3198 = vmatpush.msra.mxu0 %v3191
    %3199 = vmatpush.msra.mxu0 %v3190
    %3200 = vmatpush.msra.mxu0 %v3189
    %3201 = vmatpush.msra.mxu0 %v3188
    %3202 = vmatpush.msra.mxu0 %v3187
    %3203 = vmatpush.msra.mxu0 %v3186
    %3204 = vmatpush.msra.mxu0 %v3185
    %3205 = vmatpush.msra.mxu0 %v3184
    %3206 = vmatpush.msra.mxu0 %v3183
    %3207 = vmatpush.msra.mxu0 %v3182
    %3208 = vmatmul.f32.gmra.mxu0 %v3093
    %v3209 = vpop.f32.mrf.mxu0
    %v3210 = vadd.f32 0.0, %v3209
    %3211 = vmatmul.f32.gmra.mxu0 %v3096
    %v3212 = vpop.f32.mrf.mxu0
    %v3213 = vadd.f32 0.0, %v3212
    %3214 = vmatmul.f32.gmra.mxu0 %v3099
    %v3215 = vpop.f32.mrf.mxu0
    %v3216 = vadd.f32 0.0, %v3215
    %3217 = vmatmul.f32.gmra.mxu0 %v3102
    %v3218 = vpop.f32.mrf.mxu0
    %v3219 = vadd.f32 0.0, %v3218
    %3220 = vdwg.mxu0
    %v3221 = vadd.f32 %v3177, %v3210
    %v3222 = vadd.f32 %v3178, %v3213
    %v3223 = vadd.f32 %v3179, %v3216
    %v3224 = vadd.f32 %v3180, %v3219
    %s3225 = scalar_lea.vmem %s15, 1440
    %v3226 = vld [vmem:[%s3225] sm:$0xff]
    %v3227 = vld [vmem:[%s3225 + $0x8] sm:$0xff]
    %v3228 = vld [vmem:[%s3225 + $0x10] sm:$0xff]
    %v3229 = vld [vmem:[%s3225 + $0x18] sm:$0xff]
    %v3230 = vld [vmem:[%s3225 + $0x20] sm:$0xff]
    %v3231 = vld [vmem:[%s3225 + $0x28] sm:$0xff]
    %v3232 = vld [vmem:[%s3225 + $0x30] sm:$0xff]
    %v3233 = vld [vmem:[%s3225 + $0x38] sm:$0xff]
    %v3234 = vld [vmem:[%s3225 + $0x40] sm:$0xff]
    %v3235 = vld [vmem:[%s3225 + $0x48] sm:$0xff]
    %3236 = vmatpush.msra.mxu0 0.0
    %3237 = vmatpush.msra.mxu0 0.0
    %3238 = vmatpush.msra.mxu0 0.0
    %3239 = vmatpush.msra.mxu0 0.0
    %3240 = vmatpush.msra.mxu0 0.0
    %3241 = vmatpush.msra.mxu0 0.0
    %3242 = vmatpush.msra.mxu0 %v3235
    %3243 = vmatpush.msra.mxu0 %v3234
    %3244 = vmatpush.msra.mxu0 %v3233
    %3245 = vmatpush.msra.mxu0 %v3232
    %3246 = vmatpush.msra.mxu0 %v3231
    %3247 = vmatpush.msra.mxu0 %v3230
    %3248 = vmatpush.msra.mxu0 %v3229
    %3249 = vmatpush.msra.mxu0 %v3228
    %3250 = vmatpush.msra.mxu0 %v3227
    %3251 = vmatpush.msra.mxu0 %v3226
    %3252 = vmatmul.f32.gmra.mxu0 %v3093
    %v3253 = vpop.f32.mrf.mxu0
    %v3254 = vadd.f32 0.0, %v3253
    %3255 = vmatmul.f32.gmra.mxu0 %v3096
    %v3256 = vpop.f32.mrf.mxu0
    %v3257 = vadd.f32 0.0, %v3256
    %3258 = vmatmul.f32.gmra.mxu0 %v3099
    %v3259 = vpop.f32.mrf.mxu0
    %v3260 = vadd.f32 0.0, %v3259
    %3261 = vmatmul.f32.gmra.mxu0 %v3102
    %v3262 = vpop.f32.mrf.mxu0
    %v3263 = vadd.f32 0.0, %v3262
    %3264 = vdwg.mxu0
    %v3265 = vadd.f32 %v3221, %v3254
    %v3266 = vadd.f32 %v3222, %v3257
    %v3267 = vadd.f32 %v3223, %v3260
    %v3268 = vadd.f32 %v3224, %v3263
    %s3269 = scalar_lea.vmem %s15, 1520
    %v3270 = vld [vmem:[%s3269] sm:$0xff]
    %v3271 = vld [vmem:[%s3269 + $0x8] sm:$0xff]
    %v3272 = vld [vmem:[%s3269 + $0x10] sm:$0xff]
    %v3273 = vld [vmem:[%s3269 + $0x18] sm:$0xff]
    %v3274 = vld [vmem:[%s3269 + $0x20] sm:$0xff]
    %v3275 = vld [vmem:[%s3269 + $0x28] sm:$0xff]
    %v3276 = vld [vmem:[%s3269 + $0x30] sm:$0xff]
    %v3277 = vld [vmem:[%s3269 + $0x38] sm:$0xff]
    %v3278 = vld [vmem:[%s3269 + $0x40] sm:$0xff]
    %v3279 = vld [vmem:[%s3269 + $0x48] sm:$0xff]
    %3280 = vmatpush.msra.mxu0 0.0
    %3281 = vmatpush.msra.mxu0 0.0
    %3282 = vmatpush.msra.mxu0 0.0
    %3283 = vmatpush.msra.mxu0 0.0
    %3284 = vmatpush.msra.mxu0 0.0
    %3285 = vmatpush.msra.mxu0 0.0
    %3286 = vmatpush.msra.mxu0 %v3279
    %3287 = vmatpush.msra.mxu0 %v3278
    %3288 = vmatpush.msra.mxu0 %v3277
    %3289 = vmatpush.msra.mxu0 %v3276
    %3290 = vmatpush.msra.mxu0 %v3275
    %3291 = vmatpush.msra.mxu0 %v3274
    %3292 = vmatpush.msra.mxu0 %v3273
    %3293 = vmatpush.msra.mxu0 %v3272
    %3294 = vmatpush.msra.mxu0 %v3271
    %3295 = vmatpush.msra.mxu0 %v3270
    %3296 = vmatmul.f32.gmra.mxu0 %v3093
    %v3297 = vpop.f32.mrf.mxu0
    %v3298 = vadd.f32 0.0, %v3297
    %3299 = vmatmul.f32.gmra.mxu0 %v3096
    %v3300 = vpop.f32.mrf.mxu0
    %v3301 = vadd.f32 0.0, %v3300
    %3302 = vmatmul.f32.gmra.mxu0 %v3099
    %v3303 = vpop.f32.mrf.mxu0
    %v3304 = vadd.f32 0.0, %v3303
    %3305 = vmatmul.f32.gmra.mxu0 %v3102
    %v3306 = vpop.f32.mrf.mxu0
    %v3307 = vadd.f32 0.0, %v3306
    %3308 = vdwg.mxu0
    %v3309 = vadd.f32 %v3265, %v3298
    %v3310 = vadd.f32 %v3266, %v3301
    %v3311 = vadd.f32 %v3267, %v3304
    %v3312 = vadd.f32 %v3268, %v3307
    %s3313 = scalar_lea.vmem %s14, 128
    %v3314 = vld [vmem:[%s3313] sm:$0xff]
    %v3315 = vld [vmem:[%s3313 + $0x8] sm:$0xff]
    %v3316 = vld [vmem:[%s3313 + $0x10] sm:$0xff]
    %v3317 = vld [vmem:[%s3313 + $0x18] sm:$0x3f]
    %v3319 = vsel %vm1284, %v3314, 0
    %v3322 = vsel %vm1284, %v3315, 0
    %v3325 = vsel %vm1284, %v3316, 0
    %v3328 = vsel %vm1284, %v3317, 0
    %3330 = vmatpush.msra.mxu0 0.0
    %3331 = vmatpush.msra.mxu0 0.0
    %3332 = vmatpush.msra.mxu0 0.0
    %3333 = vmatpush.msra.mxu0 0.0
    %3334 = vmatpush.msra.mxu0 0.0
    %3335 = vmatpush.msra.mxu0 0.0
    %3336 = vmatpush.msra.mxu0 0.0
    %3337 = vmatpush.msra.mxu0 0.0
    %3338 = vmatpush.msra.mxu0 0.0
    %3339 = vmatpush.msra.mxu0 0.0
    %3340 = vmatpush.msra.mxu0 0.0
    %3341 = vmatpush.msra.mxu0 0.0
    %3342 = vmatpush.msra.mxu0 0.0
    %3343 = vmatpush.msra.mxu0 0.0
    %3344 = vmatpush.msra.mxu0 %v2225
    %3345 = vmatpush.msra.mxu0 %v2206
    %3346 = vmatmul.f32.gmra.mxu0 %v3319
    %v3347 = vpop.f32.mrf.mxu0
    %v3348 = vadd.f32 0.0, %v3347
    %3349 = vmatmul.f32.gmra.mxu0 %v3322
    %v3350 = vpop.f32.mrf.mxu0
    %v3351 = vadd.f32 0.0, %v3350
    %3352 = vmatmul.f32.gmra.mxu0 %v3325
    %v3353 = vpop.f32.mrf.mxu0
    %v3354 = vadd.f32 0.0, %v3353
    %3355 = vmatmul.f32.gmra.mxu0 %v3328
    %v3356 = vpop.f32.mrf.mxu0
    %v3357 = vadd.f32 0.0, %v3356
    %3358 = vdwg.mxu0
    %s3359 = scalar_lea.vmem %s15, 1600
    %v3360 = vld [vmem:[%s3359] sm:$0xff]
    %v3361 = vld [vmem:[%s3359 + $0x8] sm:$0xff]
    %v3362 = vld [vmem:[%s3359 + $0x10] sm:$0xff]
    %v3363 = vld [vmem:[%s3359 + $0x18] sm:$0xff]
    %v3364 = vld [vmem:[%s3359 + $0x20] sm:$0xff]
    %v3365 = vld [vmem:[%s3359 + $0x28] sm:$0xff]
    %v3366 = vld [vmem:[%s3359 + $0x30] sm:$0xff]
    %v3367 = vld [vmem:[%s3359 + $0x38] sm:$0xff]
    %v3368 = vld [vmem:[%s3359 + $0x40] sm:$0xff]
    %v3369 = vld [vmem:[%s3359 + $0x48] sm:$0xff]
    %v3371 = vsel %vm1333, %v3348, 0
    %v3374 = vsel %vm1333, %v3351, 0
    %v3377 = vsel %vm1333, %v3354, 0
    %v3380 = vsel %vm1333, %v3357, 0
    %3382 = vmatpush.msra.mxu0 0.0
    %3383 = vmatpush.msra.mxu0 0.0
    %3384 = vmatpush.msra.mxu0 0.0
    %3385 = vmatpush.msra.mxu0 0.0
    %3386 = vmatpush.msra.mxu0 0.0
    %3387 = vmatpush.msra.mxu0 0.0
    %3388 = vmatpush.msra.mxu0 %v3369
    %3389 = vmatpush.msra.mxu0 %v3368
    %3390 = vmatpush.msra.mxu0 %v3367
    %3391 = vmatpush.msra.mxu0 %v3366
    %3392 = vmatpush.msra.mxu0 %v3365
    %3393 = vmatpush.msra.mxu0 %v3364
    %3394 = vmatpush.msra.mxu0 %v3363
    %3395 = vmatpush.msra.mxu0 %v3362
    %3396 = vmatpush.msra.mxu0 %v3361
    %3397 = vmatpush.msra.mxu0 %v3360
    %3398 = vmatmul.f32.gmra.mxu0 %v3371
    %v3399 = vpop.f32.mrf.mxu0
    %v3400 = vadd.f32 0.0, %v3399
    %3401 = vmatmul.f32.gmra.mxu0 %v3374
    %v3402 = vpop.f32.mrf.mxu0
    %v3403 = vadd.f32 0.0, %v3402
    %3404 = vmatmul.f32.gmra.mxu0 %v3377
    %v3405 = vpop.f32.mrf.mxu0
    %v3406 = vadd.f32 0.0, %v3405
    %3407 = vmatmul.f32.gmra.mxu0 %v3380
    %v3408 = vpop.f32.mrf.mxu0
    %v3409 = vadd.f32 0.0, %v3408
    %3410 = vdwg.mxu0
    %v3411 = vadd.f32 %v3309, %v3400
    %v3412 = vadd.f32 %v3310, %v3403
    %v3413 = vadd.f32 %v3311, %v3406
    %v3414 = vadd.f32 %v3312, %v3409
    %s3415 = scalar_lea.vmem %s15, 1680
    %v3416 = vld [vmem:[%s3415] sm:$0xff]
    %v3417 = vld [vmem:[%s3415 + $0x8] sm:$0xff]
    %v3418 = vld [vmem:[%s3415 + $0x10] sm:$0xff]
    %v3419 = vld [vmem:[%s3415 + $0x18] sm:$0xff]
    %v3420 = vld [vmem:[%s3415 + $0x20] sm:$0xff]
    %v3421 = vld [vmem:[%s3415 + $0x28] sm:$0xff]
    %v3422 = vld [vmem:[%s3415 + $0x30] sm:$0xff]
    %v3423 = vld [vmem:[%s3415 + $0x38] sm:$0xff]
    %v3424 = vld [vmem:[%s3415 + $0x40] sm:$0xff]
    %v3425 = vld [vmem:[%s3415 + $0x48] sm:$0xff]
    %3426 = vmatpush.msra.mxu0 0.0
    %3427 = vmatpush.msra.mxu0 0.0
    %3428 = vmatpush.msra.mxu0 0.0
    %3429 = vmatpush.msra.mxu0 0.0
    %3430 = vmatpush.msra.mxu0 0.0
    %3431 = vmatpush.msra.mxu0 0.0
    %3432 = vmatpush.msra.mxu0 %v3425
    %3433 = vmatpush.msra.mxu0 %v3424
    %3434 = vmatpush.msra.mxu0 %v3423
    %3435 = vmatpush.msra.mxu0 %v3422
    %3436 = vmatpush.msra.mxu0 %v3421
    %3437 = vmatpush.msra.mxu0 %v3420
    %3438 = vmatpush.msra.mxu0 %v3419
    %3439 = vmatpush.msra.mxu0 %v3418
    %3440 = vmatpush.msra.mxu0 %v3417
    %3441 = vmatpush.msra.mxu0 %v3416
    %3442 = vmatmul.f32.gmra.mxu0 %v3371
    %v3443 = vpop.f32.mrf.mxu0
    %v3444 = vadd.f32 0.0, %v3443
    %3445 = vmatmul.f32.gmra.mxu0 %v3374
    %v3446 = vpop.f32.mrf.mxu0
    %v3447 = vadd.f32 0.0, %v3446
    %3448 = vmatmul.f32.gmra.mxu0 %v3377
    %v3449 = vpop.f32.mrf.mxu0
    %v3450 = vadd.f32 0.0, %v3449
    %3451 = vmatmul.f32.gmra.mxu0 %v3380
    %v3452 = vpop.f32.mrf.mxu0
    %v3453 = vadd.f32 0.0, %v3452
    %3454 = vdwg.mxu0
    %v3455 = vadd.f32 %v3411, %v3444
    %v3456 = vadd.f32 %v3412, %v3447
    %v3457 = vadd.f32 %v3413, %v3450
    %v3458 = vadd.f32 %v3414, %v3453
    %s3459 = scalar_lea.vmem %s15, 1760
    %v3460 = vld [vmem:[%s3459] sm:$0xff]
    %v3461 = vld [vmem:[%s3459 + $0x8] sm:$0xff]
    %v3462 = vld [vmem:[%s3459 + $0x10] sm:$0xff]
    %v3463 = vld [vmem:[%s3459 + $0x18] sm:$0xff]
    %v3464 = vld [vmem:[%s3459 + $0x20] sm:$0xff]
    %v3465 = vld [vmem:[%s3459 + $0x28] sm:$0xff]
    %v3466 = vld [vmem:[%s3459 + $0x30] sm:$0xff]
    %v3467 = vld [vmem:[%s3459 + $0x38] sm:$0xff]
    %v3468 = vld [vmem:[%s3459 + $0x40] sm:$0xff]
    %v3469 = vld [vmem:[%s3459 + $0x48] sm:$0xff]
    %3470 = vmatpush.msra.mxu0 0.0
    %3471 = vmatpush.msra.mxu0 0.0
    %3472 = vmatpush.msra.mxu0 0.0
    %3473 = vmatpush.msra.mxu0 0.0
    %3474 = vmatpush.msra.mxu0 0.0
    %3475 = vmatpush.msra.mxu0 0.0
    %3476 = vmatpush.msra.mxu0 %v3469
    %3477 = vmatpush.msra.mxu0 %v3468
    %3478 = vmatpush.msra.mxu0 %v3467
    %3479 = vmatpush.msra.mxu0 %v3466
    %3480 = vmatpush.msra.mxu0 %v3465
    %3481 = vmatpush.msra.mxu0 %v3464
    %3482 = vmatpush.msra.mxu0 %v3463
    %3483 = vmatpush.msra.mxu0 %v3462
    %3484 = vmatpush.msra.mxu0 %v3461
    %3485 = vmatpush.msra.mxu0 %v3460
    %3486 = vmatmul.f32.gmra.mxu0 %v3371
    %v3487 = vpop.f32.mrf.mxu0
    %v3488 = vadd.f32 0.0, %v3487
    %3489 = vmatmul.f32.gmra.mxu0 %v3374
    %v3490 = vpop.f32.mrf.mxu0
    %v3491 = vadd.f32 0.0, %v3490
    %3492 = vmatmul.f32.gmra.mxu0 %v3377
    %v3493 = vpop.f32.mrf.mxu0
    %v3494 = vadd.f32 0.0, %v3493
    %3495 = vmatmul.f32.gmra.mxu0 %v3380
    %v3496 = vpop.f32.mrf.mxu0
    %v3497 = vadd.f32 0.0, %v3496
    %3498 = vdwg.mxu0
    %v3499 = vadd.f32 %v3455, %v3488
    %v3500 = vadd.f32 %v3456, %v3491
    %v3501 = vadd.f32 %v3457, %v3494
    %v3502 = vadd.f32 %v3458, %v3497
    %s3503 = scalar_lea.vmem %s15, 1840
    %v3504 = vld [vmem:[%s3503] sm:$0xff]
    %v3505 = vld [vmem:[%s3503 + $0x8] sm:$0xff]
    %v3506 = vld [vmem:[%s3503 + $0x10] sm:$0xff]
    %v3507 = vld [vmem:[%s3503 + $0x18] sm:$0xff]
    %v3508 = vld [vmem:[%s3503 + $0x20] sm:$0xff]
    %v3509 = vld [vmem:[%s3503 + $0x28] sm:$0xff]
    %v3510 = vld [vmem:[%s3503 + $0x30] sm:$0xff]
    %v3511 = vld [vmem:[%s3503 + $0x38] sm:$0xff]
    %v3512 = vld [vmem:[%s3503 + $0x40] sm:$0xff]
    %v3513 = vld [vmem:[%s3503 + $0x48] sm:$0xff]
    %3514 = vmatpush.msra.mxu0 0.0
    %3515 = vmatpush.msra.mxu0 0.0
    %3516 = vmatpush.msra.mxu0 0.0
    %3517 = vmatpush.msra.mxu0 0.0
    %3518 = vmatpush.msra.mxu0 0.0
    %3519 = vmatpush.msra.mxu0 0.0
    %3520 = vmatpush.msra.mxu0 %v3513
    %3521 = vmatpush.msra.mxu0 %v3512
    %3522 = vmatpush.msra.mxu0 %v3511
    %3523 = vmatpush.msra.mxu0 %v3510
    %3524 = vmatpush.msra.mxu0 %v3509
    %3525 = vmatpush.msra.mxu0 %v3508
    %3526 = vmatpush.msra.mxu0 %v3507
    %3527 = vmatpush.msra.mxu0 %v3506
    %3528 = vmatpush.msra.mxu0 %v3505
    %3529 = vmatpush.msra.mxu0 %v3504
    %3530 = vmatmul.f32.gmra.mxu0 %v3371
    %v3531 = vpop.f32.mrf.mxu0
    %v3532 = vadd.f32 0.0, %v3531
    %3533 = vmatmul.f32.gmra.mxu0 %v3374
    %v3534 = vpop.f32.mrf.mxu0
    %v3535 = vadd.f32 0.0, %v3534
    %3536 = vmatmul.f32.gmra.mxu0 %v3377
    %v3537 = vpop.f32.mrf.mxu0
    %v3538 = vadd.f32 0.0, %v3537
    %3539 = vmatmul.f32.gmra.mxu0 %v3380
    %v3540 = vpop.f32.mrf.mxu0
    %v3541 = vadd.f32 0.0, %v3540
    %3542 = vdwg.mxu0
    %v3543 = vadd.f32 %v3499, %v3532
    %v3544 = vadd.f32 %v3500, %v3535
    %v3545 = vadd.f32 %v3501, %v3538
    %v3546 = vadd.f32 %v3502, %v3541
    %s3547 = scalar_lea.vmem %s15, 1920
    %v3548 = vld [vmem:[%s3547] sm:$0xff]
    %v3549 = vld [vmem:[%s3547 + $0x8] sm:$0xff]
    %v3550 = vld [vmem:[%s3547 + $0x10] sm:$0xff]
    %v3551 = vld [vmem:[%s3547 + $0x18] sm:$0xff]
    %v3552 = vld [vmem:[%s3547 + $0x20] sm:$0xff]
    %v3553 = vld [vmem:[%s3547 + $0x28] sm:$0xff]
    %v3554 = vld [vmem:[%s3547 + $0x30] sm:$0xff]
    %v3555 = vld [vmem:[%s3547 + $0x38] sm:$0xff]
    %v3556 = vld [vmem:[%s3547 + $0x40] sm:$0xff]
    %v3557 = vld [vmem:[%s3547 + $0x48] sm:$0xff]
    %3558 = vmatpush.msra.mxu0 0.0
    %3559 = vmatpush.msra.mxu0 0.0
    %3560 = vmatpush.msra.mxu0 0.0
    %3561 = vmatpush.msra.mxu0 0.0
    %3562 = vmatpush.msra.mxu0 0.0
    %3563 = vmatpush.msra.mxu0 0.0
    %3564 = vmatpush.msra.mxu0 %v3557
    %3565 = vmatpush.msra.mxu0 %v3556
    %3566 = vmatpush.msra.mxu0 %v3555
    %3567 = vmatpush.msra.mxu0 %v3554
    %3568 = vmatpush.msra.mxu0 %v3553
    %3569 = vmatpush.msra.mxu0 %v3552
    %3570 = vmatpush.msra.mxu0 %v3551
    %3571 = vmatpush.msra.mxu0 %v3550
    %3572 = vmatpush.msra.mxu0 %v3549
    %3573 = vmatpush.msra.mxu0 %v3548
    %3574 = vmatmul.f32.gmra.mxu0 %v3371
    %v3575 = vpop.f32.mrf.mxu0
    %v3576 = vadd.f32 0.0, %v3575
    %3577 = vmatmul.f32.gmra.mxu0 %v3374
    %v3578 = vpop.f32.mrf.mxu0
    %v3579 = vadd.f32 0.0, %v3578
    %3580 = vmatmul.f32.gmra.mxu0 %v3377
    %v3581 = vpop.f32.mrf.mxu0
    %v3582 = vadd.f32 0.0, %v3581
    %3583 = vmatmul.f32.gmra.mxu0 %v3380
    %v3584 = vpop.f32.mrf.mxu0
    %v3585 = vadd.f32 0.0, %v3584
    %3586 = vdwg.mxu0
    %v3587 = vadd.f32 %v3543, %v3576
    %v3588 = vadd.f32 %v3544, %v3579
    %v3589 = vadd.f32 %v3545, %v3582
    %v3590 = vadd.f32 %v3546, %v3585
    %v3591 = vld [vmem:[%s16] sm:$0x1]
    %v3593 = vperm.slane %v3591, 0
    %v3595 = vadd.f32 %v3587, %v3593
    %v3596 = vadd.f32 %v3588, %v3593
    %v3597 = vadd.f32 %v3589, %v3593
    %v3598 = vadd.f32 %v3590, %v3593
    %vm3599 = vcmp.gt.f32.partialorder %v3595, 20.0
    %vm3600 = vcmp.gt.f32.partialorder %v3596, 20.0
    %vm3601 = vcmp.gt.f32.partialorder %v3597, 20.0
    %vm3602 = vcmp.gt.f32.partialorder %v3598, 20.0
    %v3603 = vmin.f32 %v3595, 20.0
    %v3604 = vmin.f32 %v3596, 20.0
    %v3605 = vmin.f32 %v3597, 20.0
    %v3606 = vmin.f32 %v3598, 20.0
    %v3607 = vmul.f32 %v3603, 1.442695
    %v3608 = vpow.pop %v3607
    %v3609 = vmul.f32 %v3604, 1.442695
    %v3610 = vpow.pop %v3609
    %v3611 = vmul.f32 %v3605, 1.442695
    %v3612 = vpow.pop %v3611
    %v3613 = vmul.f32 %v3606, 1.442695
    %v3614 = vpow.pop %v3613
    %v3615 = vadd.f32 %v3608, 1.0
    %v3616 = vadd.f32 %v3610, 1.0
    %v3617 = vadd.f32 %v3612, 1.0
    %v3618 = vadd.f32 %v3614, 1.0
    %v3619 = vlog2.pop %v3615
    %v3620 = vmul.f32 %v3619, 0.6931472
    %v3621 = vlog2.pop %v3616
    %v3622 = vmul.f32 %v3621, 0.6931472
    %v3623 = vlog2.pop %v3617
    %v3624 = vmul.f32 %v3623, 0.6931472
    %v3625 = vlog2.pop %v3618
    %v3626 = vmul.f32 %v3625, 0.6931472
    %v3627 = vsel %vm3599, %v3595, %v3620
    %v3628 = vsel %vm3600, %v3596, %v3622
    %v3629 = vsel %vm3601, %v3597, %v3624
    %v3630 = vsel %vm3602, %v3598, %v3626
    %v3631 = vld [vmem:[%s17] sm:$0xff]
    %v3632 = vld [vmem:[%s17 + $0x8] sm:$0xff]
    %v3633 = vld [vmem:[%s17 + $0x10] sm:$0xff]
    %v3634 = vld [vmem:[%s17 + $0x18] sm:$0xff]
    %v3635 = vld [vmem:[%s17 + $0x20] sm:$0xff]
    %v3636 = vld [vmem:[%s17 + $0x28] sm:$0xff]
    %v3637 = vld [vmem:[%s17 + $0x30] sm:$0xff]
    %vm3638 = vcmask 244736
    %v3640 = vsel %vm3638, %v3631, 0
    %v3643 = vsel %vm3638, %v3632, 0
    %v3646 = vsel %vm3638, %v3633, 0
    %v3649 = vsel %vm3638, %v3634, 0
    %v3652 = vsel %vm3638, %v3635, 0
    %v3655 = vsel %vm3638, %v3636, 0
    %v3658 = vsel %vm3638, %v3637, 0
    %v3661 = vsel %vm1675, %v3630, 0
    %3663 = vmatpush.msra.mxu0 0.0
    %3664 = vmatpush.msra.mxu0 0.0
    %3665 = vmatpush.msra.mxu0 0.0
    %3666 = vmatpush.msra.mxu0 0.0
    %3667 = vmatpush.msra.mxu0 0.0
    %3668 = vmatpush.msra.mxu0 0.0
    %3669 = vmatpush.msra.mxu0 0.0
    %3670 = vmatpush.msra.mxu0 0.0
    %3671 = vmatpush.msra.mxu0 0.0
    %3672 = vmatpush.msra.mxu0 0.0
    %3673 = vmatpush.msra.mxu0 0.0
    %3674 = vmatpush.msra.mxu0 0.0
    %3675 = vmatpush.msra.mxu0 %v3661
    %3676 = vmatpush.msra.mxu0 %v3629
    %3677 = vmatpush.msra.mxu0 %v3628
    %3678 = vmatpush.msra.mxu0 %v3627
    %3679 = vmatmul.f32.gmra.mxu0 %v3640
    %v3680 = vpop.f32.mrf.mxu0
    %v3681 = vadd.f32 0.0, %v3680
    %3682 = vmatmul.f32.gmra.mxu0 %v3643
    %v3683 = vpop.f32.mrf.mxu0
    %v3684 = vadd.f32 0.0, %v3683
    %3685 = vmatmul.f32.gmra.mxu0 %v3646
    %v3686 = vpop.f32.mrf.mxu0
    %v3687 = vadd.f32 0.0, %v3686
    %3688 = vmatmul.f32.gmra.mxu0 %v3649
    %v3689 = vpop.f32.mrf.mxu0
    %v3690 = vadd.f32 0.0, %v3689
    %3691 = vmatmul.f32.gmra.mxu0 %v3652
    %v3692 = vpop.f32.mrf.mxu0
    %v3693 = vadd.f32 0.0, %v3692
    %3694 = vmatmul.f32.gmra.mxu0 %v3655
    %v3695 = vpop.f32.mrf.mxu0
    %v3696 = vadd.f32 0.0, %v3695
    %3697 = vmatmul.f32.gmra.mxu0 %v3658
    %v3698 = vpop.f32.mrf.mxu0
    %v3699 = vadd.f32 0.0, %v3698
    %3700 = vdwg.mxu0
    %v3701 = vld [vmem:[%s18] sm:$0xff]
    %v3702 = vld [vmem:[%s18 + $0x8] sm:$0xff]
    %v3703 = vld [vmem:[%s18 + $0x10] sm:$0xff]
    %v3704 = vld [vmem:[%s18 + $0x18] sm:$0xff]
    %v3705 = vld [vmem:[%s18 + $0x20] sm:$0xff]
    %v3706 = vld [vmem:[%s18 + $0x28] sm:$0xff]
    %v3707 = vld [vmem:[%s18 + $0x30] sm:$0xff]
    %v3708 = vld [vmem:[%s18 + $0x38] sm:$0xff]
    %v3709 = vld [vmem:[%s18 + $0x40] sm:$0xff]
    %v3710 = vld [vmem:[%s18 + $0x48] sm:$0xff]
    %v3711 = vld [vmem:[%s18 + $0x50] sm:$0xff]
    %v3712 = vld [vmem:[%s18 + $0x58] sm:$0xff]
    %v3713 = vld [vmem:[%s18 + $0x60] sm:$0xff]
    %v3714 = vld [vmem:[%s18 + $0x68] sm:$0xff]
    %v3715 = vld [vmem:[%s18 + $0x70] sm:$0xff]
    %s3716 = scalar_lea.vmem %s18, 120
    %v3717 = vld [vmem:[%s3716] sm:$0xff]
    %v3718 = vld [vmem:[%s3716 + $0x8] sm:$0xff]
    %v3719 = vld [vmem:[%s3716 + $0x10] sm:$0xff]
    %v3720 = vld [vmem:[%s3716 + $0x18] sm:$0xff]
    %v3721 = vld [vmem:[%s3716 + $0x20] sm:$0xff]
    %v3722 = vld [vmem:[%s3716 + $0x28] sm:$0xff]
    %v3723 = vld [vmem:[%s3716 + $0x30] sm:$0xff]
    %v3724 = vld [vmem:[%s3716 + $0x38] sm:$0xff]
    %v3725 = vld [vmem:[%s3716 + $0x40] sm:$0xff]
    %v3726 = vld [vmem:[%s3716 + $0x48] sm:$0xff]
    %v3727 = vld [vmem:[%s3716 + $0x50] sm:$0xff]
    %v3728 = vld [vmem:[%s3716 + $0x58] sm:$0xff]
    %v3729 = vld [vmem:[%s3716 + $0x60] sm:$0xff]
    %v3730 = vld [vmem:[%s3716 + $0x68] sm:$0xff]
    %v3731 = vld [vmem:[%s3716 + $0x70] sm:$0xff]
    %vm3732 = vcmask 982016
    %v3734 = vsel %vm3732, %v3681, 0
    %v3737 = vsel %vm3732, %v3684, 0
    %v3740 = vsel %vm3732, %v3687, 0
    %v3743 = vsel %vm3732, %v3690, 0
    %v3746 = vsel %vm3732, %v3693, 0
    %v3749 = vsel %vm3732, %v3696, 0
    %v3752 = vsel %vm3732, %v3699, 0
    %3754 = vmatpush.msra.mxu0 0.0
    %3755 = vmatpush.msra.mxu0 %v3731
    %3756 = vmatpush.msra.mxu0 %v3730
    %3757 = vmatpush.msra.mxu0 %v3729
    %3758 = vmatpush.msra.mxu0 %v3728
    %3759 = vmatpush.msra.mxu0 %v3727
    %3760 = vmatpush.msra.mxu0 %v3726
    %3761 = vmatpush.msra.mxu0 %v3725
    %3762 = vmatpush.msra.mxu0 %v3724
    %3763 = vmatpush.msra.mxu0 %v3723
    %3764 = vmatpush.msra.mxu0 %v3722
    %3765 = vmatpush.msra.mxu0 %v3721
    %3766 = vmatpush.msra.mxu0 %v3720
    %3767 = vmatpush.msra.mxu0 %v3719
    %3768 = vmatpush.msra.mxu0 %v3718
    %3769 = vmatpush.msra.mxu0 %v3717
    %3770 = vmatmul.f32.gmra.mxu0 %v3734
    %v3771 = vpop.f32.mrf.mxu0
    %v3772 = vadd.f32 0.0, %v3771
    %3773 = vmatmul.f32.gmra.mxu0 %v3737
    %v3774 = vpop.f32.mrf.mxu0
    %v3775 = vadd.f32 0.0, %v3774
    %3776 = vmatmul.f32.gmra.mxu0 %v3740
    %v3777 = vpop.f32.mrf.mxu0
    %v3778 = vadd.f32 0.0, %v3777
    %3779 = vmatmul.f32.gmra.mxu0 %v3743
    %v3780 = vpop.f32.mrf.mxu0
    %v3781 = vadd.f32 0.0, %v3780
    %3782 = vmatmul.f32.gmra.mxu0 %v3746
    %v3783 = vpop.f32.mrf.mxu0
    %v3784 = vadd.f32 0.0, %v3783
    %3785 = vmatmul.f32.gmra.mxu0 %v3749
    %v3786 = vpop.f32.mrf.mxu0
    %v3787 = vadd.f32 0.0, %v3786
    %3788 = vmatmul.f32.gmra.mxu0 %v3752
    %v3789 = vpop.f32.mrf.mxu0
    %v3790 = vadd.f32 0.0, %v3789
    %3791 = vdwg.mxu0
    %3792 = vmatpush.msra.mxu0 0.0
    %3793 = vmatpush.msra.mxu0 %v3715
    %3794 = vmatpush.msra.mxu0 %v3714
    %3795 = vmatpush.msra.mxu0 %v3713
    %3796 = vmatpush.msra.mxu0 %v3712
    %3797 = vmatpush.msra.mxu0 %v3711
    %3798 = vmatpush.msra.mxu0 %v3710
    %3799 = vmatpush.msra.mxu0 %v3709
    %3800 = vmatpush.msra.mxu0 %v3708
    %3801 = vmatpush.msra.mxu0 %v3707
    %3802 = vmatpush.msra.mxu0 %v3706
    %3803 = vmatpush.msra.mxu0 %v3705
    %3804 = vmatpush.msra.mxu0 %v3704
    %3805 = vmatpush.msra.mxu0 %v3703
    %3806 = vmatpush.msra.mxu0 %v3702
    %3807 = vmatpush.msra.mxu0 %v3701
    %3808 = vmatmul.f32.gmra.mxu0 %v3734
    %v3809 = vpop.f32.mrf.mxu0
    %v3810 = vadd.f32 %v3772, %v3809
    %3811 = vmatmul.f32.gmra.mxu0 %v3737
    %v3812 = vpop.f32.mrf.mxu0
    %v3813 = vadd.f32 %v3775, %v3812
    %3814 = vmatmul.f32.gmra.mxu0 %v3740
    %v3815 = vpop.f32.mrf.mxu0
    %v3816 = vadd.f32 %v3778, %v3815
    %3817 = vmatmul.f32.gmra.mxu0 %v3743
    %v3818 = vpop.f32.mrf.mxu0
    %v3819 = vadd.f32 %v3781, %v3818
    %3820 = vmatmul.f32.gmra.mxu0 %v3746
    %v3821 = vpop.f32.mrf.mxu0
    %v3822 = vadd.f32 %v3784, %v3821
    %3823 = vmatmul.f32.gmra.mxu0 %v3749
    %v3824 = vpop.f32.mrf.mxu0
    %v3825 = vadd.f32 %v3787, %v3824
    %3826 = vmatmul.f32.gmra.mxu0 %v3752
    %v3827 = vpop.f32.mrf.mxu0
    %v3828 = vadd.f32 %v3790, %v3827
    %3829 = vdwg.mxu0
    %s3830 = scalar_lea.vmem %s17, 56
    %v3831 = vld [vmem:[%s3830] sm:$0xff]
    %v3832 = vld [vmem:[%s3830 + $0x8] sm:$0xff]
    %v3833 = vld [vmem:[%s3830 + $0x10] sm:$0xff]
    %v3834 = vld [vmem:[%s3830 + $0x18] sm:$0xff]
    %v3835 = vld [vmem:[%s3830 + $0x20] sm:$0xff]
    %v3836 = vld [vmem:[%s3830 + $0x28] sm:$0xff]
    %v3837 = vld [vmem:[%s3830 + $0x30] sm:$0xff]
    %v3839 = vsel %vm3638, %v3831, 0
    %v3842 = vsel %vm3638, %v3832, 0
    %v3845 = vsel %vm3638, %v3833, 0
    %v3848 = vsel %vm3638, %v3834, 0
    %v3851 = vsel %vm3638, %v3835, 0
    %v3854 = vsel %vm3638, %v3836, 0
    %v3857 = vsel %vm3638, %v3837, 0
    %3859 = vmatpush.msra.mxu0 0.0
    %3860 = vmatpush.msra.mxu0 0.0
    %3861 = vmatpush.msra.mxu0 0.0
    %3862 = vmatpush.msra.mxu0 0.0
    %3863 = vmatpush.msra.mxu0 0.0
    %3864 = vmatpush.msra.mxu0 0.0
    %3865 = vmatpush.msra.mxu0 0.0
    %3866 = vmatpush.msra.mxu0 0.0
    %3867 = vmatpush.msra.mxu0 0.0
    %3868 = vmatpush.msra.mxu0 0.0
    %3869 = vmatpush.msra.mxu0 0.0
    %3870 = vmatpush.msra.mxu0 0.0
    %3871 = vmatpush.msra.mxu0 %v3661
    %3872 = vmatpush.msra.mxu0 %v3629
    %3873 = vmatpush.msra.mxu0 %v3628
    %3874 = vmatpush.msra.mxu0 %v3627
    %3875 = vmatmul.f32.gmra.mxu0 %v3839
    %v3876 = vpop.f32.mrf.mxu0
    %v3877 = vadd.f32 0.0, %v3876
    %3878 = vmatmul.f32.gmra.mxu0 %v3842
    %v3879 = vpop.f32.mrf.mxu0
    %v3880 = vadd.f32 0.0, %v3879
    %3881 = vmatmul.f32.gmra.mxu0 %v3845
    %v3882 = vpop.f32.mrf.mxu0
    %v3883 = vadd.f32 0.0, %v3882
    %3884 = vmatmul.f32.gmra.mxu0 %v3848
    %v3885 = vpop.f32.mrf.mxu0
    %v3886 = vadd.f32 0.0, %v3885
    %3887 = vmatmul.f32.gmra.mxu0 %v3851
    %v3888 = vpop.f32.mrf.mxu0
    %v3889 = vadd.f32 0.0, %v3888
    %3890 = vmatmul.f32.gmra.mxu0 %v3854
    %v3891 = vpop.f32.mrf.mxu0
    %v3892 = vadd.f32 0.0, %v3891
    %3893 = vmatmul.f32.gmra.mxu0 %v3857
    %v3894 = vpop.f32.mrf.mxu0
    %v3895 = vadd.f32 0.0, %v3894
    %3896 = vdwg.mxu0
    %s3897 = scalar_lea.vmem %s18, 240
    %v3898 = vld [vmem:[%s3897] sm:$0xff]
    %v3899 = vld [vmem:[%s3897 + $0x8] sm:$0xff]
    %v3900 = vld [vmem:[%s3897 + $0x10] sm:$0xff]
    %v3901 = vld [vmem:[%s3897 + $0x18] sm:$0xff]
    %v3902 = vld [vmem:[%s3897 + $0x20] sm:$0xff]
    %v3903 = vld [vmem:[%s3897 + $0x28] sm:$0xff]
    %v3904 = vld [vmem:[%s3897 + $0x30] sm:$0xff]
    %v3905 = vld [vmem:[%s3897 + $0x38] sm:$0xff]
    %v3906 = vld [vmem:[%s3897 + $0x40] sm:$0xff]
    %v3907 = vld [vmem:[%s3897 + $0x48] sm:$0xff]
    %v3908 = vld [vmem:[%s3897 + $0x50] sm:$0xff]
    %v3909 = vld [vmem:[%s3897 + $0x58] sm:$0xff]
    %v3910 = vld [vmem:[%s3897 + $0x60] sm:$0xff]
    %v3911 = vld [vmem:[%s3897 + $0x68] sm:$0xff]
    %v3912 = vld [vmem:[%s3897 + $0x70] sm:$0xff]
    %v3914 = vsel %vm3732, %v3877, 0
    %v3917 = vsel %vm3732, %v3880, 0
    %v3920 = vsel %vm3732, %v3883, 0
    %v3923 = vsel %vm3732, %v3886, 0
    %v3926 = vsel %vm3732, %v3889, 0
    %v3929 = vsel %vm3732, %v3892, 0
    %v3932 = vsel %vm3732, %v3895, 0
    %3934 = vmatpush.msra.mxu0 0.0
    %3935 = vmatpush.msra.mxu0 %v3912
    %3936 = vmatpush.msra.mxu0 %v3911
    %3937 = vmatpush.msra.mxu0 %v3910
    %3938 = vmatpush.msra.mxu0 %v3909
    %3939 = vmatpush.msra.mxu0 %v3908
    %3940 = vmatpush.msra.mxu0 %v3907
    %3941 = vmatpush.msra.mxu0 %v3906
    %3942 = vmatpush.msra.mxu0 %v3905
    %3943 = vmatpush.msra.mxu0 %v3904
    %3944 = vmatpush.msra.mxu0 %v3903
    %3945 = vmatpush.msra.mxu0 %v3902
    %3946 = vmatpush.msra.mxu0 %v3901
    %3947 = vmatpush.msra.mxu0 %v3900
    %3948 = vmatpush.msra.mxu0 %v3899
    %3949 = vmatpush.msra.mxu0 %v3898
    %3950 = vmatmul.f32.gmra.mxu0 %v3914
    %v3951 = vpop.f32.mrf.mxu0
    %v3952 = vadd.f32 0.0, %v3951
    %3953 = vmatmul.f32.gmra.mxu0 %v3917
    %v3954 = vpop.f32.mrf.mxu0
    %v3955 = vadd.f32 0.0, %v3954
    %3956 = vmatmul.f32.gmra.mxu0 %v3920
    %v3957 = vpop.f32.mrf.mxu0
    %v3958 = vadd.f32 0.0, %v3957
    %3959 = vmatmul.f32.gmra.mxu0 %v3923
    %v3960 = vpop.f32.mrf.mxu0
    %v3961 = vadd.f32 0.0, %v3960
    %3962 = vmatmul.f32.gmra.mxu0 %v3926
    %v3963 = vpop.f32.mrf.mxu0
    %v3964 = vadd.f32 0.0, %v3963
    %3965 = vmatmul.f32.gmra.mxu0 %v3929
    %v3966 = vpop.f32.mrf.mxu0
    %v3967 = vadd.f32 0.0, %v3966
    %3968 = vmatmul.f32.gmra.mxu0 %v3932
    %v3969 = vpop.f32.mrf.mxu0
    %v3970 = vadd.f32 0.0, %v3969
    %3971 = vdwg.mxu0
    %v3972 = vadd.f32 %v3810, %v3952
    %v3973 = vadd.f32 %v3813, %v3955
    %v3974 = vadd.f32 %v3816, %v3958
    %v3975 = vadd.f32 %v3819, %v3961
    %v3976 = vadd.f32 %v3822, %v3964
    %v3977 = vadd.f32 %v3825, %v3967
    %v3978 = vadd.f32 %v3828, %v3970
    %s3979 = scalar_lea.vmem %s18, 360
    %v3980 = vld [vmem:[%s3979] sm:$0xff]
    %v3981 = vld [vmem:[%s3979 + $0x8] sm:$0xff]
    %v3982 = vld [vmem:[%s3979 + $0x10] sm:$0xff]
    %v3983 = vld [vmem:[%s3979 + $0x18] sm:$0xff]
    %v3984 = vld [vmem:[%s3979 + $0x20] sm:$0xff]
    %v3985 = vld [vmem:[%s3979 + $0x28] sm:$0xff]
    %v3986 = vld [vmem:[%s3979 + $0x30] sm:$0xff]
    %v3987 = vld [vmem:[%s3979 + $0x38] sm:$0xff]
    %v3988 = vld [vmem:[%s3979 + $0x40] sm:$0xff]
    %v3989 = vld [vmem:[%s3979 + $0x48] sm:$0xff]
    %v3990 = vld [vmem:[%s3979 + $0x50] sm:$0xff]
    %v3991 = vld [vmem:[%s3979 + $0x58] sm:$0xff]
    %v3992 = vld [vmem:[%s3979 + $0x60] sm:$0xff]
    %v3993 = vld [vmem:[%s3979 + $0x68] sm:$0xff]
    %v3994 = vld [vmem:[%s3979 + $0x70] sm:$0xff]
    %3995 = vmatpush.msra.mxu0 0.0
    %3996 = vmatpush.msra.mxu0 %v3994
    %3997 = vmatpush.msra.mxu0 %v3993
    %3998 = vmatpush.msra.mxu0 %v3992
    %3999 = vmatpush.msra.mxu0 %v3991
    %4000 = vmatpush.msra.mxu0 %v3990
    %4001 = vmatpush.msra.mxu0 %v3989
    %4002 = vmatpush.msra.mxu0 %v3988
    %4003 = vmatpush.msra.mxu0 %v3987
    %4004 = vmatpush.msra.mxu0 %v3986
    %4005 = vmatpush.msra.mxu0 %v3985
    %4006 = vmatpush.msra.mxu0 %v3984
    %4007 = vmatpush.msra.mxu0 %v3983
    %4008 = vmatpush.msra.mxu0 %v3982
    %4009 = vmatpush.msra.mxu0 %v3981
    %4010 = vmatpush.msra.mxu0 %v3980
    %4011 = vmatmul.f32.gmra.mxu0 %v3914
    %v4012 = vpop.f32.mrf.mxu0
    %v4013 = vadd.f32 0.0, %v4012
    %4014 = vmatmul.f32.gmra.mxu0 %v3917
    %v4015 = vpop.f32.mrf.mxu0
    %v4016 = vadd.f32 0.0, %v4015
    %4017 = vmatmul.f32.gmra.mxu0 %v3920
    %v4018 = vpop.f32.mrf.mxu0
    %v4019 = vadd.f32 0.0, %v4018
    %4020 = vmatmul.f32.gmra.mxu0 %v3923
    %v4021 = vpop.f32.mrf.mxu0
    %v4022 = vadd.f32 0.0, %v4021
    %4023 = vmatmul.f32.gmra.mxu0 %v3926
    %v4024 = vpop.f32.mrf.mxu0
    %v4025 = vadd.f32 0.0, %v4024
    %4026 = vmatmul.f32.gmra.mxu0 %v3929
    %v4027 = vpop.f32.mrf.mxu0
    %v4028 = vadd.f32 0.0, %v4027
    %4029 = vmatmul.f32.gmra.mxu0 %v3932
    %v4030 = vpop.f32.mrf.mxu0
    %v4031 = vadd.f32 0.0, %v4030
    %4032 = vdwg.mxu0
    %v4033 = vadd.f32 %v3972, %v4013
    %v4034 = vadd.f32 %v3973, %v4016
    %v4035 = vadd.f32 %v3974, %v4019
    %v4036 = vadd.f32 %v3975, %v4022
    %v4037 = vadd.f32 %v3976, %v4025
    %v4038 = vadd.f32 %v3977, %v4028
    %v4039 = vadd.f32 %v3978, %v4031
    %v4040 = vld [vmem:[%s19] sm:$0x1]
    %v4042 = vperm.slane %v4040, 0
    %v4044 = vadd.f32 %v4033, %v4042
    %v4045 = vadd.f32 %v4034, %v4042
    %v4046 = vadd.f32 %v4035, %v4042
    %v4047 = vadd.f32 %v4036, %v4042
    %v4048 = vadd.f32 %v4037, %v4042
    %v4049 = vadd.f32 %v4038, %v4042
    %v4050 = vadd.f32 %v4039, %v4042
    %v4051 = vtanh.pop %v4044
    %v4052 = vtanh.pop %v4045
    %v4053 = vtanh.pop %v4046
    %v4054 = vtanh.pop %v4047
    %v4055 = vtanh.pop %v4048
    %v4056 = vtanh.pop %v4049
    %v4057 = vtanh.pop %v4050
    %4058 = vst.msk [vmem:[#allocation2] sm:$0xff] %vm129, %v4051
    %4059 = vst.msk [vmem:[#allocation2 + $0x8] sm:$0xff] %vm129, %v4052
    %4060 = vst.msk [vmem:[#allocation2 + $0x10] sm:$0xff] %vm129, %v4053
    %4061 = vst.msk [vmem:[#allocation2 + $0x18] sm:$0xff] %vm129, %v4054
    %4062 = vst.msk [vmem:[#allocation2 + $0x20] sm:$0xff] %vm129, %v4055
    %4063 = vst.msk [vmem:[#allocation2 + $0x28] sm:$0xff] %vm129, %v4056
    %4064 = vst.msk [vmem:[#allocation2 + $0x30] sm:$0xff] %vm129, %v4057
    // Predicated region
    $region82: #{conv_ae_mnist_forward.1} parent=1 // pred_check
      _
    $region83: #{conv_ae_mnist_forward.1} parent=1 // pred_check_branch
      %4066 = sbr.rel (0) target = $region85
    $region84: #{conv_ae_mnist_forward.1} parent=1 // pred_region
      %4068 = vsyncadd [#allocation3], 0
      %s4069 = sshll.u32 [#allocation2], 4
      %s4070 = int_to_ptr.vmem [resolvable:$true] %s4069
      %s4071 = sshll.u32 %s20, 4
      %s4072 = int_to_ptr.hbm [resolvable:$true] %s4071
      %4077 = dma.vmem_to_hbm [thread:$0]  %s4070, 896, %s4072, [#allocation3], 128, 128, 8
    $region85: #{conv_ae_mnist_forward.1} parent=1 // pred_fallthru
      _
    // Predicated region
    $region86: #{conv_ae_mnist_forward.1} parent=1 // pred_check
      _
    $region87: #{conv_ae_mnist_forward.1} parent=1 // pred_check_branch
      %4079 = sbr.rel (0) target = $region89
    $region88: #{conv_ae_mnist_forward.1} parent=1 // pred_region
      %4081 = dma.done [#allocation3], 896
    $region89: #{conv_ae_mnist_forward.1} parent=1 // pred_fallthru
      _
    %4082 = vsyncpa [#allocation3], 1

</llo_original>
